<compile_context>
chip_gen: v5e
topology: v5e:2x2
jax: 0.10.0
libtpu: 0.0.40
codegen_flags: <defaults>
</compile_context>

<pallas_src>
import math
from functools import partial

import jax
import jax.numpy as jnp
from jax.experimental import pallas as pl
from jax.experimental.pallas import tpu as pltpu


# ----------------------------------------------------------------------------
# Shared math (used by the Pallas kernel AND the pure-JAX reference).
# ----------------------------------------------------------------------------
_LN_EPS = 1e-5  # torch.nn.LayerNorm default


def _ln(v):  # LayerNorm, elementwise_affine=False, f32
    mu = jnp.mean(v, axis=-1, keepdims=True)
    var = jnp.mean(jnp.square(v - mu), axis=-1, keepdims=True)
    return (v - mu) * jax.lax.rsqrt(var + _LN_EPS)


def _gelu(v):  # tanh-approx GELU, exactly as the module
    c0 = jnp.float32(math.sqrt(2.0 / math.pi))
    return 0.5 * v * (1.0 + jnp.tanh(c0 * (v + 0.044715 * v * v * v)))


def _silu(v):
    return v * jax.nn.sigmoid(v)


def _modulate(v, scale, bias):
    return v * (1.0 + scale) + bias


# ----------------------------------------------------------------------------
# Pallas kernel.
# grid = (batch_tiles, num_layers, mlp_chunks); residual lives in o_ref.
# ----------------------------------------------------------------------------
def _dit_kernel(xemb_ref, mod_ref, qkvw_ref, qkvb_ref, outw_ref, outb_ref,
                m1w_ref, m1b_ref, m2w_ref, m2b_ref, fm_ref,
                o_ref, h2_ref, acc_ref, *, num_heads):
    layer = pl.program_id(1)
    kchunk = pl.program_id(2)
    bt, L, D = o_ref.shape
    hd = D // num_heads

    # ---- attention + MLP-input prep: only on the first MLP chunk ----------
    @pl.when(kchunk == 0)
    def _attention():
        @pl.when(layer == 0)
        def _():
            o_ref[...] = xemb_ref[...]          # embedded tokens (hoisted to XLA)

        x = o_ref[...]                          # (bt, L, D) f32 residual
        mod = mod_ref[...]                      # (bt, 6, D) f32
        s1, b1, g1 = mod[:, 0:1], mod[:, 1:2], mod[:, 2:3]
        s2, b2 = mod[:, 3:4], mod[:, 4:5]

        h1 = _modulate(_ln(x), s1, b1).astype(jnp.bfloat16)
        h1f = h1.reshape(bt * L, D)             # merge leading dims (free)
        scale = jnp.float32(hd ** -0.5)

        # Per-head loop with per-head weight layout: all matmuls are 2-D or
        # (bt)-batched 3-D; no lane-slicing of activations, no concat.
        attn = jnp.zeros((bt * L, D), jnp.float32)
        for h in range(num_heads):
            q = (jnp.dot(h1f, qkvw_ref[0, h],
                         preferred_element_type=jnp.float32)
                 + qkvb_ref[0, h]) * scale      # scale folded into q
            ky = (jnp.dot(h1f, qkvw_ref[1, h],
                          preferred_element_type=jnp.float32)
                  + qkvb_ref[1, h])
            vv = (jnp.dot(h1f, qkvw_ref[2, h],
                          preferred_element_type=jnp.float32)
                  + qkvb_ref[2, h])
            q = q.reshape(bt, L, hd).astype(jnp.bfloat16)
            ky = ky.reshape(bt, L, hd).astype(jnp.bfloat16)
            vv = vv.reshape(bt, L, hd).astype(jnp.bfloat16)

            sc = jax.lax.dot_general(            # (bt, L, L) f32
                q, ky, (((2,), (2,)), ((0,), (0,))),
                preferred_element_type=jnp.float32)
            sc = sc - jnp.max(sc, axis=-1, keepdims=True)
            p = jnp.exp(sc)                      # f32 exp (v5e-safe)
            p = p * pl.reciprocal(jnp.sum(p, axis=-1, keepdims=True),
                                  approx=True)
            ctx = jax.lax.dot_general(           # (bt, L, hd) f32
                p.astype(jnp.bfloat16), vv, (((2,), (1,)), ((0,), (0,))),
                preferred_element_type=jnp.float32)
            attn = attn + jnp.dot(               # merge heads by accumulation
                ctx.reshape(bt * L, hd).astype(jnp.bfloat16), outw_ref[h],
                preferred_element_type=jnp.float32)

        attn = (attn + outb_ref[...]).reshape(bt, L, D)
        x = x + g1 * attn
        o_ref[...] = x                           # residual after attention

        # Stage the MLP input (bf16: it feeds bf16 matmuls) and zero the acc.
        h2_ref[...] = _modulate(_ln(x), s2, b2).astype(
            jnp.bfloat16).reshape(bt * L, D)
        acc_ref[...] = jnp.zeros_like(acc_ref)

    # ---- MLP chunk over the 4*D hidden dim (runs every k) ------------------
    # m1_w block (D, tile), m2_w block (tile, D) are streamed per chunk.
    g = _gelu(jnp.dot(h2_ref[...], m1w_ref[...],
                      preferred_element_type=jnp.float32) + m1b_ref[...])
    acc_ref[...] += jnp.dot(g.astype(jnp.bfloat16), m2w_ref[...],
                            preferred_element_type=jnp.float32)

    # ---- finalize the layer on the last MLP chunk ---------------------------
    @pl.when(kchunk == pl.num_programs(2) - 1)
    def _finish():
        g2 = mod_ref[...][:, 5:6]                              # (bt, 1, D)
        m_out = (acc_ref[...] + m2b_ref[...]).reshape(bt, L, D)
        x = o_ref[...] + g2 * m_out
        o_ref[...] = x

        @pl.when(layer == pl.num_programs(1) - 1)
        def _():
            fm = fm_ref[...]                                   # (bt, 2, D)
            o_ref[...] = _modulate(_ln(x), fm[:, 0:1], fm[:, 1:2])


# ----------------------------------------------------------------------------
# JAX glue: patchify / unpatchify / time features / conditioning precompute.
# ----------------------------------------------------------------------------
def patchify(x, cfg):
    B, C, H, W = x.shape
    p = cfg["patch_size"]
    Hp = H // p
    x = x.reshape(B, C, p, Hp, p, Hp).transpose(0, 3, 5, 1, 2, 4)
    return x.reshape(B, Hp * Hp, C * p * p)


def unpatchify(x, cfg):
    B, L, Dp = x.shape
    p = cfg["patch_size"]
    S = cfg["image_size"]
    C = cfg["image_channel"]
    Hp = S // p
    x = x.reshape(B, Hp, Hp, C, p, p).transpose(0, 3, 4, 1, 5, 2)
    return x.reshape(B, C, S, S)


def time_features(t, D, max_T=10000.0):
    # angles = max_T ** (-arange(0, D, 2)) / D  (module's exact precedence)
    angles = (max_T ** (-jnp.arange(0, D, 2, dtype=jnp.float32))) / D
    emb = t.astype(jnp.float32)[:, None] * angles[None, :]
    return jnp.concatenate([jnp.cos(emb), jnp.sin(emb)], axis=-1)


def _prepare_trunk_inputs(params, x_img, t, y, cfg):
    """Patchify + embed + hoisted conditioning (everything x-token-cheap or
    x-independent), plus per-head weight re-layout."""
    f32, bf16 = jnp.float32, jnp.bfloat16
    D, Nl, H = cfg["hidden_dim"], cfg["num_layers"], cfg["num_head"]
    hd = D // H
    B = x_img.shape[0]

    tokens = patchify(x_img, cfg).astype(f32)                       # (B,L,Dp)
    xemb = (tokens @ params["x_w"] + params["x_b"] + params["pos"]).astype(f32)

    tfeat = time_features(t, D)                                     # (B, D)
    yemb = jnp.take(params["y_emb"], y, axis=0)                     # (B, D)
    h = _silu(tfeat @ params["t1_w"] + params["t1_b"])
    temb = h @ params["t2_w"] + params["t2_b"]
    cond = _silu(temb + yemb)                                       # (B, D)

    # all layers' adaLN modulation in one batched matmul
    mod = jnp.einsum("bd,ldk->lbk", cond, params["mod_w"]) + params["mod_b"]
    mod_all = mod.reshape(Nl, B, 6, D)                              # (Nl,B,6,D)

    fm = cond @ params["fm_w"] + params["fm_b"]                     # (B, 2D)
    fm_all = fm.reshape(B, 2, D)                                    # (B, 2, D)

    # per-head weight layout (review item 5)
    qkv_w = params["qkv_w"].reshape(Nl, 3, D, H, hd).transpose(0, 1, 3, 2, 4)
    qkv_b = params["qkv_b"].reshape(Nl, 3, 1, H, hd).transpose(0, 1, 3, 2, 4)
    out_w = params["out_w"].reshape(Nl, H, hd, D)

    return (xemb,
            mod_all.astype(f32),
            qkv_w.astype(bf16), qkv_b.astype(f32),
            out_w.astype(bf16), params["out_b"].astype(f32),
            params["m1_w"].astype(bf16), params["m1_b"].astype(f32),
            params["m2_w"].astype(bf16), params["m2_b"].astype(f32),
            fm_all.astype(f32))


def dit_forward_pallas(params, x_img, t, y, cfg):
    inputs = _prepare_trunk_inputs(params, x_img, t, y, cfg)
    xemb = inputs[0]
    B, L, D = xemb.shape
    Nl, H = cfg["num_layers"], cfg["num_head"]
    hd = D // H

    mlp_hidden = 4 * D
    mt = min(cfg.get("mlp_tile", 512), mlp_hidden)
    assert mlp_hidden % mt == 0 and (mt == mlp_hidden or mt % 128 == 0), mt
    nk = mlp_hidden // mt

    # batch tile: B on v5e/v6e (single TC), B//2 on v7x (two TCs).
    bt = min(cfg.get("batch_tile", B), B)
    assert B % bt == 0, (B, bt)
    nb = B // bt

    sq = pl.Squeezed()

    hidden = pl.pallas_call(
        partial(_dit_kernel, num_heads=H),
        out_shape=jax.ShapeDtypeStruct((B, L, D), jnp.float32),
        grid=(nb, Nl, nk),
        in_specs=[
            pl.BlockSpec((bt, L, D), lambda b, l, k: (b, 0, 0)),            # xemb
            pl.BlockSpec((sq, bt, 6, D), lambda b, l, k: (l, b, 0, 0)),     # mod
            pl.BlockSpec((sq, 3, H, D, hd), lambda b, l, k: (l, 0, 0, 0, 0)),  # qkv_w
            pl.BlockSpec((sq, 3, H, 1, hd), lambda b, l, k: (l, 0, 0, 0, 0)),  # qkv_b
            pl.BlockSpec((sq, H, hd, D), lambda b, l, k: (l, 0, 0, 0)),     # out_w
            pl.BlockSpec((sq, 1, D), lambda b, l, k: (l, 0, 0)),            # out_b
            pl.BlockSpec((sq, D, mt), lambda b, l, k: (l, 0, k)),           # m1_w tile
            pl.BlockSpec((sq, 1, mt), lambda b, l, k: (l, 0, k)),           # m1_b tile
            pl.BlockSpec((sq, mt, D), lambda b, l, k: (l, k, 0)),           # m2_w tile
            pl.BlockSpec((sq, 1, D), lambda b, l, k: (l, 0, 0)),            # m2_b
            pl.BlockSpec((bt, 2, D), lambda b, l, k: (b, 0, 0)),            # final mod
        ],
        out_specs=pl.BlockSpec((bt, L, D), lambda b, l, k: (b, 0, 0)),
        scratch_shapes=[
            pltpu.VMEM((bt * L, D), jnp.bfloat16),   # staged MLP input h2
            pltpu.VMEM((bt * L, D), jnp.float32),    # MLP accumulator
        ],
        compiler_params=pltpu.CompilerParams(
            dimension_semantics=("parallel", "arbitrary", "arbitrary")),
        # NOTE: at production sizes set vmem_limit_bytes against the per-chip
        # ceiling (v7x: 64 MiB) and re-derive mlp_tile / batch_tile.
    )(*inputs)

    # tiny hidden -> seq_dim projection kept outside (kernel output stays
    # lane-dense at D)
    out_tokens = hidden @ params["fp_w"] + params["fp_b"]
    return unpatchify(out_tokens, cfg)


# ----------------------------------------------------------------------------
# Pure-JAX reference (same prepared weights and bf16/f32 conventions).
# ----------------------------------------------------------------------------
def dit_forward_reference(params, x_img, t, y, cfg):
    (xemb, mod_all, qkv_w, qkv_b, out_w, out_b,
     m1_w, m1_b, m2_w, m2_b, fm_all) = _prepare_trunk_inputs(
        params, x_img, t, y, cfg)
    H, D = cfg["num_head"], cfg["hidden_dim"]
    hd = D // H
    scale = hd ** -0.5
    bf16, f32 = jnp.bfloat16, jnp.float32

    x = xemb
    for l in range(cfg["num_layers"]):
        mod = mod_all[l]                                  # (B, 6, D)
        s1, b1, g1 = mod[:, 0:1], mod[:, 1:2], mod[:, 2:3]
        s2, b2, g2 = mod[:, 3:4], mod[:, 4:5], mod[:, 5:6]

        h1 = _modulate(_ln(x), s1, b1).astype(bf16)
        qw, kw, vw = qkv_w[l, 0], qkv_w[l, 1], qkv_w[l, 2]   # (H, D, hd)
        qb, kb, vb = qkv_b[l, 0], qkv_b[l, 1], qkv_b[l, 2]   # (H, 1, hd)
        q = (jnp.einsum("bld,hdk->bhlk", h1, qw,
                        preferred_element_type=f32) + qb[None]) * scale
        k = jnp.einsum("bld,hdk->bhlk", h1, kw,
                       preferred_element_type=f32) + kb[None]
        v = jnp.einsum("bld,hdk->bhlk", h1, vw,
                       preferred_element_type=f32) + vb[None]
        sc = jnp.einsum("bhik,bhjk->bhij", q.astype(bf16), k.astype(bf16),
                        preferred_element_type=f32)
        p = jax.nn.softmax(sc, axis=-1)
        ctx = jnp.einsum("bhij,bhjk->bhik", p.astype(bf16), v.astype(bf16),
                         preferred_element_type=f32)
        attn = jnp.einsum("bhlk,hkd->bld", ctx.astype(bf16), out_w[l],
                          preferred_element_type=f32) + out_b[l]
        x = x + g1 * attn

        h2 = _modulate(_ln(x), s2, b2).astype(bf16)
        m = _gelu(jnp.einsum("bld,dk->blk", h2, m1_w[l],
                             preferred_element_type=f32) + m1_b[l])
        m = jnp.einsum("blk,kd->bld", m.astype(bf16), m2_w[l],
                       preferred_element_type=f32) + m2_b[l]
        x = x + g2 * m

    x = _modulate(_ln(x), fm_all[:, 0:1, :], fm_all[:, 1:2, :])
    out_tokens = x @ params["fp_w"] + params["fp_b"]
    return unpatchify(out_tokens, cfg)


# ----------------------------------------------------------------------------
# Deterministic parameter initialization (shapes from DiT.__init__, with the
# fused qkv weight pre-split into its q/k/v chunks on a leading axis).
# ----------------------------------------------------------------------------
def init_params(key, cfg):
    D = cfg["hidden_dim"]
    Nl = cfg["num_layers"]
    Dp = cfg["seq_dim"]
    L = cfg["seq_len"]
    NC = cfg["num_classes"]
    keys = iter(jax.random.split(key, 32))

    def rnd(shape, std=0.02):
        return std * jax.random.normal(next(keys), shape, dtype=jnp.float32)

    return dict(
        x_w=rnd((Dp, D)), x_b=rnd((1, D)),
        t1_w=rnd((D, D)), t1_b=rnd((1, D)),
        t2_w=rnd((D, D)), t2_b=rnd((1, D)),
        y_emb=rnd((NC, D)),
        pos=rnd((L, D)),
        mod_w=rnd((Nl, D, 6 * D), std=0.1), mod_b=rnd((Nl, 1, 6 * D), std=0.1),
        qkv_w=rnd((Nl, 3, D, D)), qkv_b=rnd((Nl, 3, 1, D)),
        out_w=rnd((Nl, D, D)), out_b=rnd((Nl, 1, D)),
        m1_w=rnd((Nl, D, 4 * D), std=0.05), m1_b=rnd((Nl, 1, 4 * D)),
        m2_w=rnd((Nl, 4 * D, D), std=0.05), m2_b=rnd((Nl, 1, D)),
        fm_w=rnd((D, 2 * D), std=0.1), fm_b=rnd((1, 2 * D), std=0.1),
        fp_w=rnd((D, Dp), std=0.1), fp_b=rnd((1, Dp), std=0.1),
    )


if __name__ == "__main__":
    cfg = dict(num_layers=3, hidden_dim=64, num_head=4, patch_size=2,
               image_size=8, image_channel=1, num_classes=10,
               mlp_tile=128,    # exercises the MLP hidden-dim chunking (2 chunks)
               batch_tile=1)    # exercises the parallel batch grid axis
    cfg["seq_len"] = (cfg["image_size"] // cfg["patch_size"]) ** 2   # 16
    cfg["seq_dim"] = cfg["image_channel"] * cfg["patch_size"] ** 2   # 4

    key = jax.random.PRNGKey(0)
    kp, kx = jax.random.split(key, 2)
    params = init_params(kp, cfg)

    B = 2
    x = jax.random.normal(
        kx, (B, cfg["image_channel"], cfg["image_size"], cfg["image_size"]),
        dtype=jnp.float32)
    t = jnp.array([3.0, 17.0], dtype=jnp.float32)
    y = jnp.array([1, 7], dtype=jnp.int32)

    out = jax.block_until_ready(dit_forward_pallas(params, x, t, y, cfg))
    ref = jax.block_until_ready(dit_forward_reference(params, x, t, y, cfg))

    assert out.shape == x.shape, (out.shape, x.shape)
    err = float(jnp.max(jnp.abs(out - ref)))
    assert err < 5e-3, f"mismatch vs pure-JAX reference: {err}"
    print("KERNEL_OK")
</pallas_src>

<mosaic_0001>
module attributes {stable_mosaic.version = 11 : i64} {
  func.func @_dit_kernel(%arg0: i32, %arg1: i32, %arg2: i32, %arg3: memref<1x16x64xf32, #tpu.memory_space<vmem>>, %arg4: memref<1x1x6x64xf32, #tpu.memory_space<vmem>>, %arg5: memref<1x3x4x64x16xbf16, #tpu.memory_space<vmem>>, %arg6: memref<1x3x4x1x16xf32, #tpu.memory_space<vmem>>, %arg7: memref<1x4x16x64xbf16, #tpu.memory_space<vmem>>, %arg8: memref<1x1x64xf32, #tpu.memory_space<vmem>>, %arg9: memref<1x64x128xbf16, #tpu.memory_space<vmem>>, %arg10: memref<1x1x128xf32, #tpu.memory_space<vmem>>, %arg11: memref<1x128x64xbf16, #tpu.memory_space<vmem>>, %arg12: memref<1x1x64xf32, #tpu.memory_space<vmem>>, %arg13: memref<1x2x64xf32, #tpu.memory_space<vmem>>, %arg14: memref<1x16x64xf32, #tpu.memory_space<vmem>>, %arg15: memref<16x64xbf16, #tpu.memory_space<vmem>>, %arg16: memref<16x64xf32, #tpu.memory_space<vmem>>) attributes {dimension_semantics = [#tpu.dimension_semantics<parallel>, #tpu.dimension_semantics<arbitrary>, #tpu.dimension_semantics<arbitrary>], iteration_bounds = array<i64: 2, 3, 2>, scalar_prefetch = 0 : i64, scratch_operands = 2 : i64, tpu.core_type = #tpu.core_type<tc>, window_params = [{transform_indices = @transform_0, window_bounds = array<i64: 1, 16, 64>}, {transform_indices = @transform_1, window_bounds = array<i64: 1, 1, 6, 64>}, {transform_indices = @transform_2, window_bounds = array<i64: 1, 3, 4, 64, 16>}, {transform_indices = @transform_3, window_bounds = array<i64: 1, 3, 4, 1, 16>}, {transform_indices = @transform_4, window_bounds = array<i64: 1, 4, 16, 64>}, {transform_indices = @transform_5, window_bounds = array<i64: 1, 1, 64>}, {transform_indices = @transform_6, window_bounds = array<i64: 1, 64, 128>}, {transform_indices = @transform_7, window_bounds = array<i64: 1, 1, 128>}, {transform_indices = @transform_8, window_bounds = array<i64: 1, 128, 64>}, {transform_indices = @transform_9, window_bounds = array<i64: 1, 1, 64>}, {transform_indices = @transform_10, window_bounds = array<i64: 1, 2, 64>}, {transform_indices = @transform_11, window_bounds = array<i64: 1, 16, 64>}]} {
    %c0_i32 = arith.constant 0 : i32
    %0 = arith.cmpi eq, %arg2, %c0_i32 : i32
    %1 = arith.extui %0 : i1 to i32
    %c0_i32_0 = arith.constant 0 : i32
    %2 = arith.cmpi ne, %1, %c0_i32_0 : i32
    scf.if %2 {
      %c0_i32_21 = arith.constant 0 : i32
      %34 = arith.cmpi eq, %arg1, %c0_i32_21 : i32
      %35 = arith.extui %34 : i1 to i32
      %c0_i32_22 = arith.constant 0 : i32
      %36 = arith.cmpi ne, %35, %c0_i32_22 : i32
      scf.if %36 {
        %c0_223 = arith.constant 0 : index
        %c0_224 = arith.constant 0 : index
        %c0_225 = arith.constant 0 : index
        %302 = vector.load %arg3[%c0_223, %c0_224, %c0_225] : memref<1x16x64xf32, #tpu.memory_space<vmem>>, vector<1x16x64xf32>
        %c0_226 = arith.constant 0 : index
        %c0_227 = arith.constant 0 : index
        %c0_228 = arith.constant 0 : index
        %303 = vector.load %arg14[%c0_226, %c0_227, %c0_228] : memref<1x16x64xf32, #tpu.memory_space<vmem>>, vector<1x16x64xf32>
        tpu.vector_store %arg14[%c0_226, %c0_227, %c0_228], %302 {strides = array<i32>} : memref<1x16x64xf32, #tpu.memory_space<vmem>>, vector<1x16x64xf32>,
      } else {
      }
      %c0_23 = arith.constant 0 : index
      %c0_24 = arith.constant 0 : index
      %c0_25 = arith.constant 0 : index
      %37 = vector.load %arg14[%c0_23, %c0_24, %c0_25] : memref<1x16x64xf32, #tpu.memory_space<vmem>>, vector<1x16x64xf32>
      %c0_26 = arith.constant 0 : index
      %c0_27 = arith.constant 0 : index
      %c0_28 = arith.constant 0 : index
      %c0_29 = arith.constant 0 : index
      %38 = vector.load %arg4[%c0_26, %c0_27, %c0_28, %c0_29] : memref<1x1x6x64xf32, #tpu.memory_space<vmem>>, vector<1x1x6x64xf32>
      %39 = vector.shape_cast %38 : vector<1x1x6x64xf32> to vector<1x6x64xf32>
      %40 = vector.extract_strided_slice %39 {offsets = [0, 0, 0], sizes = [1, 1, 64], strides = [1, 1, 1]} : vector<1x6x64xf32> to vector<1x1x64xf32>
      %41 = vector.extract_strided_slice %39 {offsets = [0, 1, 0], sizes = [1, 1, 64], strides = [1, 1, 1]} : vector<1x6x64xf32> to vector<1x1x64xf32>
      %42 = vector.extract_strided_slice %39 {offsets = [0, 2, 0], sizes = [1, 1, 64], strides = [1, 1, 1]} : vector<1x6x64xf32> to vector<1x1x64xf32>
      %43 = vector.extract_strided_slice %39 {offsets = [0, 3, 0], sizes = [1, 1, 64], strides = [1, 1, 1]} : vector<1x6x64xf32> to vector<1x1x64xf32>
      %44 = vector.extract_strided_slice %39 {offsets = [0, 4, 0], sizes = [1, 1, 64], strides = [1, 1, 1]} : vector<1x6x64xf32> to vector<1x1x64xf32>
      %cst_30 = arith.constant dense<0.000000e+00> : vector<1x16xf32>
      %45 = vector.multi_reduction <add>, %37, %cst_30 [2] : vector<1x16x64xf32> to vector<1x16xf32>
      %46 = vector.shape_cast %45 : vector<1x16xf32> to vector<1x16x1xf32>
      %cst_31 = arith.constant 6.400000e+01 : f32
      %47 = vector.broadcast %cst_31 : f32 to vector<1x16x1xf32>
      %48 = arith.divf %46, %47 : vector<1x16x1xf32>
      %49 = vector.broadcast %48 : vector<1x16x1xf32> to vector<1x16x64xf32>
      %50 = arith.subf %37, %49 : vector<1x16x64xf32>
      %51 = arith.mulf %50, %50 : vector<1x16x64xf32>
      %cst_32 = arith.constant dense<0.000000e+00> : vector<1x16xf32>
      %52 = vector.multi_reduction <add>, %51, %cst_32 [2] : vector<1x16x64xf32> to vector<1x16xf32>
      %53 = vector.shape_cast %52 : vector<1x16xf32> to vector<1x16x1xf32>
      %cst_33 = arith.constant 6.400000e+01 : f32
      %54 = vector.broadcast %cst_33 : f32 to vector<1x16x1xf32>
      %55 = arith.divf %53, %54 : vector<1x16x1xf32>
      %56 = vector.broadcast %48 : vector<1x16x1xf32> to vector<1x16x64xf32>
      %57 = arith.subf %37, %56 : vector<1x16x64xf32>
      %cst_34 = arith.constant 9.99999974E-6 : f32
      %58 = vector.broadcast %cst_34 : f32 to vector<1x16x1xf32>
      %59 = arith.addf %55, %58 : vector<1x16x1xf32>
      %60 = math.rsqrt %59 : vector<1x16x1xf32>
      %61 = vector.broadcast %60 : vector<1x16x1xf32> to vector<1x16x64xf32>
      %62 = arith.mulf %57, %61 : vector<1x16x64xf32>
      %cst_35 = arith.constant 1.000000e+00 : f32
      %63 = vector.broadcast %cst_35 : f32 to vector<1x1x64xf32>
      %64 = arith.addf %63, %40 : vector<1x1x64xf32>
      %65 = vector.broadcast %64 : vector<1x1x64xf32> to vector<1x16x64xf32>
      %66 = arith.mulf %62, %65 : vector<1x16x64xf32>
      %67 = vector.broadcast %41 : vector<1x1x64xf32> to vector<1x16x64xf32>
      %68 = arith.addf %66, %67 : vector<1x16x64xf32>
      %69 = arith.truncf %68 : vector<1x16x64xf32> to vector<1x16x64xbf16>
      %70 = vector.shape_cast %69 : vector<1x16x64xbf16> to vector<16x64xbf16>
      %cst_36 = arith.constant 0.000000e+00 : f32
      %71 = vector.broadcast %cst_36 : f32 to vector<16x64xf32>
      %c0_37 = arith.constant 0 : index
      %c0_38 = arith.constant 0 : index
      %c0_39 = arith.constant 0 : index
      %c0_40 = arith.constant 0 : index
      %c0_41 = arith.constant 0 : index
      %72 = vector.load %arg5[%c0_37, %c0_38, %c0_39, %c0_40, %c0_41] : memref<1x3x4x64x16xbf16, #tpu.memory_space<vmem>>, vector<1x1x1x64x16xbf16>
      %73 = vector.shape_cast %72 : vector<1x1x1x64x16xbf16> to vector<64x16xbf16>
      %cst_42 = arith.constant dense<0.000000e+00> : vector<16x16xf32>
      %74 = tpu.matmul %70, %73, %cst_42 {dimension_numbers = #tpu.dot_dimension_numbers<[1], [0], [0], [1], [0, 0, 1, 1], [], []>} : vector<16x64xbf16>, vector<64x16xbf16>, vector<16x16xf32> -> vector<16x16xf32>
      %c0_43 = arith.constant 0 : index
      %c0_44 = arith.constant 0 : index
      %c0_45 = arith.constant 0 : index
      %c0_46 = arith.constant 0 : index
      %c0_47 = arith.constant 0 : index
      %75 = vector.load %arg6[%c0_43, %c0_44, %c0_45, %c0_46, %c0_47] : memref<1x3x4x1x16xf32, #tpu.memory_space<vmem>>, vector<1x1x1x1x16xf32>
      %76 = vector.shape_cast %75 : vector<1x1x1x1x16xf32> to vector<1x16xf32>
      %77 = vector.broadcast %76 : vector<1x16xf32> to vector<16x16xf32>
      %78 = arith.addf %74, %77 : vector<16x16xf32>
      %cst_48 = arith.constant 2.500000e-01 : f32
      %79 = vector.broadcast %cst_48 : f32 to vector<16x16xf32>
      %80 = arith.mulf %78, %79 : vector<16x16xf32>
      %c0_49 = arith.constant 0 : index
      %c1 = arith.constant 1 : index
      %c0_50 = arith.constant 0 : index
      %c0_51 = arith.constant 0 : index
      %c0_52 = arith.constant 0 : index
      %81 = vector.load %arg5[%c0_49, %c1, %c0_50, %c0_51, %c0_52] : memref<1x3x4x64x16xbf16, #tpu.memory_space<vmem>>, vector<1x1x1x64x16xbf16>
      %82 = vector.shape_cast %81 : vector<1x1x1x64x16xbf16> to vector<64x16xbf16>
      %cst_53 = arith.constant dense<0.000000e+00> : vector<16x16xf32>
      %83 = tpu.matmul %70, %82, %cst_53 {dimension_numbers = #tpu.dot_dimension_numbers<[1], [0], [0], [1], [0, 0, 1, 1], [], []>} : vector<16x64xbf16>, vector<64x16xbf16>, vector<16x16xf32> -> vector<16x16xf32>
      %c0_54 = arith.constant 0 : index
      %c1_55 = arith.constant 1 : index
      %c0_56 = arith.constant 0 : index
      %c0_57 = arith.constant 0 : index
      %c0_58 = arith.constant 0 : index
      %84 = vector.load %arg6[%c0_54, %c1_55, %c0_56, %c0_57, %c0_58] : memref<1x3x4x1x16xf32, #tpu.memory_space<vmem>>, vector<1x1x1x1x16xf32>
      %85 = vector.shape_cast %84 : vector<1x1x1x1x16xf32> to vector<1x16xf32>
      %86 = vector.broadcast %85 : vector<1x16xf32> to vector<16x16xf32>
      %87 = arith.addf %83, %86 : vector<16x16xf32>
      %c0_59 = arith.constant 0 : index
      %c2 = arith.constant 2 : index
      %c0_60 = arith.constant 0 : index
      %c0_61 = arith.constant 0 : index
      %c0_62 = arith.constant 0 : index
      %88 = vector.load %arg5[%c0_59, %c2, %c0_60, %c0_61, %c0_62] : memref<1x3x4x64x16xbf16, #tpu.memory_space<vmem>>, vector<1x1x1x64x16xbf16>
      %89 = vector.shape_cast %88 : vector<1x1x1x64x16xbf16> to vector<64x16xbf16>
      %cst_63 = arith.constant dense<0.000000e+00> : vector<16x16xf32>
      %90 = tpu.matmul %70, %89, %cst_63 {dimension_numbers = #tpu.dot_dimension_numbers<[1], [0], [0], [1], [0, 0, 1, 1], [], []>} : vector<16x64xbf16>, vector<64x16xbf16>, vector<16x16xf32> -> vector<16x16xf32>
      %c0_64 = arith.constant 0 : index
      %c2_65 = arith.constant 2 : index
      %c0_66 = arith.constant 0 : index
      %c0_67 = arith.constant 0 : index
      %c0_68 = arith.constant 0 : index
      %91 = vector.load %arg6[%c0_64, %c2_65, %c0_66, %c0_67, %c0_68] : memref<1x3x4x1x16xf32, #tpu.memory_space<vmem>>, vector<1x1x1x1x16xf32>
      %92 = vector.shape_cast %91 : vector<1x1x1x1x16xf32> to vector<1x16xf32>
      %93 = vector.broadcast %92 : vector<1x16xf32> to vector<16x16xf32>
      %94 = arith.addf %90, %93 : vector<16x16xf32>
      %95 = vector.shape_cast %80 : vector<16x16xf32> to vector<1x16x16xf32>
      %96 = arith.truncf %95 : vector<1x16x16xf32> to vector<1x16x16xbf16>
      %97 = vector.shape_cast %87 : vector<16x16xf32> to vector<1x16x16xf32>
      %98 = arith.truncf %97 : vector<1x16x16xf32> to vector<1x16x16xbf16>
      %99 = vector.shape_cast %94 : vector<16x16xf32> to vector<1x16x16xf32>
      %100 = arith.truncf %99 : vector<1x16x16xf32> to vector<1x16x16xbf16>
      %cst_69 = arith.constant dense<0.000000e+00> : vector<1x16x16xf32>
      %101 = tpu.matmul %96, %98, %cst_69 {dimension_numbers = #tpu.dot_dimension_numbers<[2], [2], [1], [1], [0, 0, 0, 1, 1, 1], [0], [0]>} : vector<1x16x16xbf16>, vector<1x16x16xbf16>, vector<1x16x16xf32> -> vector<1x16x16xf32>
      %cst_70 = arith.constant dense<0xFF800000> : vector<1x16xf32>
      %102 = vector.multi_reduction <maximumf>, %101, %cst_70 [2] : vector<1x16x16xf32> to vector<1x16xf32>
      %103 = vector.shape_cast %102 : vector<1x16xf32> to vector<1x16x1xf32>
      %104 = vector.broadcast %103 : vector<1x16x1xf32> to vector<1x16x16xf32>
      %105 = arith.subf %101, %104 : vector<1x16x16xf32>
      %106 = math.exp %105 : vector<1x16x16xf32>
      %cst_71 = arith.constant dense<0.000000e+00> : vector<1x16xf32>
      %107 = vector.multi_reduction <add>, %106, %cst_71 [2] : vector<1x16x16xf32> to vector<1x16xf32>
      %108 = vector.shape_cast %107 : vector<1x16xf32> to vector<1x16x1xf32>
      %109 = tpu.reciprocal %108 {approx = true} : vector<1x16x1xf32> -> vector<1x16x1xf32>
      %110 = vector.broadcast %109 : vector<1x16x1xf32> to vector<1x16x16xf32>
      %111 = arith.mulf %106, %110 : vector<1x16x16xf32>
      %112 = arith.truncf %111 : vector<1x16x16xf32> to vector<1x16x16xbf16>
      %cst_72 = arith.constant dense<0.000000e+00> : vector<1x16x16xf32>
      %113 = tpu.matmul %112, %100, %cst_72 {dimension_numbers = #tpu.dot_dimension_numbers<[2], [1], [1], [2], [0, 0, 0, 1, 1, 2], [0], [0]>} : vector<1x16x16xbf16>, vector<1x16x16xbf16>, vector<1x16x16xf32> -> vector<1x16x16xf32>
      %114 = vector.shape_cast %113 : vector<1x16x16xf32> to vector<16x16xf32>
      %115 = arith.truncf %114 : vector<16x16xf32> to vector<16x16xbf16>
      %c0_73 = arith.constant 0 : index
      %c0_74 = arith.constant 0 : index
      %c0_75 = arith.constant 0 : index
      %c0_76 = arith.constant 0 : index
      %116 = vector.load %arg7[%c0_73, %c0_74, %c0_75, %c0_76] : memref<1x4x16x64xbf16, #tpu.memory_space<vmem>>, vector<1x1x16x64xbf16>
      %117 = vector.shape_cast %116 : vector<1x1x16x64xbf16> to vector<16x64xbf16>
      %cst_77 = arith.constant dense<0.000000e+00> : vector<16x64xf32>
      %118 = tpu.matmul %115, %117, %cst_77 {dimension_numbers = #tpu.dot_dimension_numbers<[1], [0], [0], [1], [0, 0, 1, 1], [], []>} : vector<16x16xbf16>, vector<16x64xbf16>, vector<16x64xf32> -> vector<16x64xf32>
      %119 = arith.addf %71, %118 : vector<16x64xf32>
      %c0_78 = arith.constant 0 : index
      %c0_79 = arith.constant 0 : index
      %c1_80 = arith.constant 1 : index
      %c0_81 = arith.constant 0 : index
      %c0_82 = arith.constant 0 : index
      %120 = vector.load %arg5[%c0_78, %c0_79, %c1_80, %c0_81, %c0_82] : memref<1x3x4x64x16xbf16, #tpu.memory_space<vmem>>, vector<1x1x1x64x16xbf16>
      %121 = vector.shape_cast %120 : vector<1x1x1x64x16xbf16> to vector<64x16xbf16>
      %cst_83 = arith.constant dense<0.000000e+00> : vector<16x16xf32>
      %122 = tpu.matmul %70, %121, %cst_83 {dimension_numbers = #tpu.dot_dimension_numbers<[1], [0], [0], [1], [0, 0, 1, 1], [], []>} : vector<16x64xbf16>, vector<64x16xbf16>, vector<16x16xf32> -> vector<16x16xf32>
      %c0_84 = arith.constant 0 : index
      %c0_85 = arith.constant 0 : index
      %c1_86 = arith.constant 1 : index
      %c0_87 = arith.constant 0 : index
      %c0_88 = arith.constant 0 : index
      %123 = vector.load %arg6[%c0_84, %c0_85, %c1_86, %c0_87, %c0_88] : memref<1x3x4x1x16xf32, #tpu.memory_space<vmem>>, vector<1x1x1x1x16xf32>
      %124 = vector.shape_cast %123 : vector<1x1x1x1x16xf32> to vector<1x16xf32>
      %125 = vector.broadcast %124 : vector<1x16xf32> to vector<16x16xf32>
      %126 = arith.addf %122, %125 : vector<16x16xf32>
      %cst_89 = arith.constant 2.500000e-01 : f32
      %127 = vector.broadcast %cst_89 : f32 to vector<16x16xf32>
      %128 = arith.mulf %126, %127 : vector<16x16xf32>
      %c0_90 = arith.constant 0 : index
      %c1_91 = arith.constant 1 : index
      %c1_92 = arith.constant 1 : index
      %c0_93 = arith.constant 0 : index
      %c0_94 = arith.constant 0 : index
      %129 = vector.load %arg5[%c0_90, %c1_91, %c1_92, %c0_93, %c0_94] : memref<1x3x4x64x16xbf16, #tpu.memory_space<vmem>>, vector<1x1x1x64x16xbf16>
      %130 = vector.shape_cast %129 : vector<1x1x1x64x16xbf16> to vector<64x16xbf16>
      %cst_95 = arith.constant dense<0.000000e+00> : vector<16x16xf32>
      %131 = tpu.matmul %70, %130, %cst_95 {dimension_numbers = #tpu.dot_dimension_numbers<[1], [0], [0], [1], [0, 0, 1, 1], [], []>} : vector<16x64xbf16>, vector<64x16xbf16>, vector<16x16xf32> -> vector<16x16xf32>
      %c0_96 = arith.constant 0 : index
      %c1_97 = arith.constant 1 : index
      %c1_98 = arith.constant 1 : index
      %c0_99 = arith.constant 0 : index
      %c0_100 = arith.constant 0 : index
      %132 = vector.load %arg6[%c0_96, %c1_97, %c1_98, %c0_99, %c0_100] : memref<1x3x4x1x16xf32, #tpu.memory_space<vmem>>, vector<1x1x1x1x16xf32>
      %133 = vector.shape_cast %132 : vector<1x1x1x1x16xf32> to vector<1x16xf32>
      %134 = vector.broadcast %133 : vector<1x16xf32> to vector<16x16xf32>
      %135 = arith.addf %131, %134 : vector<16x16xf32>
      %c0_101 = arith.constant 0 : index
      %c2_102 = arith.constant 2 : index
      %c1_103 = arith.constant 1 : index
      %c0_104 = arith.constant 0 : index
      %c0_105 = arith.constant 0 : index
      %136 = vector.load %arg5[%c0_101, %c2_102, %c1_103, %c0_104, %c0_105] : memref<1x3x4x64x16xbf16, #tpu.memory_space<vmem>>, vector<1x1x1x64x16xbf16>
      %137 = vector.shape_cast %136 : vector<1x1x1x64x16xbf16> to vector<64x16xbf16>
      %cst_106 = arith.constant dense<0.000000e+00> : vector<16x16xf32>
      %138 = tpu.matmul %70, %137, %cst_106 {dimension_numbers = #tpu.dot_dimension_numbers<[1], [0], [0], [1], [0, 0, 1, 1], [], []>} : vector<16x64xbf16>, vector<64x16xbf16>, vector<16x16xf32> -> vector<16x16xf32>
      %c0_107 = arith.constant 0 : index
      %c2_108 = arith.constant 2 : index
      %c1_109 = arith.constant 1 : index
      %c0_110 = arith.constant 0 : index
      %c0_111 = arith.constant 0 : index
      %139 = vector.load %arg6[%c0_107, %c2_108, %c1_109, %c0_110, %c0_111] : memref<1x3x4x1x16xf32, #tpu.memory_space<vmem>>, vector<1x1x1x1x16xf32>
      %140 = vector.shape_cast %139 : vector<1x1x1x1x16xf32> to vector<1x16xf32>
      %141 = vector.broadcast %140 : vector<1x16xf32> to vector<16x16xf32>
      %142 = arith.addf %138, %141 : vector<16x16xf32>
      %143 = vector.shape_cast %128 : vector<16x16xf32> to vector<1x16x16xf32>
      %144 = arith.truncf %143 : vector<1x16x16xf32> to vector<1x16x16xbf16>
      %145 = vector.shape_cast %135 : vector<16x16xf32> to vector<1x16x16xf32>
      %146 = arith.truncf %145 : vector<1x16x16xf32> to vector<1x16x16xbf16>
      %147 = vector.shape_cast %142 : vector<16x16xf32> to vector<1x16x16xf32>
      %148 = arith.truncf %147 : vector<1x16x16xf32> to vector<1x16x16xbf16>
      %cst_112 = arith.constant dense<0.000000e+00> : vector<1x16x16xf32>
      %149 = tpu.matmul %144, %146, %cst_112 {dimension_numbers = #tpu.dot_dimension_numbers<[2], [2], [1], [1], [0, 0, 0, 1, 1, 1], [0], [0]>} : vector<1x16x16xbf16>, vector<1x16x16xbf16>, vector<1x16x16xf32> -> vector<1x16x16xf32>
      %cst_113 = arith.constant dense<0xFF800000> : vector<1x16xf32>
      %150 = vector.multi_reduction <maximumf>, %149, %cst_113 [2] : vector<1x16x16xf32> to vector<1x16xf32>
      %151 = vector.shape_cast %150 : vector<1x16xf32> to vector<1x16x1xf32>
      %152 = vector.broadcast %151 : vector<1x16x1xf32> to vector<1x16x16xf32>
      %153 = arith.subf %149, %152 : vector<1x16x16xf32>
      %154 = math.exp %153 : vector<1x16x16xf32>
      %cst_114 = arith.constant dense<0.000000e+00> : vector<1x16xf32>
      %155 = vector.multi_reduction <add>, %154, %cst_114 [2] : vector<1x16x16xf32> to vector<1x16xf32>
      %156 = vector.shape_cast %155 : vector<1x16xf32> to vector<1x16x1xf32>
      %157 = tpu.reciprocal %156 {approx = true} : vector<1x16x1xf32> -> vector<1x16x1xf32>
      %158 = vector.broadcast %157 : vector<1x16x1xf32> to vector<1x16x16xf32>
      %159 = arith.mulf %154, %158 : vector<1x16x16xf32>
      %160 = arith.truncf %159 : vector<1x16x16xf32> to vector<1x16x16xbf16>
      %cst_115 = arith.constant dense<0.000000e+00> : vector<1x16x16xf32>
      %161 = tpu.matmul %160, %148, %cst_115 {dimension_numbers = #tpu.dot_dimension_numbers<[2], [1], [1], [2], [0, 0, 0, 1, 1, 2], [0], [0]>} : vector<1x16x16xbf16>, vector<1x16x16xbf16>, vector<1x16x16xf32> -> vector<1x16x16xf32>
      %162 = vector.shape_cast %161 : vector<1x16x16xf32> to vector<16x16xf32>
      %163 = arith.truncf %162 : vector<16x16xf32> to vector<16x16xbf16>
      %c0_116 = arith.constant 0 : index
      %c1_117 = arith.constant 1 : index
      %c0_118 = arith.constant 0 : index
      %c0_119 = arith.constant 0 : index
      %164 = vector.load %arg7[%c0_116, %c1_117, %c0_118, %c0_119] : memref<1x4x16x64xbf16, #tpu.memory_space<vmem>>, vector<1x1x16x64xbf16>
      %165 = vector.shape_cast %164 : vector<1x1x16x64xbf16> to vector<16x64xbf16>
      %cst_120 = arith.constant dense<0.000000e+00> : vector<16x64xf32>
      %166 = tpu.matmul %163, %165, %cst_120 {dimension_numbers = #tpu.dot_dimension_numbers<[1], [0], [0], [1], [0, 0, 1, 1], [], []>} : vector<16x16xbf16>, vector<16x64xbf16>, vector<16x64xf32> -> vector<16x64xf32>
      %167 = arith.addf %119, %166 : vector<16x64xf32>
      %c0_121 = arith.constant 0 : index
      %c0_122 = arith.constant 0 : index
      %c2_123 = arith.constant 2 : index
      %c0_124 = arith.constant 0 : index
      %c0_125 = arith.constant 0 : index
      %168 = vector.load %arg5[%c0_121, %c0_122, %c2_123, %c0_124, %c0_125] : memref<1x3x4x64x16xbf16, #tpu.memory_space<vmem>>, vector<1x1x1x64x16xbf16>
      %169 = vector.shape_cast %168 : vector<1x1x1x64x16xbf16> to vector<64x16xbf16>
      %cst_126 = arith.constant dense<0.000000e+00> : vector<16x16xf32>
      %170 = tpu.matmul %70, %169, %cst_126 {dimension_numbers = #tpu.dot_dimension_numbers<[1], [0], [0], [1], [0, 0, 1, 1], [], []>} : vector<16x64xbf16>, vector<64x16xbf16>, vector<16x16xf32> -> vector<16x16xf32>
      %c0_127 = arith.constant 0 : index
      %c0_128 = arith.constant 0 : index
      %c2_129 = arith.constant 2 : index
      %c0_130 = arith.constant 0 : index
      %c0_131 = arith.constant 0 : index
      %171 = vector.load %arg6[%c0_127, %c0_128, %c2_129, %c0_130, %c0_131] : memref<1x3x4x1x16xf32, #tpu.memory_space<vmem>>, vector<1x1x1x1x16xf32>
      %172 = vector.shape_cast %171 : vector<1x1x1x1x16xf32> to vector<1x16xf32>
      %173 = vector.broadcast %172 : vector<1x16xf32> to vector<16x16xf32>
      %174 = arith.addf %170, %173 : vector<16x16xf32>
      %cst_132 = arith.constant 2.500000e-01 : f32
      %175 = vector.broadcast %cst_132 : f32 to vector<16x16xf32>
      %176 = arith.mulf %174, %175 : vector<16x16xf32>
      %c0_133 = arith.constant 0 : index
      %c1_134 = arith.constant 1 : index
      %c2_135 = arith.constant 2 : index
      %c0_136 = arith.constant 0 : index
      %c0_137 = arith.constant 0 : index
      %177 = vector.load %arg5[%c0_133, %c1_134, %c2_135, %c0_136, %c0_137] : memref<1x3x4x64x16xbf16, #tpu.memory_space<vmem>>, vector<1x1x1x64x16xbf16>
      %178 = vector.shape_cast %177 : vector<1x1x1x64x16xbf16> to vector<64x16xbf16>
      %cst_138 = arith.constant dense<0.000000e+00> : vector<16x16xf32>
      %179 = tpu.matmul %70, %178, %cst_138 {dimension_numbers = #tpu.dot_dimension_numbers<[1], [0], [0], [1], [0, 0, 1, 1], [], []>} : vector<16x64xbf16>, vector<64x16xbf16>, vector<16x16xf32> -> vector<16x16xf32>
      %c0_139 = arith.constant 0 : index
      %c1_140 = arith.constant 1 : index
      %c2_141 = arith.constant 2 : index
      %c0_142 = arith.constant 0 : index
      %c0_143 = arith.constant 0 : index
      %180 = vector.load %arg6[%c0_139, %c1_140, %c2_141, %c0_142, %c0_143] : memref<1x3x4x1x16xf32, #tpu.memory_space<vmem>>, vector<1x1x1x1x16xf32>
      %181 = vector.shape_cast %180 : vector<1x1x1x1x16xf32> to vector<1x16xf32>
      %182 = vector.broadcast %181 : vector<1x16xf32> to vector<16x16xf32>
      %183 = arith.addf %179, %182 : vector<16x16xf32>
      %c0_144 = arith.constant 0 : index
      %c2_145 = arith.constant 2 : index
      %c2_146 = arith.constant 2 : index
      %c0_147 = arith.constant 0 : index
      %c0_148 = arith.constant 0 : index
      %184 = vector.load %arg5[%c0_144, %c2_145, %c2_146, %c0_147, %c0_148] : memref<1x3x4x64x16xbf16, #tpu.memory_space<vmem>>, vector<1x1x1x64x16xbf16>
      %185 = vector.shape_cast %184 : vector<1x1x1x64x16xbf16> to vector<64x16xbf16>
      %cst_149 = arith.constant dense<0.000000e+00> : vector<16x16xf32>
      %186 = tpu.matmul %70, %185, %cst_149 {dimension_numbers = #tpu.dot_dimension_numbers<[1], [0], [0], [1], [0, 0, 1, 1], [], []>} : vector<16x64xbf16>, vector<64x16xbf16>, vector<16x16xf32> -> vector<16x16xf32>
      %c0_150 = arith.constant 0 : index
      %c2_151 = arith.constant 2 : index
      %c2_152 = arith.constant 2 : index
      %c0_153 = arith.constant 0 : index
      %c0_154 = arith.constant 0 : index
      %187 = vector.load %arg6[%c0_150, %c2_151, %c2_152, %c0_153, %c0_154] : memref<1x3x4x1x16xf32, #tpu.memory_space<vmem>>, vector<1x1x1x1x16xf32>
      %188 = vector.shape_cast %187 : vector<1x1x1x1x16xf32> to vector<1x16xf32>
      %189 = vector.broadcast %188 : vector<1x16xf32> to vector<16x16xf32>
      %190 = arith.addf %186, %189 : vector<16x16xf32>
      %191 = vector.shape_cast %176 : vector<16x16xf32> to vector<1x16x16xf32>
      %192 = arith.truncf %191 : vector<1x16x16xf32> to vector<1x16x16xbf16>
      %193 = vector.shape_cast %183 : vector<16x16xf32> to vector<1x16x16xf32>
      %194 = arith.truncf %193 : vector<1x16x16xf32> to vector<1x16x16xbf16>
      %195 = vector.shape_cast %190 : vector<16x16xf32> to vector<1x16x16xf32>
      %196 = arith.truncf %195 : vector<1x16x16xf32> to vector<1x16x16xbf16>
      %cst_155 = arith.constant dense<0.000000e+00> : vector<1x16x16xf32>
      %197 = tpu.matmul %192, %194, %cst_155 {dimension_numbers = #tpu.dot_dimension_numbers<[2], [2], [1], [1], [0, 0, 0, 1, 1, 1], [0], [0]>} : vector<1x16x16xbf16>, vector<1x16x16xbf16>, vector<1x16x16xf32> -> vector<1x16x16xf32>
      %cst_156 = arith.constant dense<0xFF800000> : vector<1x16xf32>
      %198 = vector.multi_reduction <maximumf>, %197, %cst_156 [2] : vector<1x16x16xf32> to vector<1x16xf32>
      %199 = vector.shape_cast %198 : vector<1x16xf32> to vector<1x16x1xf32>
      %200 = vector.broadcast %199 : vector<1x16x1xf32> to vector<1x16x16xf32>
      %201 = arith.subf %197, %200 : vector<1x16x16xf32>
      %202 = math.exp %201 : vector<1x16x16xf32>
      %cst_157 = arith.constant dense<0.000000e+00> : vector<1x16xf32>
      %203 = vector.multi_reduction <add>, %202, %cst_157 [2] : vector<1x16x16xf32> to vector<1x16xf32>
      %204 = vector.shape_cast %203 : vector<1x16xf32> to vector<1x16x1xf32>
      %205 = tpu.reciprocal %204 {approx = true} : vector<1x16x1xf32> -> vector<1x16x1xf32>
      %206 = vector.broadcast %205 : vector<1x16x1xf32> to vector<1x16x16xf32>
      %207 = arith.mulf %202, %206 : vector<1x16x16xf32>
      %208 = arith.truncf %207 : vector<1x16x16xf32> to vector<1x16x16xbf16>
      %cst_158 = arith.constant dense<0.000000e+00> : vector<1x16x16xf32>
      %209 = tpu.matmul %208, %196, %cst_158 {dimension_numbers = #tpu.dot_dimension_numbers<[2], [1], [1], [2], [0, 0, 0, 1, 1, 2], [0], [0]>} : vector<1x16x16xbf16>, vector<1x16x16xbf16>, vector<1x16x16xf32> -> vector<1x16x16xf32>
      %210 = vector.shape_cast %209 : vector<1x16x16xf32> to vector<16x16xf32>
      %211 = arith.truncf %210 : vector<16x16xf32> to vector<16x16xbf16>
      %c0_159 = arith.constant 0 : index
      %c2_160 = arith.constant 2 : index
      %c0_161 = arith.constant 0 : index
      %c0_162 = arith.constant 0 : index
      %212 = vector.load %arg7[%c0_159, %c2_160, %c0_161, %c0_162] : memref<1x4x16x64xbf16, #tpu.memory_space<vmem>>, vector<1x1x16x64xbf16>
      %213 = vector.shape_cast %212 : vector<1x1x16x64xbf16> to vector<16x64xbf16>
      %cst_163 = arith.constant dense<0.000000e+00> : vector<16x64xf32>
      %214 = tpu.matmul %211, %213, %cst_163 {dimension_numbers = #tpu.dot_dimension_numbers<[1], [0], [0], [1], [0, 0, 1, 1], [], []>} : vector<16x16xbf16>, vector<16x64xbf16>, vector<16x64xf32> -> vector<16x64xf32>
      %215 = arith.addf %167, %214 : vector<16x64xf32>
      %c0_164 = arith.constant 0 : index
      %c0_165 = arith.constant 0 : index
      %c3 = arith.constant 3 : index
      %c0_166 = arith.constant 0 : index
      %c0_167 = arith.constant 0 : index
      %216 = vector.load %arg5[%c0_164, %c0_165, %c3, %c0_166, %c0_167] : memref<1x3x4x64x16xbf16, #tpu.memory_space<vmem>>, vector<1x1x1x64x16xbf16>
      %217 = vector.shape_cast %216 : vector<1x1x1x64x16xbf16> to vector<64x16xbf16>
      %cst_168 = arith.constant dense<0.000000e+00> : vector<16x16xf32>
      %218 = tpu.matmul %70, %217, %cst_168 {dimension_numbers = #tpu.dot_dimension_numbers<[1], [0], [0], [1], [0, 0, 1, 1], [], []>} : vector<16x64xbf16>, vector<64x16xbf16>, vector<16x16xf32> -> vector<16x16xf32>
      %c0_169 = arith.constant 0 : index
      %c0_170 = arith.constant 0 : index
      %c3_171 = arith.constant 3 : index
      %c0_172 = arith.constant 0 : index
      %c0_173 = arith.constant 0 : index
      %219 = vector.load %arg6[%c0_169, %c0_170, %c3_171, %c0_172, %c0_173] : memref<1x3x4x1x16xf32, #tpu.memory_space<vmem>>, vector<1x1x1x1x16xf32>
      %220 = vector.shape_cast %219 : vector<1x1x1x1x16xf32> to vector<1x16xf32>
      %221 = vector.broadcast %220 : vector<1x16xf32> to vector<16x16xf32>
      %222 = arith.addf %218, %221 : vector<16x16xf32>
      %cst_174 = arith.constant 2.500000e-01 : f32
      %223 = vector.broadcast %cst_174 : f32 to vector<16x16xf32>
      %224 = arith.mulf %222, %223 : vector<16x16xf32>
      %c0_175 = arith.constant 0 : index
      %c1_176 = arith.constant 1 : index
      %c3_177 = arith.constant 3 : index
      %c0_178 = arith.constant 0 : index
      %c0_179 = arith.constant 0 : index
      %225 = vector.load %arg5[%c0_175, %c1_176, %c3_177, %c0_178, %c0_179] : memref<1x3x4x64x16xbf16, #tpu.memory_space<vmem>>, vector<1x1x1x64x16xbf16>
      %226 = vector.shape_cast %225 : vector<1x1x1x64x16xbf16> to vector<64x16xbf16>
      %cst_180 = arith.constant dense<0.000000e+00> : vector<16x16xf32>
      %227 = tpu.matmul %70, %226, %cst_180 {dimension_numbers = #tpu.dot_dimension_numbers<[1], [0], [0], [1], [0, 0, 1, 1], [], []>} : vector<16x64xbf16>, vector<64x16xbf16>, vector<16x16xf32> -> vector<16x16xf32>
      %c0_181 = arith.constant 0 : index
      %c1_182 = arith.constant 1 : index
      %c3_183 = arith.constant 3 : index
      %c0_184 = arith.constant 0 : index
      %c0_185 = arith.constant 0 : index
      %228 = vector.load %arg6[%c0_181, %c1_182, %c3_183, %c0_184, %c0_185] : memref<1x3x4x1x16xf32, #tpu.memory_space<vmem>>, vector<1x1x1x1x16xf32>
      %229 = vector.shape_cast %228 : vector<1x1x1x1x16xf32> to vector<1x16xf32>
      %230 = vector.broadcast %229 : vector<1x16xf32> to vector<16x16xf32>
      %231 = arith.addf %227, %230 : vector<16x16xf32>
      %c0_186 = arith.constant 0 : index
      %c2_187 = arith.constant 2 : index
      %c3_188 = arith.constant 3 : index
      %c0_189 = arith.constant 0 : index
      %c0_190 = arith.constant 0 : index
      %232 = vector.load %arg5[%c0_186, %c2_187, %c3_188, %c0_189, %c0_190] : memref<1x3x4x64x16xbf16, #tpu.memory_space<vmem>>, vector<1x1x1x64x16xbf16>
      %233 = vector.shape_cast %232 : vector<1x1x1x64x16xbf16> to vector<64x16xbf16>
      %cst_191 = arith.constant dense<0.000000e+00> : vector<16x16xf32>
      %234 = tpu.matmul %70, %233, %cst_191 {dimension_numbers = #tpu.dot_dimension_numbers<[1], [0], [0], [1], [0, 0, 1, 1], [], []>} : vector<16x64xbf16>, vector<64x16xbf16>, vector<16x16xf32> -> vector<16x16xf32>
      %c0_192 = arith.constant 0 : index
      %c2_193 = arith.constant 2 : index
      %c3_194 = arith.constant 3 : index
      %c0_195 = arith.constant 0 : index
      %c0_196 = arith.constant 0 : index
      %235 = vector.load %arg6[%c0_192, %c2_193, %c3_194, %c0_195, %c0_196] : memref<1x3x4x1x16xf32, #tpu.memory_space<vmem>>, vector<1x1x1x1x16xf32>
      %236 = vector.shape_cast %235 : vector<1x1x1x1x16xf32> to vector<1x16xf32>
      %237 = vector.broadcast %236 : vector<1x16xf32> to vector<16x16xf32>
      %238 = arith.addf %234, %237 : vector<16x16xf32>
      %239 = vector.shape_cast %224 : vector<16x16xf32> to vector<1x16x16xf32>
      %240 = arith.truncf %239 : vector<1x16x16xf32> to vector<1x16x16xbf16>
      %241 = vector.shape_cast %231 : vector<16x16xf32> to vector<1x16x16xf32>
      %242 = arith.truncf %241 : vector<1x16x16xf32> to vector<1x16x16xbf16>
      %243 = vector.shape_cast %238 : vector<16x16xf32> to vector<1x16x16xf32>
      %244 = arith.truncf %243 : vector<1x16x16xf32> to vector<1x16x16xbf16>
      %cst_197 = arith.constant dense<0.000000e+00> : vector<1x16x16xf32>
      %245 = tpu.matmul %240, %242, %cst_197 {dimension_numbers = #tpu.dot_dimension_numbers<[2], [2], [1], [1], [0, 0, 0, 1, 1, 1], [0], [0]>} : vector<1x16x16xbf16>, vector<1x16x16xbf16>, vector<1x16x16xf32> -> vector<1x16x16xf32>
      %cst_198 = arith.constant dense<0xFF800000> : vector<1x16xf32>
      %246 = vector.multi_reduction <maximumf>, %245, %cst_198 [2] : vector<1x16x16xf32> to vector<1x16xf32>
      %247 = vector.shape_cast %246 : vector<1x16xf32> to vector<1x16x1xf32>
      %248 = vector.broadcast %247 : vector<1x16x1xf32> to vector<1x16x16xf32>
      %249 = arith.subf %245, %248 : vector<1x16x16xf32>
      %250 = math.exp %249 : vector<1x16x16xf32>
      %cst_199 = arith.constant dense<0.000000e+00> : vector<1x16xf32>
      %251 = vector.multi_reduction <add>, %250, %cst_199 [2] : vector<1x16x16xf32> to vector<1x16xf32>
      %252 = vector.shape_cast %251 : vector<1x16xf32> to vector<1x16x1xf32>
      %253 = tpu.reciprocal %252 {approx = true} : vector<1x16x1xf32> -> vector<1x16x1xf32>
      %254 = vector.broadcast %253 : vector<1x16x1xf32> to vector<1x16x16xf32>
      %255 = arith.mulf %250, %254 : vector<1x16x16xf32>
      %256 = arith.truncf %255 : vector<1x16x16xf32> to vector<1x16x16xbf16>
      %cst_200 = arith.constant dense<0.000000e+00> : vector<1x16x16xf32>
      %257 = tpu.matmul %256, %244, %cst_200 {dimension_numbers = #tpu.dot_dimension_numbers<[2], [1], [1], [2], [0, 0, 0, 1, 1, 2], [0], [0]>} : vector<1x16x16xbf16>, vector<1x16x16xbf16>, vector<1x16x16xf32> -> vector<1x16x16xf32>
      %258 = vector.shape_cast %257 : vector<1x16x16xf32> to vector<16x16xf32>
      %259 = arith.truncf %258 : vector<16x16xf32> to vector<16x16xbf16>
      %c0_201 = arith.constant 0 : index
      %c3_202 = arith.constant 3 : index
      %c0_203 = arith.constant 0 : index
      %c0_204 = arith.constant 0 : index
      %260 = vector.load %arg7[%c0_201, %c3_202, %c0_203, %c0_204] : memref<1x4x16x64xbf16, #tpu.memory_space<vmem>>, vector<1x1x16x64xbf16>
      %261 = vector.shape_cast %260 : vector<1x1x16x64xbf16> to vector<16x64xbf16>
      %cst_205 = arith.constant dense<0.000000e+00> : vector<16x64xf32>
      %262 = tpu.matmul %259, %261, %cst_205 {dimension_numbers = #tpu.dot_dimension_numbers<[1], [0], [0], [1], [0, 0, 1, 1], [], []>} : vector<16x16xbf16>, vector<16x64xbf16>, vector<16x64xf32> -> vector<16x64xf32>
      %263 = arith.addf %215, %262 : vector<16x64xf32>
      %c0_206 = arith.constant 0 : index
      %c0_207 = arith.constant 0 : index
      %c0_208 = arith.constant 0 : index
      %264 = vector.load %arg8[%c0_206, %c0_207, %c0_208] : memref<1x1x64xf32, #tpu.memory_space<vmem>>, vector<1x1x64xf32>
      %265 = vector.shape_cast %264 : vector<1x1x64xf32> to vector<1x64xf32>
      %266 = vector.broadcast %265 : vector<1x64xf32> to vector<16x64xf32>
      %267 = arith.addf %263, %266 : vector<16x64xf32>
      %268 = vector.shape_cast %267 : vector<16x64xf32> to vector<1x16x64xf32>
      %269 = vector.broadcast %42 : vector<1x1x64xf32> to vector<1x16x64xf32>
      %270 = arith.mulf %269, %268 : vector<1x16x64xf32>
      %271 = arith.addf %37, %270 : vector<1x16x64xf32>
      %c0_209 = arith.constant 0 : index
      %c0_210 = arith.constant 0 : index
      %c0_211 = arith.constant 0 : index
      %272 = vector.load %arg14[%c0_209, %c0_210, %c0_211] : memref<1x16x64xf32, #tpu.memory_space<vmem>>, vector<1x16x64xf32>
      tpu.vector_store %arg14[%c0_209, %c0_210, %c0_211], %271 {strides = array<i32>} : memref<1x16x64xf32, #tpu.memory_space<vmem>>, vector<1x16x64xf32>,
      %cst_212 = arith.constant dense<0.000000e+00> : vector<1x16xf32>
      %273 = vector.multi_reduction <add>, %271, %cst_212 [2] : vector<1x16x64xf32> to vector<1x16xf32>
      %274 = vector.shape_cast %273 : vector<1x16xf32> to vector<1x16x1xf32>
      %cst_213 = arith.constant 6.400000e+01 : f32
      %275 = vector.broadcast %cst_213 : f32 to vector<1x16x1xf32>
      %276 = arith.divf %274, %275 : vector<1x16x1xf32>
      %277 = vector.broadcast %276 : vector<1x16x1xf32> to vector<1x16x64xf32>
      %278 = arith.subf %271, %277 : vector<1x16x64xf32>
      %279 = arith.mulf %278, %278 : vector<1x16x64xf32>
      %cst_214 = arith.constant dense<0.000000e+00> : vector<1x16xf32>
      %280 = vector.multi_reduction <add>, %279, %cst_214 [2] : vector<1x16x64xf32> to vector<1x16xf32>
      %281 = vector.shape_cast %280 : vector<1x16xf32> to vector<1x16x1xf32>
      %cst_215 = arith.constant 6.400000e+01 : f32
      %282 = vector.broadcast %cst_215 : f32 to vector<1x16x1xf32>
      %283 = arith.divf %281, %282 : vector<1x16x1xf32>
      %284 = vector.broadcast %276 : vector<1x16x1xf32> to vector<1x16x64xf32>
      %285 = arith.subf %271, %284 : vector<1x16x64xf32>
      %cst_216 = arith.constant 9.99999974E-6 : f32
      %286 = vector.broadcast %cst_216 : f32 to vector<1x16x1xf32>
      %287 = arith.addf %283, %286 : vector<1x16x1xf32>
      %288 = math.rsqrt %287 : vector<1x16x1xf32>
      %289 = vector.broadcast %288 : vector<1x16x1xf32> to vector<1x16x64xf32>
      %290 = arith.mulf %285, %289 : vector<1x16x64xf32>
      %cst_217 = arith.constant 1.000000e+00 : f32
      %291 = vector.broadcast %cst_217 : f32 to vector<1x1x64xf32>
      %292 = arith.addf %291, %43 : vector<1x1x64xf32>
      %293 = vector.broadcast %292 : vector<1x1x64xf32> to vector<1x16x64xf32>
      %294 = arith.mulf %290, %293 : vector<1x16x64xf32>
      %295 = vector.broadcast %44 : vector<1x1x64xf32> to vector<1x16x64xf32>
      %296 = arith.addf %294, %295 : vector<1x16x64xf32>
      %297 = arith.truncf %296 : vector<1x16x64xf32> to vector<1x16x64xbf16>
      %298 = vector.shape_cast %297 : vector<1x16x64xbf16> to vector<16x64xbf16>
      %c0_218 = arith.constant 0 : index
      %c0_219 = arith.constant 0 : index
      %299 = vector.load %arg15[%c0_218, %c0_219] : memref<16x64xbf16, #tpu.memory_space<vmem>>, vector<16x64xbf16>
      tpu.vector_store %arg15[%c0_218, %c0_219], %298 {strides = array<i32>} : memref<16x64xbf16, #tpu.memory_space<vmem>>, vector<16x64xbf16>,
      %cst_220 = arith.constant 0.000000e+00 : f32
      %300 = vector.broadcast %cst_220 : f32 to vector<16x64xf32>
      %c0_221 = arith.constant 0 : index
      %c0_222 = arith.constant 0 : index
      %301 = vector.load %arg16[%c0_221, %c0_222] : memref<16x64xf32, #tpu.memory_space<vmem>>, vector<16x64xf32>
      tpu.vector_store %arg16[%c0_221, %c0_222], %300 {strides = array<i32>} : memref<16x64xf32, #tpu.memory_space<vmem>>, vector<16x64xf32>,
    } else {
    }
    %c0 = arith.constant 0 : index
    %c0_1 = arith.constant 0 : index
    %3 = vector.load %arg15[%c0, %c0_1] : memref<16x64xbf16, #tpu.memory_space<vmem>>, vector<16x64xbf16>
    %c0_2 = arith.constant 0 : index
    %c0_3 = arith.constant 0 : index
    %c0_4 = arith.constant 0 : index
    %4 = vector.load %arg9[%c0_2, %c0_3, %c0_4] : memref<1x64x128xbf16, #tpu.memory_space<vmem>>, vector<1x64x128xbf16>
    %5 = vector.shape_cast %4 : vector<1x64x128xbf16> to vector<64x128xbf16>
    %cst = arith.constant dense<0.000000e+00> : vector<16x128xf32>
    %6 = tpu.matmul %3, %5, %cst {dimension_numbers = #tpu.dot_dimension_numbers<[1], [0], [0], [1], [0, 0, 1, 1], [], []>} : vector<16x64xbf16>, vector<64x128xbf16>, vector<16x128xf32> -> vector<16x128xf32>
    %c0_5 = arith.constant 0 : index
    %c0_6 = arith.constant 0 : index
    %c0_7 = arith.constant 0 : index
    %7 = vector.load %arg10[%c0_5, %c0_6, %c0_7] : memref<1x1x128xf32, #tpu.memory_space<vmem>>, vector<1x1x128xf32>
    %8 = vector.shape_cast %7 : vector<1x1x128xf32> to vector<1x128xf32>
    %9 = vector.broadcast %8 : vector<1x128xf32> to vector<16x128xf32>
    %10 = arith.addf %6, %9 : vector<16x128xf32>
    %cst_8 = arith.constant 5.000000e-01 : f32
    %11 = vector.broadcast %cst_8 : f32 to vector<16x128xf32>
    %12 = arith.mulf %11, %10 : vector<16x128xf32>
    %cst_9 = arith.constant 4.471500e-02 : f32
    %13 = vector.broadcast %cst_9 : f32 to vector<16x128xf32>
    %14 = arith.mulf %13, %10 : vector<16x128xf32>
    %15 = arith.mulf %14, %10 : vector<16x128xf32>
    %16 = arith.mulf %15, %10 : vector<16x128xf32>
    %17 = arith.addf %10, %16 : vector<16x128xf32>
    %cst_10 = arith.constant 0.797884583 : f32
    %18 = vector.broadcast %cst_10 : f32 to vector<16x128xf32>
    %19 = arith.mulf %18, %17 : vector<16x128xf32>
    %20 = math.tanh %19 : vector<16x128xf32>
    %cst_11 = arith.constant 1.000000e+00 : f32
    %21 = vector.broadcast %cst_11 : f32 to vector<16x128xf32>
    %22 = arith.addf %21, %20 : vector<16x128xf32>
    %23 = arith.mulf %12, %22 : vector<16x128xf32>
    %c0_12 = arith.constant 0 : index
    %c0_13 = arith.constant 0 : index
    %24 = vector.load %arg16[%c0_12, %c0_13] : memref<16x64xf32, #tpu.memory_space<vmem>>, vector<16x64xf32>
    %25 = arith.truncf %23 : vector<16x128xf32> to vector<16x128xbf16>
    %c0_14 = arith.constant 0 : index
    %c0_15 = arith.constant 0 : index
    %c0_16 = arith.constant 0 : index
    %26 = vector.load %arg11[%c0_14, %c0_15, %c0_16] : memref<1x128x64xbf16, #tpu.memory_space<vmem>>, vector<1x128x64xbf16>
    %27 = vector.shape_cast %26 : vector<1x128x64xbf16> to vector<128x64xbf16>
    %cst_17 = arith.constant dense<0.000000e+00> : vector<16x64xf32>
    %28 = tpu.matmul %25, %27, %cst_17 {dimension_numbers = #tpu.dot_dimension_numbers<[1], [0], [0], [1], [0, 0, 1, 1], [], []>} : vector<16x128xbf16>, vector<128x64xbf16>, vector<16x64xf32> -> vector<16x64xf32>
    %29 = arith.addf %24, %28 : vector<16x64xf32>
    %c0_18 = arith.constant 0 : index
    %c0_19 = arith.constant 0 : index
    %30 = vector.load %arg16[%c0_18, %c0_19] : memref<16x64xf32, #tpu.memory_space<vmem>>, vector<16x64xf32>
    tpu.vector_store %arg16[%c0_18, %c0_19], %29 {strides = array<i32>} : memref<16x64xf32, #tpu.memory_space<vmem>>, vector<16x64xf32>,
    %c1_i32 = arith.constant 1 : i32
    %31 = arith.cmpi eq, %arg2, %c1_i32 : i32
    %32 = arith.extui %31 : i1 to i32
    %c0_i32_20 = arith.constant 0 : i32
    %33 = arith.cmpi ne, %32, %c0_i32_20 : i32
    scf.if %33 {
      %c0_21 = arith.constant 0 : index
      %c0_22 = arith.constant 0 : index
      %c0_23 = arith.constant 0 : index
      %c0_24 = arith.constant 0 : index
      %34 = vector.load %arg4[%c0_21, %c0_22, %c0_23, %c0_24] : memref<1x1x6x64xf32, #tpu.memory_space<vmem>>, vector<1x1x6x64xf32>
      %35 = vector.shape_cast %34 : vector<1x1x6x64xf32> to vector<1x6x64xf32>
      %36 = vector.extract_strided_slice %35 {offsets = [0, 5, 0], sizes = [1, 1, 64], strides = [1, 1, 1]} : vector<1x6x64xf32> to vector<1x1x64xf32>
      %c0_25 = arith.constant 0 : index
      %c0_26 = arith.constant 0 : index
      %37 = vector.load %arg16[%c0_25, %c0_26] : memref<16x64xf32, #tpu.memory_space<vmem>>, vector<16x64xf32>
      %c0_27 = arith.constant 0 : index
      %c0_28 = arith.constant 0 : index
      %c0_29 = arith.constant 0 : index
      %38 = vector.load %arg12[%c0_27, %c0_28, %c0_29] : memref<1x1x64xf32, #tpu.memory_space<vmem>>, vector<1x1x64xf32>
      %39 = vector.shape_cast %38 : vector<1x1x64xf32> to vector<1x64xf32>
      %40 = vector.broadcast %39 : vector<1x64xf32> to vector<16x64xf32>
      %41 = arith.addf %37, %40 : vector<16x64xf32>
      %42 = vector.shape_cast %41 : vector<16x64xf32> to vector<1x16x64xf32>
      %c0_30 = arith.constant 0 : index
      %c0_31 = arith.constant 0 : index
      %c0_32 = arith.constant 0 : index
      %43 = vector.load %arg14[%c0_30, %c0_31, %c0_32] : memref<1x16x64xf32, #tpu.memory_space<vmem>>, vector<1x16x64xf32>
      %44 = vector.broadcast %36 : vector<1x1x64xf32> to vector<1x16x64xf32>
      %45 = arith.mulf %44, %42 : vector<1x16x64xf32>
      %46 = arith.addf %43, %45 : vector<1x16x64xf32>
      %c0_33 = arith.constant 0 : index
      %c0_34 = arith.constant 0 : index
      %c0_35 = arith.constant 0 : index
      %47 = vector.load %arg14[%c0_33, %c0_34, %c0_35] : memref<1x16x64xf32, #tpu.memory_space<vmem>>, vector<1x16x64xf32>
      tpu.vector_store %arg14[%c0_33, %c0_34, %c0_35], %46 {strides = array<i32>} : memref<1x16x64xf32, #tpu.memory_space<vmem>>, vector<1x16x64xf32>,
      %c2_i32 = arith.constant 2 : i32
      %48 = arith.cmpi eq, %arg1, %c2_i32 : i32
      %49 = arith.extui %48 : i1 to i32
      %c0_i32_36 = arith.constant 0 : i32
      %50 = arith.cmpi ne, %49, %c0_i32_36 : i32
      scf.if %50 {
        %c0_37 = arith.constant 0 : index
        %c0_38 = arith.constant 0 : index
        %c0_39 = arith.constant 0 : index
        %51 = vector.load %arg13[%c0_37, %c0_38, %c0_39] : memref<1x2x64xf32, #tpu.memory_space<vmem>>, vector<1x2x64xf32>
        %cst_40 = arith.constant dense<0.000000e+00> : vector<1x16xf32>
        %52 = vector.multi_reduction <add>, %46, %cst_40 [2] : vector<1x16x64xf32> to vector<1x16xf32>
        %53 = vector.shape_cast %52 : vector<1x16xf32> to vector<1x16x1xf32>
        %cst_41 = arith.constant 6.400000e+01 : f32
        %54 = vector.broadcast %cst_41 : f32 to vector<1x16x1xf32>
        %55 = arith.divf %53, %54 : vector<1x16x1xf32>
        %56 = vector.broadcast %55 : vector<1x16x1xf32> to vector<1x16x64xf32>
        %57 = arith.subf %46, %56 : vector<1x16x64xf32>
        %58 = arith.mulf %57, %57 : vector<1x16x64xf32>
        %cst_42 = arith.constant dense<0.000000e+00> : vector<1x16xf32>
        %59 = vector.multi_reduction <add>, %58, %cst_42 [2] : vector<1x16x64xf32> to vector<1x16xf32>
        %60 = vector.shape_cast %59 : vector<1x16xf32> to vector<1x16x1xf32>
        %cst_43 = arith.constant 6.400000e+01 : f32
        %61 = vector.broadcast %cst_43 : f32 to vector<1x16x1xf32>
        %62 = arith.divf %60, %61 : vector<1x16x1xf32>
        %63 = vector.broadcast %55 : vector<1x16x1xf32> to vector<1x16x64xf32>
        %64 = arith.subf %46, %63 : vector<1x16x64xf32>
        %cst_44 = arith.constant 9.99999974E-6 : f32
        %65 = vector.broadcast %cst_44 : f32 to vector<1x16x1xf32>
        %66 = arith.addf %62, %65 : vector<1x16x1xf32>
        %67 = math.rsqrt %66 : vector<1x16x1xf32>
        %68 = vector.broadcast %67 : vector<1x16x1xf32> to vector<1x16x64xf32>
        %69 = arith.mulf %64, %68 : vector<1x16x64xf32>
        %70 = vector.extract_strided_slice %51 {offsets = [0, 0, 0], sizes = [1, 1, 64], strides = [1, 1, 1]} : vector<1x2x64xf32> to vector<1x1x64xf32>
        %71 = vector.extract_strided_slice %51 {offsets = [0, 1, 0], sizes = [1, 1, 64], strides = [1, 1, 1]} : vector<1x2x64xf32> to vector<1x1x64xf32>
        %cst_45 = arith.constant 1.000000e+00 : f32
        %72 = vector.broadcast %cst_45 : f32 to vector<1x1x64xf32>
        %73 = arith.addf %72, %70 : vector<1x1x64xf32>
        %74 = vector.broadcast %73 : vector<1x1x64xf32> to vector<1x16x64xf32>
        %75 = arith.mulf %69, %74 : vector<1x16x64xf32>
        %76 = vector.broadcast %71 : vector<1x1x64xf32> to vector<1x16x64xf32>
        %77 = arith.addf %75, %76 : vector<1x16x64xf32>
        %c0_46 = arith.constant 0 : index
        %c0_47 = arith.constant 0 : index
        %c0_48 = arith.constant 0 : index
        %78 = vector.load %arg14[%c0_46, %c0_47, %c0_48] : memref<1x16x64xf32, #tpu.memory_space<vmem>>, vector<1x16x64xf32>
        tpu.vector_store %arg14[%c0_46, %c0_47, %c0_48], %77 {strides = array<i32>} : memref<1x16x64xf32, #tpu.memory_space<vmem>>, vector<1x16x64xf32>,
      } else {
      }
    } else {
    }
    return
  }
  func.func @transform_0(%arg0: i32, %arg1: i32, %arg2: i32) -> (i32, i32, i32) {
    %c0_i32 = arith.constant 0 : i32
    %c0_i32_0 = arith.constant 0 : i32
    %c0_i32_1 = arith.constant 0 : i32
    return %arg0, %c0_i32, %c0_i32_0 : i32, i32, i32
  }
  func.func @transform_1(%arg0: i32, %arg1: i32, %arg2: i32) -> (i32, i32, i32, i32) {
    %c0_i32 = arith.constant 0 : i32
    %c0_i32_0 = arith.constant 0 : i32
    %c0_i32_1 = arith.constant 0 : i32
    return %arg1, %arg0, %c0_i32, %c0_i32_0 : i32, i32, i32, i32
  }
  func.func @transform_2(%arg0: i32, %arg1: i32, %arg2: i32) -> (i32, i32, i32, i32, i32) {
    %c0_i32 = arith.constant 0 : i32
    %c0_i32_0 = arith.constant 0 : i32
    %c0_i32_1 = arith.constant 0 : i32
    %c0_i32_2 = arith.constant 0 : i32
    %c0_i32_3 = arith.constant 0 : i32
    return %arg1, %c0_i32, %c0_i32_0, %c0_i32_1, %c0_i32_2 : i32, i32, i32, i32, i32
  }
  func.func @transform_3(%arg0: i32, %arg1: i32, %arg2: i32) -> (i32, i32, i32, i32, i32) {
    %c0_i32 = arith.constant 0 : i32
    %c0_i32_0 = arith.constant 0 : i32
    %c0_i32_1 = arith.constant 0 : i32
    %c0_i32_2 = arith.constant 0 : i32
    %c0_i32_3 = arith.constant 0 : i32
    return %arg1, %c0_i32, %c0_i32_0, %c0_i32_1, %c0_i32_2 : i32, i32, i32, i32, i32
  }
  func.func @transform_4(%arg0: i32, %arg1: i32, %arg2: i32) -> (i32, i32, i32, i32) {
    %c0_i32 = arith.constant 0 : i32
    %c0_i32_0 = arith.constant 0 : i32
    %c0_i32_1 = arith.constant 0 : i32
    %c0_i32_2 = arith.constant 0 : i32
    return %arg1, %c0_i32, %c0_i32_0, %c0_i32_1 : i32, i32, i32, i32
  }
  func.func @transform_5(%arg0: i32, %arg1: i32, %arg2: i32) -> (i32, i32, i32) {
    %c0_i32 = arith.constant 0 : i32
    %c0_i32_0 = arith.constant 0 : i32
    %c0_i32_1 = arith.constant 0 : i32
    return %arg1, %c0_i32, %c0_i32_0 : i32, i32, i32
  }
  func.func @transform_6(%arg0: i32, %arg1: i32, %arg2: i32) -> (i32, i32, i32) {
    %c0_i32 = arith.constant 0 : i32
    %c0_i32_0 = arith.constant 0 : i32
    return %arg1, %c0_i32, %arg2 : i32, i32, i32
  }
  func.func @transform_7(%arg0: i32, %arg1: i32, %arg2: i32) -> (i32, i32, i32) {
    %c0_i32 = arith.constant 0 : i32
    %c0_i32_0 = arith.constant 0 : i32
    return %arg1, %c0_i32, %arg2 : i32, i32, i32
  }
  func.func @transform_8(%arg0: i32, %arg1: i32, %arg2: i32) -> (i32, i32, i32) {
    %c0_i32 = arith.constant 0 : i32
    %c0_i32_0 = arith.constant 0 : i32
    return %arg1, %arg2, %c0_i32 : i32, i32, i32
  }
  func.func @transform_9(%arg0: i32, %arg1: i32, %arg2: i32) -> (i32, i32, i32) {
    %c0_i32 = arith.constant 0 : i32
    %c0_i32_0 = arith.constant 0 : i32
    %c0_i32_1 = arith.constant 0 : i32
    return %arg1, %c0_i32, %c0_i32_0 : i32, i32, i32
  }
  func.func @transform_10(%arg0: i32, %arg1: i32, %arg2: i32) -> (i32, i32, i32) {
    %c0_i32 = arith.constant 0 : i32
    %c0_i32_0 = arith.constant 0 : i32
    %c0_i32_1 = arith.constant 0 : i32
    return %arg0, %c0_i32, %c0_i32_0 : i32, i32, i32
  }
  func.func @transform_11(%arg0: i32, %arg1: i32, %arg2: i32) -> (i32, i32, i32) {
    %c0_i32 = arith.constant 0 : i32
    %c0_i32_0 = arith.constant 0 : i32
    %c0_i32_1 = arith.constant 0 : i32
    return %arg0, %c0_i32, %c0_i32_0 : i32, i32, i32
  }
}

</mosaic_0001>

<llo_original>
// kernel: tpu_custom_call.1
$region0: #{tpu_custom_call.1}
  #allocation0 [shape = 'u32[]', space=smem, size = 0x4, offset = 0x4, fixed_abs, tag = 'smem constant byte address 0x4 - core index']
  #allocation1 [shape = 'u32[72,128]{1,0:T(1,128)}', space=vmem, size = 0x9000, scoped, tag = 'internal scratch']
  #allocation2 [shape = 'bf16[16,64]{1,0:T(8,128)(2,1)}', space=vmem, size = 0x1000, scoped, tag = 'scratch operand']
  #allocation3 [shape = 'f32[16,64]{1,0:T(8,128)}', space=vmem, size = 0x2000, scoped, tag = 'scratch operand']
  %s0 = inlined_call_operand.vmem [shape: f32[2,16,64], index: 0, kind: input, shape index: {}]
  %s1 = inlined_call_operand.vmem [shape: f32[3,2,6,64], index: 1, kind: input, shape index: {}]
  %s2 = inlined_call_operand.vmem [shape: bf16[3,3,4,64,16], index: 2, kind: input, shape index: {}]
  %s3 = inlined_call_operand.vmem [shape: f32[3,3,4,1,16], index: 3, kind: input, shape index: {}]
  %s4 = inlined_call_operand.vmem [shape: bf16[3,4,16,64], index: 4, kind: input, shape index: {}]
  %s5 = inlined_call_operand.vmem [shape: f32[3,1,64], index: 5, kind: input, shape index: {}]
  %s6 = inlined_call_operand.vmem [shape: bf16[3,64,256], index: 6, kind: input, shape index: {}]
  %s7 = inlined_call_operand.vmem [shape: f32[3,1,256], index: 7, kind: input, shape index: {}]
  %s8 = inlined_call_operand.vmem [shape: bf16[3,256,64], index: 8, kind: input, shape index: {}]
  %s9 = inlined_call_operand.vmem [shape: f32[3,1,64], index: 9, kind: input, shape index: {}]
  %s10 = inlined_call_operand.vmem [shape: f32[2,2,64], index: 10, kind: input, shape index: {}]
  %s11 = inlined_call_operand.hbm [shape: f32[2,16,64], index: 11, kind: output, shape index: {}]
  %s12 = sld [smem:[#allocation0]]
  $region134: #{tpu_custom_call.1} parent=0
    _
  %s14 = ssub.s32 1, %s12
  %s15 = scalar_select 0, %s14, %s12
  $region1: #{tpu_custom_call.1} parent=0
    #allocation4 [shape = 'u8[32768]{0}', space=vmem, size = 0x8000, scoped, tag = 'input window, operand 6']
    #allocation5 [shape = 'u8[16384]{0}', space=vmem, size = 0x4000, scoped, tag = 'output window, operand 0']
    #allocation6 [shape = 's32[2]{0}', space=sflag, size = 0x8, scoped, tag = 'scoped memory for tpu_custom_call.1']
    %16 = vsyncpa [#allocation6], 0
    %s17 = scalar_lea.sflag [#allocation6], 1
    %18 = vsyncpa %s17, 0
    loop: start=0, step=1, limit=14
    $region2: #{tpu_custom_call.1} parent=1 // loop_pre_header
      _
    $region3: #{tpu_custom_call.1} parent=1 // loop_header
      %s20 = sphi 0, %s24
      %p21 = scmp.ge.s32.totalorder %s20, 14
      %s27 = sphi 0, %s46
      %s28 = sphi 0, %s42
      %s29 = sphi 0, %s38
      %s30 = sphi 0, %s27
      %s31 = sphi 0, %s28
      %s32 = sphi 0, %s29
      %s33 = sphi 0, %s30
      %s34 = sphi 0, %s31
      %s35 = sphi 0, %s32
      %s49 = sphi 0, %s51
      %s52 = sphi 0, %s49
      %s53 = sphi 0, %s52
      %s69 = sphi 0, %s53
      %s77 = sphi 0, %s79
      %s80 = sphi 0, %s77
      %s81 = sphi 0, %s80
      %s97 = sphi 0, %s81
      %s103 = sphi 0, %s105
      %s106 = sphi 0, %s103
      %s107 = sphi 0, %s106
      %s123 = sphi 0, %s107
      %s129 = sphi 0, %s131
      %s132 = sphi 0, %s129
      %s133 = sphi 0, %s132
      %s149 = sphi 0, %s133
      %s155 = sphi 0, %s157
      %s158 = sphi 0, %s155
      %s159 = sphi 0, %s158
      %s175 = sphi 0, %s159
      %s181 = sphi 0, %s183
      %s184 = sphi 0, %s181
      %s185 = sphi 0, %s184
      %s201 = sphi 0, %s185
      %s209 = sphi 0, %s211
      %s212 = sphi 0, %s209
      %s213 = sphi 0, %s212
      %s229 = sphi 0, %s213
      %s237 = sphi 0, %s239
      %s240 = sphi 0, %s237
      %s241 = sphi 0, %s240
      %s257 = sphi 0, %s241
      %s265 = sphi 0, %s267
      %s268 = sphi 0, %s265
      %s269 = sphi 0, %s268
      %s285 = sphi 0, %s269
      %s291 = sphi 0, %s293
      %s294 = sphi 0, %s291
      %s295 = sphi 0, %s294
      %s311 = sphi 0, %s295
      %s317 = sphi 0, %s319
      %s320 = sphi 0, %s317
      %s321 = sphi 0, %s320
      %s337 = sphi 0, %s321
      %s343 = sphi 0, %s345
      %s346 = sphi 0, %s343
      %s347 = sphi 0, %s346
      %s363 = sphi 0, %s347
    $region4: #{tpu_custom_call.1} parent=1 // loop_header_branch
      %23 = sbr.rel (%p21) target = $region8
    $region5: #{tpu_custom_call.1} parent=1 // loop_body
      %s25 = ssub.s32 %s20, 1
      %s26 = ssub.s32 %s20, 2
      %s36 = sadd.s32 1, %s29
      %p37 = scmp.ge.s32.totalorder %s36, 2
      %s38 = scalar_select %p37, 0, %s36
      %s39 = sadd.s32 1, %s28
      %s40 = scalar_select %p37, %s39, %s28
      %p41 = scmp.ge.s32.totalorder %s40, 3
      %s42 = scalar_select %p41, 0, %s40
      %s43 = sadd.s32 1, %s27
      %s44 = scalar_select %p41, %s43, %s27
      %p45 = scmp.ge.s32.totalorder %s44, 2
      %s46 = scalar_select %p45, 0, %s44
      %s47 = ssub.s32 %s27, %s46
      %p48 = scmp.eq.s32.totalorder %s47, 0
      %s50 = sadd.s32 %s49, 1
      %s51 = scalar_select %p48, %s49, %s50
      %p54 = pneg %p48
      %p55 = scmp.eq.s32.totalorder %s20, 11
      %p56 = por %p54, %p55
      %p57 = scmp.ne.s32.totalorder %s49, %s52
      %p58 = scmp.eq.s32.totalorder %s20, 0
      %p59 = por %p57, %p58
      %p60 = scmp.ne.s32.totalorder %s49, %s52
      %p61 = scmp.eq.s32.totalorder %s25, 11
      %p62 = por %p60, %p61
      %p63 = scmp.ne.s32.totalorder %s52, %s53
      %p64 = scmp.eq.s32.totalorder %s25, 0
      %p65 = por %p63, %p64
      %p66 = scmp.ne.s32.totalorder %s52, %s53
      %p67 = scmp.eq.s32.totalorder %s26, 11
      %p68 = por %p66, %p67
      %p70 = scmp.ne.s32.totalorder %s53, %s69
      %p71 = scmp.eq.s32.totalorder %s26, 0
      %p72 = por %p70, %p71
      %s73 = ssub.s32 %s28, %s42
      %s74 = ssub.s32 %s27, %s46
      %s75 = sor.u32 %s73, %s74
      %p76 = scmp.eq.s32.totalorder %s75, 0
      %s78 = sadd.s32 %s77, 1
      %s79 = scalar_select %p76, %s77, %s78
      %p82 = pneg %p76
      %p83 = scmp.eq.s32.totalorder %s20, 11
      %p84 = por %p82, %p83
      %p85 = scmp.ne.s32.totalorder %s77, %s80
      %p86 = scmp.eq.s32.totalorder %s20, 0
      %p87 = por %p85, %p86
      %p88 = scmp.ne.s32.totalorder %s77, %s80
      %p89 = scmp.eq.s32.totalorder %s25, 11
      %p90 = por %p88, %p89
      %p91 = scmp.ne.s32.totalorder %s80, %s81
      %p92 = scmp.eq.s32.totalorder %s25, 0
      %p93 = por %p91, %p92
      %p94 = scmp.ne.s32.totalorder %s80, %s81
      %p95 = scmp.eq.s32.totalorder %s26, 11
      %p96 = por %p94, %p95
      %p98 = scmp.ne.s32.totalorder %s81, %s97
      %p99 = scmp.eq.s32.totalorder %s26, 0
      %p100 = por %p98, %p99
      %s101 = ssub.s32 %s28, %s42
      %p102 = scmp.eq.s32.totalorder %s101, 0
      %s104 = sadd.s32 %s103, 1
      %s105 = scalar_select %p102, %s103, %s104
      %p108 = pneg %p102
      %p109 = scmp.eq.s32.totalorder %s20, 11
      %p110 = por %p108, %p109
      %p111 = scmp.ne.s32.totalorder %s103, %s106
      %p112 = scmp.eq.s32.totalorder %s20, 0
      %p113 = por %p111, %p112
      %p114 = scmp.ne.s32.totalorder %s103, %s106
      %p115 = scmp.eq.s32.totalorder %s25, 11
      %p116 = por %p114, %p115
      %p117 = scmp.ne.s32.totalorder %s106, %s107
      %p118 = scmp.eq.s32.totalorder %s25, 0
      %p119 = por %p117, %p118
      %p120 = scmp.ne.s32.totalorder %s106, %s107
      %p121 = scmp.eq.s32.totalorder %s26, 11
      %p122 = por %p120, %p121
      %p124 = scmp.ne.s32.totalorder %s107, %s123
      %p125 = scmp.eq.s32.totalorder %s26, 0
      %p126 = por %p124, %p125
      %s127 = ssub.s32 %s28, %s42
      %p128 = scmp.eq.s32.totalorder %s127, 0
      %s130 = sadd.s32 %s129, 1
      %s131 = scalar_select %p128, %s129, %s130
      %p134 = pneg %p128
      %p135 = scmp.eq.s32.totalorder %s20, 11
      %p136 = por %p134, %p135
      %p137 = scmp.ne.s32.totalorder %s129, %s132
      %p138 = scmp.eq.s32.totalorder %s20, 0
      %p139 = por %p137, %p138
      %p140 = scmp.ne.s32.totalorder %s129, %s132
      %p141 = scmp.eq.s32.totalorder %s25, 11
      %p142 = por %p140, %p141
      %p143 = scmp.ne.s32.totalorder %s132, %s133
      %p144 = scmp.eq.s32.totalorder %s25, 0
      %p145 = por %p143, %p144
      %p146 = scmp.ne.s32.totalorder %s132, %s133
      %p147 = scmp.eq.s32.totalorder %s26, 11
      %p148 = por %p146, %p147
      %p150 = scmp.ne.s32.totalorder %s133, %s149
      %p151 = scmp.eq.s32.totalorder %s26, 0
      %p152 = por %p150, %p151
      %s153 = ssub.s32 %s28, %s42
      %p154 = scmp.eq.s32.totalorder %s153, 0
      %s156 = sadd.s32 %s155, 1
      %s157 = scalar_select %p154, %s155, %s156
      %p160 = pneg %p154
      %p161 = scmp.eq.s32.totalorder %s20, 11
      %p162 = por %p160, %p161
      %p163 = scmp.ne.s32.totalorder %s155, %s158
      %p164 = scmp.eq.s32.totalorder %s20, 0
      %p165 = por %p163, %p164
      %p166 = scmp.ne.s32.totalorder %s155, %s158
      %p167 = scmp.eq.s32.totalorder %s25, 11
      %p168 = por %p166, %p167
      %p169 = scmp.ne.s32.totalorder %s158, %s159
      %p170 = scmp.eq.s32.totalorder %s25, 0
      %p171 = por %p169, %p170
      %p172 = scmp.ne.s32.totalorder %s158, %s159
      %p173 = scmp.eq.s32.totalorder %s26, 11
      %p174 = por %p172, %p173
      %p176 = scmp.ne.s32.totalorder %s159, %s175
      %p177 = scmp.eq.s32.totalorder %s26, 0
      %p178 = por %p176, %p177
      %s179 = ssub.s32 %s28, %s42
      %p180 = scmp.eq.s32.totalorder %s179, 0
      %s182 = sadd.s32 %s181, 1
      %s183 = scalar_select %p180, %s181, %s182
      %p186 = pneg %p180
      %p187 = scmp.eq.s32.totalorder %s20, 11
      %p188 = por %p186, %p187
      %p189 = scmp.ne.s32.totalorder %s181, %s184
      %p190 = scmp.eq.s32.totalorder %s20, 0
      %p191 = por %p189, %p190
      %p192 = scmp.ne.s32.totalorder %s181, %s184
      %p193 = scmp.eq.s32.totalorder %s25, 11
      %p194 = por %p192, %p193
      %p195 = scmp.ne.s32.totalorder %s184, %s185
      %p196 = scmp.eq.s32.totalorder %s25, 0
      %p197 = por %p195, %p196
      %p198 = scmp.ne.s32.totalorder %s184, %s185
      %p199 = scmp.eq.s32.totalorder %s26, 11
      %p200 = por %p198, %p199
      %p202 = scmp.ne.s32.totalorder %s185, %s201
      %p203 = scmp.eq.s32.totalorder %s26, 0
      %p204 = por %p202, %p203
      %s205 = ssub.s32 %s28, %s42
      %s206 = ssub.s32 %s29, %s38
      %s207 = sor.u32 %s205, %s206
      %p208 = scmp.eq.s32.totalorder %s207, 0
      %s210 = sadd.s32 %s209, 1
      %s211 = scalar_select %p208, %s209, %s210
      %p214 = pneg %p208
      %p215 = scmp.eq.s32.totalorder %s20, 11
      %p216 = por %p214, %p215
      %p217 = scmp.ne.s32.totalorder %s209, %s212
      %p218 = scmp.eq.s32.totalorder %s20, 0
      %p219 = por %p217, %p218
      %p220 = scmp.ne.s32.totalorder %s209, %s212
      %p221 = scmp.eq.s32.totalorder %s25, 11
      %p222 = por %p220, %p221
      %p223 = scmp.ne.s32.totalorder %s212, %s213
      %p224 = scmp.eq.s32.totalorder %s25, 0
      %p225 = por %p223, %p224
      %p226 = scmp.ne.s32.totalorder %s212, %s213
      %p227 = scmp.eq.s32.totalorder %s26, 11
      %p228 = por %p226, %p227
      %p230 = scmp.ne.s32.totalorder %s213, %s229
      %p231 = scmp.eq.s32.totalorder %s26, 0
      %p232 = por %p230, %p231
      %s233 = ssub.s32 %s28, %s42
      %s234 = ssub.s32 %s29, %s38
      %s235 = sor.u32 %s233, %s234
      %p236 = scmp.eq.s32.totalorder %s235, 0
      %s238 = sadd.s32 %s237, 1
      %s239 = scalar_select %p236, %s237, %s238
      %p242 = pneg %p236
      %p243 = scmp.eq.s32.totalorder %s20, 11
      %p244 = por %p242, %p243
      %p245 = scmp.ne.s32.totalorder %s237, %s240
      %p246 = scmp.eq.s32.totalorder %s20, 0
      %p247 = por %p245, %p246
      %p248 = scmp.ne.s32.totalorder %s237, %s240
      %p249 = scmp.eq.s32.totalorder %s25, 11
      %p250 = por %p248, %p249
      %p251 = scmp.ne.s32.totalorder %s240, %s241
      %p252 = scmp.eq.s32.totalorder %s25, 0
      %p253 = por %p251, %p252
      %p254 = scmp.ne.s32.totalorder %s240, %s241
      %p255 = scmp.eq.s32.totalorder %s26, 11
      %p256 = por %p254, %p255
      %p258 = scmp.ne.s32.totalorder %s241, %s257
      %p259 = scmp.eq.s32.totalorder %s26, 0
      %p260 = por %p258, %p259
      %s261 = ssub.s32 %s28, %s42
      %s262 = ssub.s32 %s29, %s38
      %s263 = sor.u32 %s261, %s262
      %p264 = scmp.eq.s32.totalorder %s263, 0
      %s266 = sadd.s32 %s265, 1
      %s267 = scalar_select %p264, %s265, %s266
      %p270 = pneg %p264
      %p271 = scmp.eq.s32.totalorder %s20, 11
      %p272 = por %p270, %p271
      %p273 = scmp.ne.s32.totalorder %s265, %s268
      %p274 = scmp.eq.s32.totalorder %s20, 0
      %p275 = por %p273, %p274
      %p276 = scmp.ne.s32.totalorder %s265, %s268
      %p277 = scmp.eq.s32.totalorder %s25, 11
      %p278 = por %p276, %p277
      %p279 = scmp.ne.s32.totalorder %s268, %s269
      %p280 = scmp.eq.s32.totalorder %s25, 0
      %p281 = por %p279, %p280
      %p282 = scmp.ne.s32.totalorder %s268, %s269
      %p283 = scmp.eq.s32.totalorder %s26, 11
      %p284 = por %p282, %p283
      %p286 = scmp.ne.s32.totalorder %s269, %s285
      %p287 = scmp.eq.s32.totalorder %s26, 0
      %p288 = por %p286, %p287
      %s289 = ssub.s32 %s28, %s42
      %p290 = scmp.eq.s32.totalorder %s289, 0
      %s292 = sadd.s32 %s291, 1
      %s293 = scalar_select %p290, %s291, %s292
      %p296 = pneg %p290
      %p297 = scmp.eq.s32.totalorder %s20, 11
      %p298 = por %p296, %p297
      %p299 = scmp.ne.s32.totalorder %s291, %s294
      %p300 = scmp.eq.s32.totalorder %s20, 0
      %p301 = por %p299, %p300
      %p302 = scmp.ne.s32.totalorder %s291, %s294
      %p303 = scmp.eq.s32.totalorder %s25, 11
      %p304 = por %p302, %p303
      %p305 = scmp.ne.s32.totalorder %s294, %s295
      %p306 = scmp.eq.s32.totalorder %s25, 0
      %p307 = por %p305, %p306
      %p308 = scmp.ne.s32.totalorder %s294, %s295
      %p309 = scmp.eq.s32.totalorder %s26, 11
      %p310 = por %p308, %p309
      %p312 = scmp.ne.s32.totalorder %s295, %s311
      %p313 = scmp.eq.s32.totalorder %s26, 0
      %p314 = por %p312, %p313
      %s315 = ssub.s32 %s27, %s46
      %p316 = scmp.eq.s32.totalorder %s315, 0
      %s318 = sadd.s32 %s317, 1
      %s319 = scalar_select %p316, %s317, %s318
      %p322 = pneg %p316
      %p323 = scmp.eq.s32.totalorder %s20, 11
      %p324 = por %p322, %p323
      %p325 = scmp.ne.s32.totalorder %s317, %s320
      %p326 = scmp.eq.s32.totalorder %s20, 0
      %p327 = por %p325, %p326
      %p328 = scmp.ne.s32.totalorder %s317, %s320
      %p329 = scmp.eq.s32.totalorder %s25, 11
      %p330 = por %p328, %p329
      %p331 = scmp.ne.s32.totalorder %s320, %s321
      %p332 = scmp.eq.s32.totalorder %s25, 0
      %p333 = por %p331, %p332
      %p334 = scmp.ne.s32.totalorder %s320, %s321
      %p335 = scmp.eq.s32.totalorder %s26, 11
      %p336 = por %p334, %p335
      %p338 = scmp.ne.s32.totalorder %s321, %s337
      %p339 = scmp.eq.s32.totalorder %s26, 0
      %p340 = por %p338, %p339
      %s341 = ssub.s32 %s27, %s46
      %p342 = scmp.eq.s32.totalorder %s341, 0
      %s344 = sadd.s32 %s343, 1
      %s345 = scalar_select %p342, %s343, %s344
      %p348 = pneg %p342
      %p349 = scmp.eq.s32.totalorder %s20, 11
      %p350 = por %p348, %p349
      %p351 = scmp.ne.s32.totalorder %s343, %s346
      %p352 = scmp.eq.s32.totalorder %s20, 0
      %p353 = por %p351, %p352
      %p354 = scmp.ne.s32.totalorder %s343, %s346
      %p355 = scmp.eq.s32.totalorder %s25, 11
      %p356 = por %p354, %p355
      %p357 = scmp.ne.s32.totalorder %s346, %s347
      %p358 = scmp.eq.s32.totalorder %s25, 0
      %p359 = por %p357, %p358
      %p360 = scmp.ne.s32.totalorder %s346, %s347
      %p361 = scmp.eq.s32.totalorder %s26, 11
      %p362 = por %p360, %p361
      %p364 = scmp.ne.s32.totalorder %s347, %s363
      %p365 = scmp.eq.s32.totalorder %s26, 0
      %p366 = por %p364, %p365
      %p367 = scmp.le.s32.totalorder 1, %s20
      %p368 = scmp.lt.s32.totalorder %s20, 13
      %p369 = pnand %p367, %p368
      %p370 = pneg %p369
      // Predicated region
      $region9: #{tpu_custom_call.1} parent=5 // pred_check
        _
      $region10: #{tpu_custom_call.1} parent=5 // pred_check_branch
        %372 = sbr.rel (%p369) target = $region12
      $region11: #{tpu_custom_call.1} parent=5 // pred_region
        %s373 = ssub.s32 %s20, 1
      $region12: #{tpu_custom_call.1} parent=5 // pred_fallthru
        _
      %p374 = scmp.lt.s32.totalorder %s20, 12
      // Predicated region
      $region13: #{tpu_custom_call.1} parent=5 // pred_check
        %p375 = pneg %p374
      $region14: #{tpu_custom_call.1} parent=5 // pred_check_branch
        %377 = sbr.rel (%p375) target = $region16
      $region15: #{tpu_custom_call.1} parent=5 // pred_region
        // Predicated region
        $region17: #{tpu_custom_call.1} parent=15 // pred_check
          %p378 = pneg %p59
        $region18: #{tpu_custom_call.1} parent=15 // pred_check_branch
          %380 = sbr.rel (%p378) target = $region20
        $region19: #{tpu_custom_call.1} parent=15 // pred_region
          %p381 = scmp.lt.s32.totalorder %s27, 1
          %s382 = scalar_select %p381, %s27, 1
          %s383 = smul.addr %s382, 2
          %s384 = smul.addr %s383, 8
          %s385 = scalar_lea.vmem %s0, %s384
        $region20: #{tpu_custom_call.1} parent=15 // pred_fallthru
          _
        // Predicated region
        $region21: #{tpu_custom_call.1} parent=15 // pred_check
          %p386 = pneg %p87
        $region22: #{tpu_custom_call.1} parent=15 // pred_check_branch
          %388 = sbr.rel (%p386) target = $region24
        $region23: #{tpu_custom_call.1} parent=15 // pred_region
          %p389 = scmp.lt.s32.totalorder %s28, 2
          %s390 = scalar_select %p389, %s28, 2
          %p391 = scmp.lt.s32.totalorder %s27, 1
          %s392 = scalar_select %p391, %s27, 1
          %s393 = smul.addr %s390, 2
          %s394 = sadd.s32 %s392, %s393
          %s395 = smul.addr %s394, 8
          %s396 = scalar_lea.vmem %s1, %s395
        $region24: #{tpu_custom_call.1} parent=15 // pred_fallthru
          _
        // Predicated region
        $region25: #{tpu_custom_call.1} parent=15 // pred_check
          %p397 = pneg %p113
        $region26: #{tpu_custom_call.1} parent=15 // pred_check_branch
          %399 = sbr.rel (%p397) target = $region28
        $region27: #{tpu_custom_call.1} parent=15 // pred_region
          %p400 = scmp.lt.s32.totalorder %s28, 2
          %s401 = scalar_select %p400, %s28, 2
          %s402 = smul.addr %s401, 96
          %s403 = smul.addr %s402, 4
          %s404 = scalar_lea.vmem %s2, %s403
        $region28: #{tpu_custom_call.1} parent=15 // pred_fallthru
          _
        // Predicated region
        $region29: #{tpu_custom_call.1} parent=15 // pred_check
          %p405 = pneg %p139
        $region30: #{tpu_custom_call.1} parent=15 // pred_check_branch
          %407 = sbr.rel (%p405) target = $region32
        $region31: #{tpu_custom_call.1} parent=15 // pred_region
          %p408 = scmp.lt.s32.totalorder %s28, 2
          %s409 = scalar_select %p408, %s28, 2
          %s410 = smul.addr %s409, 12
          %s411 = scalar_lea.vmem %s3, %s410
        $region32: #{tpu_custom_call.1} parent=15 // pred_fallthru
          _
        // Predicated region
        $region33: #{tpu_custom_call.1} parent=15 // pred_check
          %p412 = pneg %p165
        $region34: #{tpu_custom_call.1} parent=15 // pred_check_branch
          %414 = sbr.rel (%p412) target = $region36
        $region35: #{tpu_custom_call.1} parent=15 // pred_region
          %p415 = scmp.lt.s32.totalorder %s28, 2
          %s416 = scalar_select %p415, %s28, 2
          %s417 = smul.addr %s416, 8
          %s418 = smul.addr %s417, 4
          %s419 = scalar_lea.vmem %s4, %s418
        $region36: #{tpu_custom_call.1} parent=15 // pred_fallthru
          _
        // Predicated region
        $region37: #{tpu_custom_call.1} parent=15 // pred_check
          %p420 = pneg %p191
        $region38: #{tpu_custom_call.1} parent=15 // pred_check_branch
          %422 = sbr.rel (%p420) target = $region40
        $region39: #{tpu_custom_call.1} parent=15 // pred_region
          %p423 = scmp.lt.s32.totalorder %s28, 2
          %s424 = scalar_select %p423, %s28, 2
          %s425 = scalar_lea.vmem %s5, %s424
        $region40: #{tpu_custom_call.1} parent=15 // pred_fallthru
          _
        // Predicated region
        $region41: #{tpu_custom_call.1} parent=15 // pred_check
          %p426 = pneg %p219
        $region42: #{tpu_custom_call.1} parent=15 // pred_check_branch
          %428 = sbr.rel (%p426) target = $region44
        $region43: #{tpu_custom_call.1} parent=15 // pred_region
          %s429 = sand.u32 %s209, 1
          %s430 = sand.u32 %s209, 1
          %s431 = smul.addr %s430, 32
          %s432 = scalar_lea.vmem [#allocation4], %s431
          %s433 = smul.addr %s28, 16
          %s434 = sadd.s32 %s29, %s433
          %s435 = smul.addr %s434, 4
          %s436 = scalar_lea.vmem %s6, %s435
          // Predicated region
          $region45: #{tpu_custom_call.1} parent=43 // pred_check
            _
          $region46: #{tpu_custom_call.1} parent=43 // pred_check_branch
            %438 = sbr.rel (0) target = $region48
          $region47: #{tpu_custom_call.1} parent=43 // pred_region
            // Predicated region
            $region49: #{tpu_custom_call.1} parent=47 // pred_check
              _
            $region50: #{tpu_custom_call.1} parent=47 // pred_check_branch
              %440 = sbr.rel target = $region52
            $region51: #{tpu_custom_call.1} parent=47 // pred_region
              // Predicated region
              $region64: #{tpu_custom_call.1} parent=51 // pred_check
                _
              $region65: #{tpu_custom_call.1} parent=51 // pred_check_branch
                %470 = sbr.rel (0) target = $region67
              $region66: #{tpu_custom_call.1} parent=51 // pred_region
                loop: start=0, step=1, limit=1
                $region68: #{tpu_custom_call.1} parent=66 // loop_pre_header
                  _
                $region69: #{tpu_custom_call.1} parent=66 // loop_header
                  %s472 = sphi 0, %s476
                  %p473 = scmp.ge.s32.totalorder %s472, 1
                  %s477 = sphi %s436, %s436
                  %s478 = sphi %s432, %s432
                $region70: #{tpu_custom_call.1} parent=66 // loop_header_branch
                  %475 = sbr.rel (%p473) target = $region74
                $region71: #{tpu_custom_call.1} parent=66 // loop_body
                  _
                $region72: #{tpu_custom_call.1} parent=66 // loop_footer
                  %s476 = sadd.s32 1, %s472
                $region73: #{tpu_custom_call.1} parent=66 // loop_footer_branch
                  %471 = sbr.rel target = $region69
                $region74: #{tpu_custom_call.1} parent=66 // loop_exit
                  _
                %s480 = ssub.s32 16, 1
                loop: start=0, step=1, limit=1
                $region75: #{tpu_custom_call.1} parent=66 // loop_pre_header
                  _
                $region76: #{tpu_custom_call.1} parent=66 // loop_header
                  %s482 = sphi 0, %s486
                  %p483 = scmp.ge.s32.totalorder %s482, 1
                  %s487 = sphi %s436, %s436
                  %s488 = sphi %s432, %s432
                $region77: #{tpu_custom_call.1} parent=66 // loop_header_branch
                  %485 = sbr.rel (%p483) target = $region81
                $region78: #{tpu_custom_call.1} parent=66 // loop_body
                  %v489 = vld [vmem:[%s487] sm:%s480]
                  %490 = vst [vmem:[%s488] sm:%s480] %v489
                  %v491 = vld [vmem:[%s487 + $0x8] sm:%s480]
                  %492 = vst [vmem:[%s488 + $0x4] sm:%s480] %v491
                  %v493 = vld [vmem:[%s487 + $0x10] sm:%s480]
                  %494 = vst [vmem:[%s488 + $0x8] sm:%s480] %v493
                  %v495 = vld [vmem:[%s487 + $0x18] sm:%s480]
                  %496 = vst [vmem:[%s488 + $0xc] sm:%s480] %v495
                  %v497 = vld [vmem:[%s487 + $0x20] sm:%s480]
                  %498 = vst [vmem:[%s488 + $0x10] sm:%s480] %v497
                  %v499 = vld [vmem:[%s487 + $0x28] sm:%s480]
                  %500 = vst [vmem:[%s488 + $0x14] sm:%s480] %v499
                  %v501 = vld [vmem:[%s487 + $0x30] sm:%s480]
                  %502 = vst [vmem:[%s488 + $0x18] sm:%s480] %v501
                  %v503 = vld [vmem:[%s487 + $0x38] sm:%s480]
                  %504 = vst [vmem:[%s488 + $0x1c] sm:%s480] %v503
                $region79: #{tpu_custom_call.1} parent=66 // loop_footer
                  %s486 = sadd.s32 1, %s482
                $region80: #{tpu_custom_call.1} parent=66 // loop_footer_branch
                  %481 = sbr.rel target = $region76
                $region81: #{tpu_custom_call.1} parent=66 // loop_exit
                  _
              $region67: #{tpu_custom_call.1} parent=51 // pred_fallthru
                _
            $region52: #{tpu_custom_call.1} parent=47 // pred_fallthru
              _
            // Predicated region
            $region53: #{tpu_custom_call.1} parent=47 // pred_check
              _
            $region54: #{tpu_custom_call.1} parent=47 // pred_check_branch
              %442 = sbr.rel (0) target = $region56
            $region55: #{tpu_custom_call.1} parent=47 // pred_region
              %s444 = ssub.s32 16, 1
              loop: start=0, step=1, limit=1
              $region57: #{tpu_custom_call.1} parent=55 // loop_pre_header
                _
              $region58: #{tpu_custom_call.1} parent=55 // loop_header
                %s446 = sphi 0, %s450
                %p447 = scmp.ge.s32.totalorder %s446, 1
                %s451 = sphi %s436, %s436
                %s452 = sphi %s432, %s432
              $region59: #{tpu_custom_call.1} parent=55 // loop_header_branch
                %449 = sbr.rel (%p447) target = $region63
              $region60: #{tpu_custom_call.1} parent=55 // loop_body
                %v453 = vld [vmem:[%s451] sm:%s444]
                %454 = vst [vmem:[%s452] sm:%s444] %v453
                %v455 = vld [vmem:[%s451 + $0x8] sm:%s444]
                %456 = vst [vmem:[%s452 + $0x4] sm:%s444] %v455
                %v457 = vld [vmem:[%s451 + $0x10] sm:%s444]
                %458 = vst [vmem:[%s452 + $0x8] sm:%s444] %v457
                %v459 = vld [vmem:[%s451 + $0x18] sm:%s444]
                %460 = vst [vmem:[%s452 + $0xc] sm:%s444] %v459
                %v461 = vld [vmem:[%s451 + $0x20] sm:%s444]
                %462 = vst [vmem:[%s452 + $0x10] sm:%s444] %v461
                %v463 = vld [vmem:[%s451 + $0x28] sm:%s444]
                %464 = vst [vmem:[%s452 + $0x14] sm:%s444] %v463
                %v465 = vld [vmem:[%s451 + $0x30] sm:%s444]
                %466 = vst [vmem:[%s452 + $0x18] sm:%s444] %v465
                %v467 = vld [vmem:[%s451 + $0x38] sm:%s444]
                %468 = vst [vmem:[%s452 + $0x1c] sm:%s444] %v467
              $region61: #{tpu_custom_call.1} parent=55 // loop_footer
                %s450 = sadd.s32 1, %s446
              $region62: #{tpu_custom_call.1} parent=55 // loop_footer_branch
                %445 = sbr.rel target = $region58
              $region63: #{tpu_custom_call.1} parent=55 // loop_exit
                _
            $region56: #{tpu_custom_call.1} parent=47 // pred_fallthru
              _
          $region48: #{tpu_custom_call.1} parent=43 // pred_fallthru
            _
          %505 = vnop
        $region44: #{tpu_custom_call.1} parent=15 // pred_fallthru
          _
        // Predicated region
        $region82: #{tpu_custom_call.1} parent=15 // pred_check
          %p506 = pneg %p247
        $region83: #{tpu_custom_call.1} parent=15 // pred_check_branch
          %508 = sbr.rel (%p506) target = $region85
        $region84: #{tpu_custom_call.1} parent=15 // pred_region
          %p509 = scmp.lt.s32.totalorder %s28, 2
          %s510 = scalar_select %p509, %s28, 2
          %p511 = scmp.lt.s32.totalorder %s29, 1
          %s512 = scalar_select %p511, %s29, 1
          %s513 = smul.addr %s510, 2
          %s514 = sadd.s32 %s512, %s513
          %s515 = scalar_lea.vmem %s7, %s514
        $region85: #{tpu_custom_call.1} parent=15 // pred_fallthru
          _
        // Predicated region
        $region86: #{tpu_custom_call.1} parent=15 // pred_check
          %p516 = pneg %p275
        $region87: #{tpu_custom_call.1} parent=15 // pred_check_branch
          %518 = sbr.rel (%p516) target = $region89
        $region88: #{tpu_custom_call.1} parent=15 // pred_region
          %s519 = smul.u32 16, %s29
          %p520 = scmp.lt.s32.totalorder %s28, 2
          %s521 = scalar_select %p520, %s28, 2
          %p522 = scmp.lt.s32.totalorder %s519, 31
          %s523 = scalar_select %p522, %s519, 31
          %s524 = smul.addr %s521, 32
          %s525 = sadd.s32 %s523, %s524
          %s526 = smul.addr %s525, 4
          %s527 = scalar_lea.vmem %s8, %s526
          %s528 = smul.u32 16, %s29
        $region89: #{tpu_custom_call.1} parent=15 // pred_fallthru
          _
        // Predicated region
        $region90: #{tpu_custom_call.1} parent=15 // pred_check
          %p529 = pneg %p301
        $region91: #{tpu_custom_call.1} parent=15 // pred_check_branch
          %531 = sbr.rel (%p529) target = $region93
        $region92: #{tpu_custom_call.1} parent=15 // pred_region
          %p532 = scmp.lt.s32.totalorder %s28, 2
          %s533 = scalar_select %p532, %s28, 2
          %s534 = scalar_lea.vmem %s9, %s533
        $region93: #{tpu_custom_call.1} parent=15 // pred_fallthru
          _
        // Predicated region
        $region94: #{tpu_custom_call.1} parent=15 // pred_check
          %p535 = pneg %p327
        $region95: #{tpu_custom_call.1} parent=15 // pred_check_branch
          %537 = sbr.rel (%p535) target = $region97
        $region96: #{tpu_custom_call.1} parent=15 // pred_region
          %p538 = scmp.lt.s32.totalorder %s27, 1
          %s539 = scalar_select %p538, %s27, 1
          %s540 = smul.addr %s539, 2
          %s541 = scalar_lea.vmem %s10, %s540
        $region97: #{tpu_custom_call.1} parent=15 // pred_fallthru
          _
      $region16: #{tpu_custom_call.1} parent=5 // pred_fallthru
        _
      %p542 = scmp.le.s32.totalorder 1, %s20
      %p543 = scmp.lt.s32.totalorder %s20, 13
      %p544 = pnand %p542, %p543
      %p545 = pneg %p544
      // Predicated region
      $region98: #{tpu_custom_call.1} parent=5 // pred_check
        _
      $region99: #{tpu_custom_call.1} parent=5 // pred_check_branch
        %547 = sbr.rel (%p544) target = $region101
      $region100: #{tpu_custom_call.1} parent=5 // pred_region
        %s548 = ssub.s32 %s20, 1
        %s549 = sand.u32 %s212, 1
        %s550 = sand.u32 %s212, 1
        %s551 = smul.addr %s550, 32
        %s552 = scalar_lea.vmem [#allocation4], %s551
        // Predicated region
        $region102: #{tpu_custom_call.1} parent=100 // pred_check
          %p553 = pneg %p225
        $region103: #{tpu_custom_call.1} parent=100 // pred_check_branch
          %555 = sbr.rel (%p553) target = $region105
        $region104: #{tpu_custom_call.1} parent=100 // pred_region
          _
        $region105: #{tpu_custom_call.1} parent=100 // pred_fallthru
          _
        %p556 = scmp.lt.s32.totalorder %s30, 1
        %s557 = scalar_select %p556, %s30, 1
        %s558 = smul.addr %s557, 2
        %s559 = smul.addr %s558, 8
        %s560 = scalar_lea.vmem %s0, %s559
        %p561 = pneg %p65
        %p562 = pneg %p62
        %p563 = scmp.lt.s32.totalorder %s31, 2
        %s564 = scalar_select %p563, %s31, 2
        %p565 = scmp.lt.s32.totalorder %s30, 1
        %s566 = scalar_select %p565, %s30, 1
        %s567 = smul.addr %s564, 2
        %s568 = sadd.s32 %s566, %s567
        %s569 = smul.addr %s568, 8
        %s570 = scalar_lea.vmem %s1, %s569
        %p571 = pneg %p93
        %p572 = pneg %p90
        %p573 = scmp.lt.s32.totalorder %s31, 2
        %s574 = scalar_select %p573, %s31, 2
        %s575 = smul.addr %s574, 96
        %s576 = smul.addr %s575, 4
        %s577 = scalar_lea.vmem %s2, %s576
        %p578 = pneg %p119
        %p579 = pneg %p116
        %p580 = scmp.lt.s32.totalorder %s31, 2
        %s581 = scalar_select %p580, %s31, 2
        %s582 = smul.addr %s581, 12
        %s583 = scalar_lea.vmem %s3, %s582
        %p584 = pneg %p145
        %p585 = pneg %p142
        %p586 = scmp.lt.s32.totalorder %s31, 2
        %s587 = scalar_select %p586, %s31, 2
        %s588 = smul.addr %s587, 8
        %s589 = smul.addr %s588, 4
        %s590 = scalar_lea.vmem %s4, %s589
        %p591 = pneg %p171
        %p592 = pneg %p168
        %p593 = scmp.lt.s32.totalorder %s31, 2
        %s594 = scalar_select %p593, %s31, 2
        %s595 = scalar_lea.vmem %s5, %s594
        %p596 = pneg %p197
        %p597 = pneg %p194
        %s598 = sand.u32 %s212, 1
        %s599 = sand.u32 %s212, 1
        %s600 = smul.addr %s599, 32
        %s601 = scalar_lea.vmem [#allocation4], %s600
        %p602 = pneg %p225
        %p603 = pneg %p222
        %p604 = scmp.lt.s32.totalorder %s31, 2
        %s605 = scalar_select %p604, %s31, 2
        %p606 = scmp.lt.s32.totalorder %s32, 1
        %s607 = scalar_select %p606, %s32, 1
        %s608 = smul.addr %s605, 2
        %s609 = sadd.s32 %s607, %s608
        %s610 = scalar_lea.vmem %s7, %s609
        %p611 = pneg %p253
        %p612 = pneg %p250
        %s613 = smul.u32 16, %s32
        %p614 = scmp.lt.s32.totalorder %s31, 2
        %s615 = scalar_select %p614, %s31, 2
        %p616 = scmp.lt.s32.totalorder %s613, 31
        %s617 = scalar_select %p616, %s613, 31
        %s618 = smul.addr %s615, 32
        %s619 = sadd.s32 %s617, %s618
        %s620 = smul.addr %s619, 4
        %s621 = scalar_lea.vmem %s8, %s620
        %p622 = pneg %p281
        %p623 = pneg %p278
        %p624 = scmp.lt.s32.totalorder %s31, 2
        %s625 = scalar_select %p624, %s31, 2
        %s626 = scalar_lea.vmem %s9, %s625
        %p627 = pneg %p307
        %p628 = pneg %p304
        %p629 = scmp.lt.s32.totalorder %s30, 1
        %s630 = scalar_select %p629, %s30, 1
        %s631 = smul.addr %s630, 2
        %s632 = scalar_lea.vmem %s10, %s631
        %p633 = pneg %p333
        %p634 = pneg %p330
        %p635 = pneg %p359
        %p636 = pneg %p356
        %s637 = sand.u32 %s346, 1
        %s638 = scalar_lea.sflag [#allocation6], %s637
        %s639 = sand.u32 %s346, 1
        %s640 = smul.addr %s639, 16
        %s641 = scalar_lea.vmem [#allocation5], %s640
        %p642 = scmp.lt.s32.totalorder %s30, 1
        %s643 = scalar_select %p642, %s30, 1
        %s644 = smul.addr %s643, 2
        %s645 = smul.addr %s644, 8
        %s646 = scalar_lea.vmem %s0, %s645
        %p647 = scmp.lt.s32.totalorder %s31, 2
        %s648 = scalar_select %p647, %s31, 2
        %p649 = scmp.lt.s32.totalorder %s30, 1
        %s650 = scalar_select %p649, %s30, 1
        %s651 = smul.addr %s648, 2
        %s652 = sadd.s32 %s650, %s651
        %s653 = smul.addr %s652, 8
        %s654 = scalar_lea.vmem %s1, %s653
        %p655 = scmp.lt.s32.totalorder %s31, 2
        %s656 = scalar_select %p655, %s31, 2
        %s657 = smul.addr %s656, 96
        %s658 = smul.addr %s657, 4
        %s659 = scalar_lea.vmem %s2, %s658
        %p660 = scmp.lt.s32.totalorder %s31, 2
        %s661 = scalar_select %p660, %s31, 2
        %s662 = smul.addr %s661, 12
        %s663 = scalar_lea.vmem %s3, %s662
        %p664 = scmp.lt.s32.totalorder %s31, 2
        %s665 = scalar_select %p664, %s31, 2
        %s666 = smul.addr %s665, 8
        %s667 = smul.addr %s666, 4
        %s668 = scalar_lea.vmem %s4, %s667
        %p669 = scmp.lt.s32.totalorder %s31, 2
        %s670 = scalar_select %p669, %s31, 2
        %s671 = scalar_lea.vmem %s5, %s670
        %p672 = scmp.lt.s32.totalorder %s31, 2
        %s673 = scalar_select %p672, %s31, 2
        %p674 = scmp.lt.s32.totalorder %s32, 1
        %s675 = scalar_select %p674, %s32, 1
        %s676 = smul.addr %s673, 2
        %s677 = sadd.s32 %s675, %s676
        %s678 = scalar_lea.vmem %s7, %s677
        %s679 = smul.u32 16, %s32
        %p680 = scmp.lt.s32.totalorder %s31, 2
        %s681 = scalar_select %p680, %s31, 2
        %p682 = scmp.lt.s32.totalorder %s679, 31
        %s683 = scalar_select %p682, %s679, 31
        %s684 = smul.addr %s681, 32
        %s685 = sadd.s32 %s683, %s684
        %s686 = smul.addr %s685, 4
        %s687 = scalar_lea.vmem %s8, %s686
        %s688 = smul.u32 16, %s32
        %p689 = scmp.lt.s32.totalorder %s31, 2
        %s690 = scalar_select %p689, %s31, 2
        %s691 = scalar_lea.vmem %s9, %s690
        %p692 = scmp.lt.s32.totalorder %s30, 1
        %s693 = scalar_select %p692, %s30, 1
        %s694 = smul.addr %s693, 2
        %s695 = scalar_lea.vmem %s10, %s694
        %p697 = scmp.eq.s32.totalorder %s32, 0
        // Predicated region
        $region106: #{tpu_custom_call.1} parent=100 // pred_check
          %p698 = pneg %p697
        $region107: #{tpu_custom_call.1} parent=100 // pred_check_branch
          %700 = sbr.rel (%p698) target = $region109
        $region108: #{tpu_custom_call.1} parent=100 // pred_region
          %p701 = scmp.eq.s32.totalorder %s31, 0
          // Predicated region
          $region110: #{tpu_custom_call.1} parent=108 // pred_check
            %p702 = pneg %p701
          $region111: #{tpu_custom_call.1} parent=108 // pred_check_branch
            %704 = sbr.rel (%p702) target = $region113
          $region112: #{tpu_custom_call.1} parent=108 // pred_region
            %v705 = vld [vmem:[%s646] sm:$0xff]
            %v706 = vld [vmem:[%s646 + $0x8] sm:$0xff]
            %vm707 = vcmask 523264
            %708 = vst.msk [vmem:[%s641] sm:$0xff] %vm707, %v705
            %709 = vst.msk [vmem:[%s641 + $0x8] sm:$0xff] %vm707, %v706
          $region113: #{tpu_custom_call.1} parent=108 // pred_fallthru
            _
          %v710 = vld [vmem:[%s641] sm:$0xff]
          %v711 = vld [vmem:[%s641 + $0x8] sm:$0xff]
          %v712 = vld [vmem:[%s654] sm:$0x3f]
          %vm713 = vcmask 523264
          %v714 = vsel %vm713, %v710, 0.0
          %715 = vadd.xlane.f32.xlu0 %v714
          %v716 = vpop.xlane.xlu0 %715
          %v717 = vsel %vm713, %v711, 0.0
          %718 = vadd.xlane.f32.xlu0 %v717
          %v719 = vpop.xlane.xlu0 %718
          %v720 = vrcp.pop 64.0
          %v721 = vmul.f32 64.0, %v720
          %v722 = vsub.f32 1.0, %v721
          %v723 = vmul.f32 %v720, %v722
          %v724 = vadd.f32 %v720, %v723
          %vm725 = vweird.f32 %v720
          %v726 = vsel %vm725, %v720, %v724
          %v727 = vmul.f32 %v716, %v726
          %v728 = vmul.f32 %v719, %v726
          %v729 = vsub.f32 %v710, %v727
          %v730 = vsub.f32 %v711, %v728
          %v731 = vmul.f32 %v729, %v729
          %v732 = vmul.f32 %v730, %v730
          %v733 = vsel %vm713, %v731, 0.0
          %734 = vadd.xlane.f32.xlu0 %v733
          %v735 = vpop.xlane.xlu0 %734
          %v736 = vsel %vm713, %v732, 0.0
          %737 = vadd.xlane.f32.xlu0 %v736
          %v738 = vpop.xlane.xlu0 %737
          %v739 = vmul.f32 %v735, %v726
          %v740 = vmul.f32 %v738, %v726
          %v741 = vadd.f32 %v739, 1e-05
          %v742 = vadd.f32 %v740, 1e-05
          %v743 = vrsqrt.pop %v741
          %v744 = vmul.f32 %v743, %v741
          %v745 = vmul.f32 %v744, %v743
          %v746 = vmul.f32 0.5, %v745
          %v747 = vsub.f32 1.5, %v746
          %v748 = vmul.f32 %v743, %v747
          %vm749 = vweird.f32 %v741
          %vm750 = vweird.f32 %v743
          %vm751 = vmor %vm749, %vm750
          %v752 = vsel %vm751, %v743, %v748
          %v753 = vrsqrt.pop %v742
          %v754 = vmul.f32 %v753, %v742
          %v755 = vmul.f32 %v754, %v753
          %v756 = vmul.f32 0.5, %v755
          %v757 = vsub.f32 1.5, %v756
          %v758 = vmul.f32 %v753, %v757
          %vm759 = vweird.f32 %v742
          %vm760 = vweird.f32 %v753
          %vm761 = vmor %vm759, %vm760
          %v762 = vsel %vm761, %v753, %v758
          %v763 = vmul.f32 %v729, %v752
          %v764 = vmul.f32 %v730, %v762
          %v765 = vadd.f32 %v712, 1.0
          %v766 = vperm.slane %v765, 0
          %v767 = vmul.f32 %v763, %v766
          %v768 = vmul.f32 %v764, %v766
          %v769 = vperm.slane %v712, 1
          %v770 = vadd.f32 %v767, %v769
          %v771 = vadd.f32 %v768, %v769
          %v772 = vpack.c.bf16 %v770, %v770
          %v773 = vpack.c.bf16 %v771, %v771
          %v774 = vld [vmem:[%s659] sm:$0xf]
          %v775 = vld [vmem:[%s659 + $0x4] sm:$0xf]
          %v776 = vld [vmem:[%s659 + $0x8] sm:$0xf]
          %v777 = vld [vmem:[%s659 + $0xc] sm:$0xf]
          %v778 = vld [vmem:[%s659 + $0x10] sm:$0xf]
          %v779 = vld [vmem:[%s659 + $0x14] sm:$0xf]
          %v780 = vld [vmem:[%s659 + $0x18] sm:$0xf]
          %v781 = vld [vmem:[%s659 + $0x1c] sm:$0xf]
          %v782 = vld [vmem:[%s663] sm:$0x1]
          %v784 = vperm.slane %v782, 0
          %v788 = vunpack.c.l.b16 %v772
          %v789 = vunpack.c.l.b16 %v773
          %v790 = vpack.c.b16 %v789, %v788
          %v799 = vunpack.c.l.b16 %v774
          %v800 = vunpack.c.l.b16 %v775
          %v801 = vunpack.c.l.b16 %v776
          %v802 = vunpack.c.l.b16 %v777
          %v803 = vunpack.c.l.b16 %v778
          %v804 = vunpack.c.l.b16 %v779
          %v805 = vunpack.c.l.b16 %v780
          %v806 = vunpack.c.l.b16 %v781
          %v807 = vpack.c.b16 %v800, %v799
          %v808 = vpack.c.b16 %v802, %v801
          %v809 = vpack.c.b16 %v804, %v803
          %v810 = vpack.c.b16 %v806, %v805
          %v816 = vsel %vm713, %v790, 0
          %818 = vmatpush.bf16.msra.mxu0 0
          %819 = vmatpush.bf16.msra.mxu0 0
          %820 = vmatpush.bf16.msra.mxu0 0
          %821 = vmatpush.bf16.msra.mxu0 0
          %822 = vmatpush.bf16.msra.mxu0 %v810
          %823 = vmatpush.bf16.msra.mxu0 %v809
          %824 = vmatpush.bf16.msra.mxu0 %v808
          %825 = vmatpush.bf16.msra.mxu0 %v807
          %826 = vmatmul.bf16.gmra.mxu0 %v816
          %v827 = vpop.f32.mrf.mxu0
          %v828 = vadd.f32 %v784, %v827
          %v829 = vpop.f32.mrf.mxu0
          %v830 = vadd.f32 %v784, %v829
          %831 = vdwg.mxu0
          %v832 = vmul.f32 %v828, 0.25
          %v833 = vmul.f32 %v830, 0.25
          %s834 = scalar_lea.vmem %s659, 128
          %v835 = vld [vmem:[%s834] sm:$0xf]
          %v836 = vld [vmem:[%s834 + $0x4] sm:$0xf]
          %v837 = vld [vmem:[%s834 + $0x8] sm:$0xf]
          %v838 = vld [vmem:[%s834 + $0xc] sm:$0xf]
          %v839 = vld [vmem:[%s834 + $0x10] sm:$0xf]
          %v840 = vld [vmem:[%s834 + $0x14] sm:$0xf]
          %v841 = vld [vmem:[%s834 + $0x18] sm:$0xf]
          %v842 = vld [vmem:[%s834 + $0x1c] sm:$0xf]
          %s843 = scalar_lea.vmem %s663, 4
          %v844 = vld [vmem:[%s843] sm:$0x1]
          %v846 = vperm.slane %v844, 0
          %v856 = vunpack.c.l.b16 %v835
          %v857 = vunpack.c.l.b16 %v836
          %v858 = vunpack.c.l.b16 %v837
          %v859 = vunpack.c.l.b16 %v838
          %v860 = vunpack.c.l.b16 %v839
          %v861 = vunpack.c.l.b16 %v840
          %v862 = vunpack.c.l.b16 %v841
          %v863 = vunpack.c.l.b16 %v842
          %v864 = vpack.c.b16 %v857, %v856
          %v865 = vpack.c.b16 %v859, %v858
          %v866 = vpack.c.b16 %v861, %v860
          %v867 = vpack.c.b16 %v863, %v862
          %872 = vmatpush.bf16.msra.mxu0 0
          %873 = vmatpush.bf16.msra.mxu0 0
          %874 = vmatpush.bf16.msra.mxu0 0
          %875 = vmatpush.bf16.msra.mxu0 0
          %876 = vmatpush.bf16.msra.mxu0 %v867
          %877 = vmatpush.bf16.msra.mxu0 %v866
          %878 = vmatpush.bf16.msra.mxu0 %v865
          %879 = vmatpush.bf16.msra.mxu0 %v864
          %880 = vmatmul.bf16.gmra.mxu0 %v816
          %v881 = vpop.f32.mrf.mxu0
          %v882 = vadd.f32 %v846, %v881
          %v883 = vpop.f32.mrf.mxu0
          %v884 = vadd.f32 %v846, %v883
          %885 = vdwg.mxu0
          %s886 = scalar_lea.vmem %s659, 256
          %v887 = vld [vmem:[%s886] sm:$0xf]
          %v888 = vld [vmem:[%s886 + $0x4] sm:$0xf]
          %v889 = vld [vmem:[%s886 + $0x8] sm:$0xf]
          %v890 = vld [vmem:[%s886 + $0xc] sm:$0xf]
          %v891 = vld [vmem:[%s886 + $0x10] sm:$0xf]
          %v892 = vld [vmem:[%s886 + $0x14] sm:$0xf]
          %v893 = vld [vmem:[%s886 + $0x18] sm:$0xf]
          %v894 = vld [vmem:[%s886 + $0x1c] sm:$0xf]
          %s895 = scalar_lea.vmem %s663, 8
          %v896 = vld [vmem:[%s895] sm:$0x1]
          %v898 = vperm.slane %v896, 0
          %v908 = vunpack.c.l.b16 %v887
          %v909 = vunpack.c.l.b16 %v888
          %v910 = vunpack.c.l.b16 %v889
          %v911 = vunpack.c.l.b16 %v890
          %v912 = vunpack.c.l.b16 %v891
          %v913 = vunpack.c.l.b16 %v892
          %v914 = vunpack.c.l.b16 %v893
          %v915 = vunpack.c.l.b16 %v894
          %v916 = vpack.c.b16 %v909, %v908
          %v917 = vpack.c.b16 %v911, %v910
          %v918 = vpack.c.b16 %v913, %v912
          %v919 = vpack.c.b16 %v915, %v914
          %924 = vmatpush.bf16.msra.mxu0 0
          %925 = vmatpush.bf16.msra.mxu0 0
          %926 = vmatpush.bf16.msra.mxu0 0
          %927 = vmatpush.bf16.msra.mxu0 0
          %928 = vmatpush.bf16.msra.mxu0 %v919
          %929 = vmatpush.bf16.msra.mxu0 %v918
          %930 = vmatpush.bf16.msra.mxu0 %v917
          %931 = vmatpush.bf16.msra.mxu0 %v916
          %932 = vmatmul.bf16.gmra.mxu0 %v816
          %v933 = vpop.f32.mrf.mxu0
          %v934 = vadd.f32 %v898, %v933
          %v935 = vpop.f32.mrf.mxu0
          %v936 = vadd.f32 %v898, %v935
          %937 = vdwg.mxu0
          %v938 = vpack.c.bf16 %v832, %v832
          %v939 = vpack.c.bf16 %v833, %v833
          %v940 = vpack.c.bf16 %v882, %v882
          %v941 = vpack.c.bf16 %v884, %v884
          %v942 = vpack.c.bf16 %v934, %v934
          %v943 = vpack.c.bf16 %v936, %v936
          %v946 = vunpack.c.l.b16 %v938
          %v947 = vunpack.c.l.b16 %v939
          %v948 = vpack.c.b16 %v947, %v946
          %v951 = vunpack.c.l.b16 %v940
          %v952 = vunpack.c.l.b16 %v941
          %v953 = vpack.c.b16 %v952, %v951
          %vm954 = vcmask 130048
          %v956 = vsel %vm954, %v948, 0
          %v959 = vsel %vm954, %v953, 0
          %961 = vmatpush.bf16.xpose.msra.mxu0 0
          %962 = vmatpush.bf16.xpose.msra.mxu0 0
          %963 = vmatpush.bf16.xpose.msra.mxu0 0
          %964 = vmatpush.bf16.xpose.msra.mxu0 0
          %965 = vmatpush.bf16.xpose.msra.mxu0 0
          %966 = vmatpush.bf16.xpose.msra.mxu0 0
          %967 = vmatpush.bf16.xpose.msra.mxu0 0
          %968 = vmatpush.bf16.xpose.msra.mxu0 %v959
          %969 = vmatmul.bf16.gmra.mxu0 %v956
          %v970 = vpop.f32.mrf.mxu0
          %v971 = vadd.f32 0.0, %v970
          %v972 = vpop.f32.mrf.mxu0
          %v973 = vadd.f32 0.0, %v972
          %974 = vdwg.mxu0
          %v975 = vsel %vm954, %v971, -inf
          %976 = vmax.xlane.f32.xlu0 %v975
          %v977 = vpop.xlane.xlu0 %976
          %v978 = vsel %vm954, %v973, -inf
          %979 = vmax.xlane.f32.xlu0 %v978
          %v980 = vpop.xlane.xlu0 %979
          %v981 = vsub.f32 %v971, %v977
          %v982 = vsub.f32 %v973, %v980
          %v983 = vmul.f32 %v981, 1.442695
          %v984 = vpow.pop %v983
          %v985 = vmul.f32 %v982, 1.442695
          %v986 = vpow.pop %v985
          %v987 = vsel %vm954, %v984, 0.0
          %988 = vadd.xlane.f32.xlu0 %v987
          %v989 = vpop.xlane.xlu0 %988
          %v990 = vsel %vm954, %v986, 0.0
          %991 = vadd.xlane.f32.xlu0 %v990
          %v992 = vpop.xlane.xlu0 %991
          %v993 = vrcp.pop %v989
          %v994 = vrcp.pop %v992
          %v995 = vmul.f32 %v984, %v993
          %v996 = vmul.f32 %v986, %v994
          %v997 = vpack.c.bf16 %v995, %v995
          %v998 = vpack.c.bf16 %v996, %v996
          %v1001 = vunpack.c.l.b16 %v997
          %v1002 = vunpack.c.l.b16 %v998
          %v1003 = vpack.c.b16 %v1002, %v1001
          %v1006 = vunpack.c.l.b16 %v942
          %v1007 = vunpack.c.l.b16 %v943
          %v1008 = vpack.c.b16 %v1007, %v1006
          %v1011 = vsel %vm954, %v1003, 0
          %1013 = vmatpush.bf16.msra.mxu0 0
          %1014 = vmatpush.bf16.msra.mxu0 0
          %1015 = vmatpush.bf16.msra.mxu0 0
          %1016 = vmatpush.bf16.msra.mxu0 0
          %1017 = vmatpush.bf16.msra.mxu0 0
          %1018 = vmatpush.bf16.msra.mxu0 0
          %1019 = vmatpush.bf16.msra.mxu0 0
          %1020 = vmatpush.bf16.msra.mxu0 %v1008
          %1021 = vmatmul.bf16.gmra.mxu0 %v1011
          %v1022 = vpop.f32.mrf.mxu0
          %v1023 = vadd.f32 0.0, %v1022
          %v1024 = vpop.f32.mrf.mxu0
          %v1025 = vadd.f32 0.0, %v1024
          %1026 = vdwg.mxu0
          %v1027 = vpack.c.bf16 %v1025, %v1023
          %v1028 = vld [vmem:[%s668] sm:$0xf]
          %v1029 = vld [vmem:[%s668 + $0x4] sm:$0xf]
          %s1030 = scalar_lea.vmem %s659, 32
          %v1031 = vld [vmem:[%s1030] sm:$0xf]
          %v1032 = vld [vmem:[%s1030 + $0x4] sm:$0xf]
          %v1033 = vld [vmem:[%s1030 + $0x8] sm:$0xf]
          %v1034 = vld [vmem:[%s1030 + $0xc] sm:$0xf]
          %v1035 = vld [vmem:[%s1030 + $0x10] sm:$0xf]
          %v1036 = vld [vmem:[%s1030 + $0x14] sm:$0xf]
          %v1037 = vld [vmem:[%s1030 + $0x18] sm:$0xf]
          %v1038 = vld [vmem:[%s1030 + $0x1c] sm:$0xf]
          %s1039 = scalar_lea.vmem %s663, 1
          %v1040 = vld [vmem:[%s1039] sm:$0x1]
          %v1042 = vperm.slane %v1040, 0
          %v1052 = vunpack.c.l.b16 %v1031
          %v1053 = vunpack.c.l.b16 %v1032
          %v1054 = vunpack.c.l.b16 %v1033
          %v1055 = vunpack.c.l.b16 %v1034
          %v1056 = vunpack.c.l.b16 %v1035
          %v1057 = vunpack.c.l.b16 %v1036
          %v1058 = vunpack.c.l.b16 %v1037
          %v1059 = vunpack.c.l.b16 %v1038
          %v1060 = vpack.c.b16 %v1053, %v1052
          %v1061 = vpack.c.b16 %v1055, %v1054
          %v1062 = vpack.c.b16 %v1057, %v1056
          %v1063 = vpack.c.b16 %v1059, %v1058
          %1068 = vmatpush.bf16.msra.mxu0 0
          %1069 = vmatpush.bf16.msra.mxu0 0
          %1070 = vmatpush.bf16.msra.mxu0 0
          %1071 = vmatpush.bf16.msra.mxu0 0
          %1072 = vmatpush.bf16.msra.mxu0 %v1063
          %1073 = vmatpush.bf16.msra.mxu0 %v1062
          %1074 = vmatpush.bf16.msra.mxu0 %v1061
          %1075 = vmatpush.bf16.msra.mxu0 %v1060
          %1076 = vmatmul.bf16.gmra.mxu0 %v816
          %v1077 = vpop.f32.mrf.mxu0
          %v1078 = vadd.f32 %v1042, %v1077
          %v1079 = vpop.f32.mrf.mxu0
          %v1080 = vadd.f32 %v1042, %v1079
          %1081 = vdwg.mxu0
          %v1082 = vmul.f32 %v1078, 0.25
          %v1083 = vmul.f32 %v1080, 0.25
          %s1084 = scalar_lea.vmem %s659, 160
          %v1085 = vld [vmem:[%s1084] sm:$0xf]
          %v1086 = vld [vmem:[%s1084 + $0x4] sm:$0xf]
          %v1087 = vld [vmem:[%s1084 + $0x8] sm:$0xf]
          %v1088 = vld [vmem:[%s1084 + $0xc] sm:$0xf]
          %v1089 = vld [vmem:[%s1084 + $0x10] sm:$0xf]
          %v1090 = vld [vmem:[%s1084 + $0x14] sm:$0xf]
          %v1091 = vld [vmem:[%s1084 + $0x18] sm:$0xf]
          %v1092 = vld [vmem:[%s1084 + $0x1c] sm:$0xf]
          %s1093 = scalar_lea.vmem %s663, 5
          %v1094 = vld [vmem:[%s1093] sm:$0x1]
          %v1096 = vperm.slane %v1094, 0
          %v1106 = vunpack.c.l.b16 %v1085
          %v1107 = vunpack.c.l.b16 %v1086
          %v1108 = vunpack.c.l.b16 %v1087
          %v1109 = vunpack.c.l.b16 %v1088
          %v1110 = vunpack.c.l.b16 %v1089
          %v1111 = vunpack.c.l.b16 %v1090
          %v1112 = vunpack.c.l.b16 %v1091
          %v1113 = vunpack.c.l.b16 %v1092
          %v1114 = vpack.c.b16 %v1107, %v1106
          %v1115 = vpack.c.b16 %v1109, %v1108
          %v1116 = vpack.c.b16 %v1111, %v1110
          %v1117 = vpack.c.b16 %v1113, %v1112
          %1122 = vmatpush.bf16.msra.mxu0 0
          %1123 = vmatpush.bf16.msra.mxu0 0
          %1124 = vmatpush.bf16.msra.mxu0 0
          %1125 = vmatpush.bf16.msra.mxu0 0
          %1126 = vmatpush.bf16.msra.mxu0 %v1117
          %1127 = vmatpush.bf16.msra.mxu0 %v1116
          %1128 = vmatpush.bf16.msra.mxu0 %v1115
          %1129 = vmatpush.bf16.msra.mxu0 %v1114
          %1130 = vmatmul.bf16.gmra.mxu0 %v816
          %v1131 = vpop.f32.mrf.mxu0
          %v1132 = vadd.f32 %v1096, %v1131
          %v1133 = vpop.f32.mrf.mxu0
          %v1134 = vadd.f32 %v1096, %v1133
          %1135 = vdwg.mxu0
          %s1136 = scalar_lea.vmem %s659, 288
          %v1137 = vld [vmem:[%s1136] sm:$0xf]
          %v1138 = vld [vmem:[%s1136 + $0x4] sm:$0xf]
          %v1139 = vld [vmem:[%s1136 + $0x8] sm:$0xf]
          %v1140 = vld [vmem:[%s1136 + $0xc] sm:$0xf]
          %v1141 = vld [vmem:[%s1136 + $0x10] sm:$0xf]
          %v1142 = vld [vmem:[%s1136 + $0x14] sm:$0xf]
          %v1143 = vld [vmem:[%s1136 + $0x18] sm:$0xf]
          %v1144 = vld [vmem:[%s1136 + $0x1c] sm:$0xf]
          %s1145 = scalar_lea.vmem %s663, 9
          %v1146 = vld [vmem:[%s1145] sm:$0x1]
          %v1148 = vperm.slane %v1146, 0
          %v1158 = vunpack.c.l.b16 %v1137
          %v1159 = vunpack.c.l.b16 %v1138
          %v1160 = vunpack.c.l.b16 %v1139
          %v1161 = vunpack.c.l.b16 %v1140
          %v1162 = vunpack.c.l.b16 %v1141
          %v1163 = vunpack.c.l.b16 %v1142
          %v1164 = vunpack.c.l.b16 %v1143
          %v1165 = vunpack.c.l.b16 %v1144
          %v1166 = vpack.c.b16 %v1159, %v1158
          %v1167 = vpack.c.b16 %v1161, %v1160
          %v1168 = vpack.c.b16 %v1163, %v1162
          %v1169 = vpack.c.b16 %v1165, %v1164
          %1174 = vmatpush.bf16.msra.mxu0 0
          %1175 = vmatpush.bf16.msra.mxu0 0
          %1176 = vmatpush.bf16.msra.mxu0 0
          %1177 = vmatpush.bf16.msra.mxu0 0
          %1178 = vmatpush.bf16.msra.mxu0 %v1169
          %1179 = vmatpush.bf16.msra.mxu0 %v1168
          %1180 = vmatpush.bf16.msra.mxu0 %v1167
          %1181 = vmatpush.bf16.msra.mxu0 %v1166
          %1182 = vmatmul.bf16.gmra.mxu0 %v816
          %v1183 = vpop.f32.mrf.mxu0
          %v1184 = vadd.f32 %v1148, %v1183
          %v1185 = vpop.f32.mrf.mxu0
          %v1186 = vadd.f32 %v1148, %v1185
          %1187 = vdwg.mxu0
          %v1188 = vpack.c.bf16 %v1082, %v1082
          %v1189 = vpack.c.bf16 %v1083, %v1083
          %v1190 = vpack.c.bf16 %v1132, %v1132
          %v1191 = vpack.c.bf16 %v1134, %v1134
          %v1192 = vpack.c.bf16 %v1184, %v1184
          %v1193 = vpack.c.bf16 %v1186, %v1186
          %v1196 = vunpack.c.l.b16 %v1188
          %v1197 = vunpack.c.l.b16 %v1189
          %v1198 = vpack.c.b16 %v1197, %v1196
          %v1201 = vunpack.c.l.b16 %v1190
          %v1202 = vunpack.c.l.b16 %v1191
          %v1203 = vpack.c.b16 %v1202, %v1201
          %v1205 = vsel %vm954, %v1198, 0
          %v1208 = vsel %vm954, %v1203, 0
          %1210 = vmatpush.bf16.xpose.msra.mxu0 0
          %1211 = vmatpush.bf16.xpose.msra.mxu0 0
          %1212 = vmatpush.bf16.xpose.msra.mxu0 0
          %1213 = vmatpush.bf16.xpose.msra.mxu0 0
          %1214 = vmatpush.bf16.xpose.msra.mxu0 0
          %1215 = vmatpush.bf16.xpose.msra.mxu0 0
          %1216 = vmatpush.bf16.xpose.msra.mxu0 0
          %1217 = vmatpush.bf16.xpose.msra.mxu0 %v1208
          %1218 = vmatmul.bf16.gmra.mxu0 %v1205
          %v1219 = vpop.f32.mrf.mxu0
          %v1220 = vadd.f32 0.0, %v1219
          %v1221 = vpop.f32.mrf.mxu0
          %v1222 = vadd.f32 0.0, %v1221
          %1223 = vdwg.mxu0
          %v1224 = vsel %vm954, %v1220, -inf
          %1225 = vmax.xlane.f32.xlu0 %v1224
          %v1226 = vpop.xlane.xlu0 %1225
          %v1227 = vsel %vm954, %v1222, -inf
          %1228 = vmax.xlane.f32.xlu0 %v1227
          %v1229 = vpop.xlane.xlu0 %1228
          %v1230 = vsub.f32 %v1220, %v1226
          %v1231 = vsub.f32 %v1222, %v1229
          %v1232 = vmul.f32 %v1230, 1.442695
          %v1233 = vpow.pop %v1232
          %v1234 = vmul.f32 %v1231, 1.442695
          %v1235 = vpow.pop %v1234
          %v1236 = vsel %vm954, %v1233, 0.0
          %1237 = vadd.xlane.f32.xlu0 %v1236
          %v1238 = vpop.xlane.xlu0 %1237
          %v1239 = vsel %vm954, %v1235, 0.0
          %1240 = vadd.xlane.f32.xlu0 %v1239
          %v1241 = vpop.xlane.xlu0 %1240
          %v1242 = vrcp.pop %v1238
          %v1243 = vrcp.pop %v1241
          %v1244 = vmul.f32 %v1233, %v1242
          %v1245 = vmul.f32 %v1235, %v1243
          %v1246 = vpack.c.bf16 %v1244, %v1244
          %v1247 = vpack.c.bf16 %v1245, %v1245
          %v1250 = vunpack.c.l.b16 %v1246
          %v1251 = vunpack.c.l.b16 %v1247
          %v1252 = vpack.c.b16 %v1251, %v1250
          %v1255 = vunpack.c.l.b16 %v1192
          %v1256 = vunpack.c.l.b16 %v1193
          %v1257 = vpack.c.b16 %v1256, %v1255
          %v1260 = vsel %vm954, %v1252, 0
          %1262 = vmatpush.bf16.msra.mxu0 0
          %1263 = vmatpush.bf16.msra.mxu0 0
          %1264 = vmatpush.bf16.msra.mxu0 0
          %1265 = vmatpush.bf16.msra.mxu0 0
          %1266 = vmatpush.bf16.msra.mxu0 0
          %1267 = vmatpush.bf16.msra.mxu0 0
          %1268 = vmatpush.bf16.msra.mxu0 0
          %1269 = vmatpush.bf16.msra.mxu0 %v1257
          %1270 = vmatmul.bf16.gmra.mxu0 %v1260
          %v1271 = vpop.f32.mrf.mxu0
          %v1272 = vadd.f32 0.0, %v1271
          %v1273 = vpop.f32.mrf.mxu0
          %v1274 = vadd.f32 0.0, %v1273
          %1275 = vdwg.mxu0
          %v1276 = vpack.c.bf16 %v1274, %v1272
          %s1277 = scalar_lea.vmem %s668, 8
          %v1278 = vld [vmem:[%s1277] sm:$0xf]
          %v1279 = vld [vmem:[%s1277 + $0x4] sm:$0xf]
          %v1282 = vunpack.c.l.b16 %v1278
          %v1283 = vunpack.c.l.b16 %v1279
          %v1284 = vpack.c.b16 %v1283, %v1282
          %v1287 = vsel %vm954, %v1276, 0
          %1289 = vmatpush.bf16.msra.mxu0 0
          %1290 = vmatpush.bf16.msra.mxu0 0
          %1291 = vmatpush.bf16.msra.mxu0 0
          %1292 = vmatpush.bf16.msra.mxu0 0
          %1293 = vmatpush.bf16.msra.mxu0 0
          %1294 = vmatpush.bf16.msra.mxu0 0
          %1295 = vmatpush.bf16.msra.mxu0 0
          %1296 = vmatpush.bf16.msra.mxu0 %v1284
          %1297 = vmatmul.bf16.gmra.mxu0 %v1287
          %v1298 = vpop.f32.mrf.mxu0
          %v1299 = vadd.f32 0.0, %v1298
          %v1300 = vpop.f32.mrf.mxu0
          %v1301 = vadd.f32 0.0, %v1300
          %1302 = vdwg.mxu0
          %v1305 = vunpack.c.l.b16 %v1028
          %v1306 = vunpack.c.l.b16 %v1029
          %v1307 = vpack.c.b16 %v1306, %v1305
          %v1310 = vsel %vm954, %v1027, 0
          %1312 = vmatpush.bf16.msra.mxu0 0
          %1313 = vmatpush.bf16.msra.mxu0 0
          %1314 = vmatpush.bf16.msra.mxu0 0
          %1315 = vmatpush.bf16.msra.mxu0 0
          %1316 = vmatpush.bf16.msra.mxu0 0
          %1317 = vmatpush.bf16.msra.mxu0 0
          %1318 = vmatpush.bf16.msra.mxu0 0
          %1319 = vmatpush.bf16.msra.mxu0 %v1307
          %1320 = vmatmul.bf16.gmra.mxu0 %v1310
          %v1321 = vpop.f32.mrf.mxu0
          %v1322 = vadd.f32 %v1299, %v1321
          %v1323 = vpop.f32.mrf.mxu0
          %v1324 = vadd.f32 %v1301, %v1323
          %1325 = vdwg.mxu0
          %s1326 = scalar_lea.vmem %s659, 64
          %v1327 = vld [vmem:[%s1326] sm:$0xf]
          %v1328 = vld [vmem:[%s1326 + $0x4] sm:$0xf]
          %v1329 = vld [vmem:[%s1326 + $0x8] sm:$0xf]
          %v1330 = vld [vmem:[%s1326 + $0xc] sm:$0xf]
          %v1331 = vld [vmem:[%s1326 + $0x10] sm:$0xf]
          %v1332 = vld [vmem:[%s1326 + $0x14] sm:$0xf]
          %v1333 = vld [vmem:[%s1326 + $0x18] sm:$0xf]
          %v1334 = vld [vmem:[%s1326 + $0x1c] sm:$0xf]
          %s1335 = scalar_lea.vmem %s663, 2
          %v1336 = vld [vmem:[%s1335] sm:$0x1]
          %v1338 = vperm.slane %v1336, 0
          %v1348 = vunpack.c.l.b16 %v1327
          %v1349 = vunpack.c.l.b16 %v1328
          %v1350 = vunpack.c.l.b16 %v1329
          %v1351 = vunpack.c.l.b16 %v1330
          %v1352 = vunpack.c.l.b16 %v1331
          %v1353 = vunpack.c.l.b16 %v1332
          %v1354 = vunpack.c.l.b16 %v1333
          %v1355 = vunpack.c.l.b16 %v1334
          %v1356 = vpack.c.b16 %v1349, %v1348
          %v1357 = vpack.c.b16 %v1351, %v1350
          %v1358 = vpack.c.b16 %v1353, %v1352
          %v1359 = vpack.c.b16 %v1355, %v1354
          %1364 = vmatpush.bf16.msra.mxu0 0
          %1365 = vmatpush.bf16.msra.mxu0 0
          %1366 = vmatpush.bf16.msra.mxu0 0
          %1367 = vmatpush.bf16.msra.mxu0 0
          %1368 = vmatpush.bf16.msra.mxu0 %v1359
          %1369 = vmatpush.bf16.msra.mxu0 %v1358
          %1370 = vmatpush.bf16.msra.mxu0 %v1357
          %1371 = vmatpush.bf16.msra.mxu0 %v1356
          %1372 = vmatmul.bf16.gmra.mxu0 %v816
          %v1373 = vpop.f32.mrf.mxu0
          %v1374 = vadd.f32 %v1338, %v1373
          %v1375 = vpop.f32.mrf.mxu0
          %v1376 = vadd.f32 %v1338, %v1375
          %1377 = vdwg.mxu0
          %v1378 = vmul.f32 %v1374, 0.25
          %v1379 = vmul.f32 %v1376, 0.25
          %s1380 = scalar_lea.vmem %s659, 192
          %v1381 = vld [vmem:[%s1380] sm:$0xf]
          %v1382 = vld [vmem:[%s1380 + $0x4] sm:$0xf]
          %v1383 = vld [vmem:[%s1380 + $0x8] sm:$0xf]
          %v1384 = vld [vmem:[%s1380 + $0xc] sm:$0xf]
          %v1385 = vld [vmem:[%s1380 + $0x10] sm:$0xf]
          %v1386 = vld [vmem:[%s1380 + $0x14] sm:$0xf]
          %v1387 = vld [vmem:[%s1380 + $0x18] sm:$0xf]
          %v1388 = vld [vmem:[%s1380 + $0x1c] sm:$0xf]
          %s1389 = scalar_lea.vmem %s663, 6
          %v1390 = vld [vmem:[%s1389] sm:$0x1]
          %v1392 = vperm.slane %v1390, 0
          %v1402 = vunpack.c.l.b16 %v1381
          %v1403 = vunpack.c.l.b16 %v1382
          %v1404 = vunpack.c.l.b16 %v1383
          %v1405 = vunpack.c.l.b16 %v1384
          %v1406 = vunpack.c.l.b16 %v1385
          %v1407 = vunpack.c.l.b16 %v1386
          %v1408 = vunpack.c.l.b16 %v1387
          %v1409 = vunpack.c.l.b16 %v1388
          %v1410 = vpack.c.b16 %v1403, %v1402
          %v1411 = vpack.c.b16 %v1405, %v1404
          %v1412 = vpack.c.b16 %v1407, %v1406
          %v1413 = vpack.c.b16 %v1409, %v1408
          %1418 = vmatpush.bf16.msra.mxu0 0
          %1419 = vmatpush.bf16.msra.mxu0 0
          %1420 = vmatpush.bf16.msra.mxu0 0
          %1421 = vmatpush.bf16.msra.mxu0 0
          %1422 = vmatpush.bf16.msra.mxu0 %v1413
          %1423 = vmatpush.bf16.msra.mxu0 %v1412
          %1424 = vmatpush.bf16.msra.mxu0 %v1411
          %1425 = vmatpush.bf16.msra.mxu0 %v1410
          %1426 = vmatmul.bf16.gmra.mxu0 %v816
          %v1427 = vpop.f32.mrf.mxu0
          %v1428 = vadd.f32 %v1392, %v1427
          %v1429 = vpop.f32.mrf.mxu0
          %v1430 = vadd.f32 %v1392, %v1429
          %1431 = vdwg.mxu0
          %s1432 = scalar_lea.vmem %s659, 320
          %v1433 = vld [vmem:[%s1432] sm:$0xf]
          %v1434 = vld [vmem:[%s1432 + $0x4] sm:$0xf]
          %v1435 = vld [vmem:[%s1432 + $0x8] sm:$0xf]
          %v1436 = vld [vmem:[%s1432 + $0xc] sm:$0xf]
          %v1437 = vld [vmem:[%s1432 + $0x10] sm:$0xf]
          %v1438 = vld [vmem:[%s1432 + $0x14] sm:$0xf]
          %v1439 = vld [vmem:[%s1432 + $0x18] sm:$0xf]
          %v1440 = vld [vmem:[%s1432 + $0x1c] sm:$0xf]
          %s1441 = scalar_lea.vmem %s663, 10
          %v1442 = vld [vmem:[%s1441] sm:$0x1]
          %v1444 = vperm.slane %v1442, 0
          %v1454 = vunpack.c.l.b16 %v1433
          %v1455 = vunpack.c.l.b16 %v1434
          %v1456 = vunpack.c.l.b16 %v1435
          %v1457 = vunpack.c.l.b16 %v1436
          %v1458 = vunpack.c.l.b16 %v1437
          %v1459 = vunpack.c.l.b16 %v1438
          %v1460 = vunpack.c.l.b16 %v1439
          %v1461 = vunpack.c.l.b16 %v1440
          %v1462 = vpack.c.b16 %v1455, %v1454
          %v1463 = vpack.c.b16 %v1457, %v1456
          %v1464 = vpack.c.b16 %v1459, %v1458
          %v1465 = vpack.c.b16 %v1461, %v1460
          %1470 = vmatpush.bf16.msra.mxu0 0
          %1471 = vmatpush.bf16.msra.mxu0 0
          %1472 = vmatpush.bf16.msra.mxu0 0
          %1473 = vmatpush.bf16.msra.mxu0 0
          %1474 = vmatpush.bf16.msra.mxu0 %v1465
          %1475 = vmatpush.bf16.msra.mxu0 %v1464
          %1476 = vmatpush.bf16.msra.mxu0 %v1463
          %1477 = vmatpush.bf16.msra.mxu0 %v1462
          %1478 = vmatmul.bf16.gmra.mxu0 %v816
          %v1479 = vpop.f32.mrf.mxu0
          %v1480 = vadd.f32 %v1444, %v1479
          %v1481 = vpop.f32.mrf.mxu0
          %v1482 = vadd.f32 %v1444, %v1481
          %1483 = vdwg.mxu0
          %v1484 = vpack.c.bf16 %v1378, %v1378
          %v1485 = vpack.c.bf16 %v1379, %v1379
          %v1486 = vpack.c.bf16 %v1428, %v1428
          %v1487 = vpack.c.bf16 %v1430, %v1430
          %v1488 = vpack.c.bf16 %v1480, %v1480
          %v1489 = vpack.c.bf16 %v1482, %v1482
          %v1492 = vunpack.c.l.b16 %v1484
          %v1493 = vunpack.c.l.b16 %v1485
          %v1494 = vpack.c.b16 %v1493, %v1492
          %v1497 = vunpack.c.l.b16 %v1486
          %v1498 = vunpack.c.l.b16 %v1487
          %v1499 = vpack.c.b16 %v1498, %v1497
          %v1501 = vsel %vm954, %v1494, 0
          %v1504 = vsel %vm954, %v1499, 0
          %1506 = vmatpush.bf16.xpose.msra.mxu0 0
          %1507 = vmatpush.bf16.xpose.msra.mxu0 0
          %1508 = vmatpush.bf16.xpose.msra.mxu0 0
          %1509 = vmatpush.bf16.xpose.msra.mxu0 0
          %1510 = vmatpush.bf16.xpose.msra.mxu0 0
          %1511 = vmatpush.bf16.xpose.msra.mxu0 0
          %1512 = vmatpush.bf16.xpose.msra.mxu0 0
          %1513 = vmatpush.bf16.xpose.msra.mxu0 %v1504
          %1514 = vmatmul.bf16.gmra.mxu0 %v1501
          %v1515 = vpop.f32.mrf.mxu0
          %v1516 = vadd.f32 0.0, %v1515
          %v1517 = vpop.f32.mrf.mxu0
          %v1518 = vadd.f32 0.0, %v1517
          %1519 = vdwg.mxu0
          %v1520 = vsel %vm954, %v1516, -inf
          %1521 = vmax.xlane.f32.xlu0 %v1520
          %v1522 = vpop.xlane.xlu0 %1521
          %v1523 = vsel %vm954, %v1518, -inf
          %1524 = vmax.xlane.f32.xlu0 %v1523
          %v1525 = vpop.xlane.xlu0 %1524
          %v1526 = vsub.f32 %v1516, %v1522
          %v1527 = vsub.f32 %v1518, %v1525
          %v1528 = vmul.f32 %v1526, 1.442695
          %v1529 = vpow.pop %v1528
          %v1530 = vmul.f32 %v1527, 1.442695
          %v1531 = vpow.pop %v1530
          %v1532 = vsel %vm954, %v1529, 0.0
          %1533 = vadd.xlane.f32.xlu0 %v1532
          %v1534 = vpop.xlane.xlu0 %1533
          %v1535 = vsel %vm954, %v1531, 0.0
          %1536 = vadd.xlane.f32.xlu0 %v1535
          %v1537 = vpop.xlane.xlu0 %1536
          %v1538 = vrcp.pop %v1534
          %v1539 = vrcp.pop %v1537
          %v1540 = vmul.f32 %v1529, %v1538
          %v1541 = vmul.f32 %v1531, %v1539
          %v1542 = vpack.c.bf16 %v1540, %v1540
          %v1543 = vpack.c.bf16 %v1541, %v1541
          %v1546 = vunpack.c.l.b16 %v1542
          %v1547 = vunpack.c.l.b16 %v1543
          %v1548 = vpack.c.b16 %v1547, %v1546
          %v1551 = vunpack.c.l.b16 %v1488
          %v1552 = vunpack.c.l.b16 %v1489
          %v1553 = vpack.c.b16 %v1552, %v1551
          %v1556 = vsel %vm954, %v1548, 0
          %1558 = vmatpush.bf16.msra.mxu0 0
          %1559 = vmatpush.bf16.msra.mxu0 0
          %1560 = vmatpush.bf16.msra.mxu0 0
          %1561 = vmatpush.bf16.msra.mxu0 0
          %1562 = vmatpush.bf16.msra.mxu0 0
          %1563 = vmatpush.bf16.msra.mxu0 0
          %1564 = vmatpush.bf16.msra.mxu0 0
          %1565 = vmatpush.bf16.msra.mxu0 %v1553
          %1566 = vmatmul.bf16.gmra.mxu0 %v1556
          %v1567 = vpop.f32.mrf.mxu0
          %v1568 = vadd.f32 0.0, %v1567
          %v1569 = vpop.f32.mrf.mxu0
          %v1570 = vadd.f32 0.0, %v1569
          %1571 = vdwg.mxu0
          %v1572 = vpack.c.bf16 %v1570, %v1568
          %s1573 = scalar_lea.vmem %s668, 16
          %v1574 = vld [vmem:[%s1573] sm:$0xf]
          %v1575 = vld [vmem:[%s1573 + $0x4] sm:$0xf]
          %v1578 = vunpack.c.l.b16 %v1574
          %v1579 = vunpack.c.l.b16 %v1575
          %v1580 = vpack.c.b16 %v1579, %v1578
          %v1583 = vsel %vm954, %v1572, 0
          %1585 = vmatpush.bf16.msra.mxu0 0
          %1586 = vmatpush.bf16.msra.mxu0 0
          %1587 = vmatpush.bf16.msra.mxu0 0
          %1588 = vmatpush.bf16.msra.mxu0 0
          %1589 = vmatpush.bf16.msra.mxu0 0
          %1590 = vmatpush.bf16.msra.mxu0 0
          %1591 = vmatpush.bf16.msra.mxu0 0
          %1592 = vmatpush.bf16.msra.mxu0 %v1580
          %1593 = vmatmul.bf16.gmra.mxu0 %v1583
          %v1594 = vpop.f32.mrf.mxu0
          %v1595 = vadd.f32 0.0, %v1594
          %v1596 = vpop.f32.mrf.mxu0
          %v1597 = vadd.f32 0.0, %v1596
          %1598 = vdwg.mxu0
          %v1599 = vadd.f32 %v1322, %v1595
          %v1600 = vadd.f32 %v1324, %v1597
          %s1601 = scalar_lea.vmem %s659, 96
          %v1602 = vld [vmem:[%s1601] sm:$0xf]
          %v1603 = vld [vmem:[%s1601 + $0x4] sm:$0xf]
          %v1604 = vld [vmem:[%s1601 + $0x8] sm:$0xf]
          %v1605 = vld [vmem:[%s1601 + $0xc] sm:$0xf]
          %v1606 = vld [vmem:[%s1601 + $0x10] sm:$0xf]
          %v1607 = vld [vmem:[%s1601 + $0x14] sm:$0xf]
          %v1608 = vld [vmem:[%s1601 + $0x18] sm:$0xf]
          %v1609 = vld [vmem:[%s1601 + $0x1c] sm:$0xf]
          %s1610 = scalar_lea.vmem %s663, 3
          %v1611 = vld [vmem:[%s1610] sm:$0x1]
          %v1613 = vperm.slane %v1611, 0
          %v1623 = vunpack.c.l.b16 %v1602
          %v1624 = vunpack.c.l.b16 %v1603
          %v1625 = vunpack.c.l.b16 %v1604
          %v1626 = vunpack.c.l.b16 %v1605
          %v1627 = vunpack.c.l.b16 %v1606
          %v1628 = vunpack.c.l.b16 %v1607
          %v1629 = vunpack.c.l.b16 %v1608
          %v1630 = vunpack.c.l.b16 %v1609
          %v1631 = vpack.c.b16 %v1624, %v1623
          %v1632 = vpack.c.b16 %v1626, %v1625
          %v1633 = vpack.c.b16 %v1628, %v1627
          %v1634 = vpack.c.b16 %v1630, %v1629
          %1639 = vmatpush.bf16.msra.mxu0 0
          %1640 = vmatpush.bf16.msra.mxu0 0
          %1641 = vmatpush.bf16.msra.mxu0 0
          %1642 = vmatpush.bf16.msra.mxu0 0
          %1643 = vmatpush.bf16.msra.mxu0 %v1634
          %1644 = vmatpush.bf16.msra.mxu0 %v1633
          %1645 = vmatpush.bf16.msra.mxu0 %v1632
          %1646 = vmatpush.bf16.msra.mxu0 %v1631
          %1647 = vmatmul.bf16.gmra.mxu0 %v816
          %v1648 = vpop.f32.mrf.mxu0
          %v1649 = vadd.f32 %v1613, %v1648
          %v1650 = vpop.f32.mrf.mxu0
          %v1651 = vadd.f32 %v1613, %v1650
          %1652 = vdwg.mxu0
          %v1653 = vmul.f32 %v1649, 0.25
          %v1654 = vmul.f32 %v1651, 0.25
          %s1655 = scalar_lea.vmem %s659, 224
          %v1656 = vld [vmem:[%s1655] sm:$0xf]
          %v1657 = vld [vmem:[%s1655 + $0x4] sm:$0xf]
          %v1658 = vld [vmem:[%s1655 + $0x8] sm:$0xf]
          %v1659 = vld [vmem:[%s1655 + $0xc] sm:$0xf]
          %v1660 = vld [vmem:[%s1655 + $0x10] sm:$0xf]
          %v1661 = vld [vmem:[%s1655 + $0x14] sm:$0xf]
          %v1662 = vld [vmem:[%s1655 + $0x18] sm:$0xf]
          %v1663 = vld [vmem:[%s1655 + $0x1c] sm:$0xf]
          %s1664 = scalar_lea.vmem %s663, 7
          %v1665 = vld [vmem:[%s1664] sm:$0x1]
          %v1667 = vperm.slane %v1665, 0
          %v1677 = vunpack.c.l.b16 %v1656
          %v1678 = vunpack.c.l.b16 %v1657
          %v1679 = vunpack.c.l.b16 %v1658
          %v1680 = vunpack.c.l.b16 %v1659
          %v1681 = vunpack.c.l.b16 %v1660
          %v1682 = vunpack.c.l.b16 %v1661
          %v1683 = vunpack.c.l.b16 %v1662
          %v1684 = vunpack.c.l.b16 %v1663
          %v1685 = vpack.c.b16 %v1678, %v1677
          %v1686 = vpack.c.b16 %v1680, %v1679
          %v1687 = vpack.c.b16 %v1682, %v1681
          %v1688 = vpack.c.b16 %v1684, %v1683
          %1693 = vmatpush.bf16.msra.mxu0 0
          %1694 = vmatpush.bf16.msra.mxu0 0
          %1695 = vmatpush.bf16.msra.mxu0 0
          %1696 = vmatpush.bf16.msra.mxu0 0
          %1697 = vmatpush.bf16.msra.mxu0 %v1688
          %1698 = vmatpush.bf16.msra.mxu0 %v1687
          %1699 = vmatpush.bf16.msra.mxu0 %v1686
          %1700 = vmatpush.bf16.msra.mxu0 %v1685
          %1701 = vmatmul.bf16.gmra.mxu0 %v816
          %v1702 = vpop.f32.mrf.mxu0
          %v1703 = vadd.f32 %v1667, %v1702
          %v1704 = vpop.f32.mrf.mxu0
          %v1705 = vadd.f32 %v1667, %v1704
          %1706 = vdwg.mxu0
          %s1707 = scalar_lea.vmem %s659, 352
          %v1708 = vld [vmem:[%s1707] sm:$0xf]
          %v1709 = vld [vmem:[%s1707 + $0x4] sm:$0xf]
          %v1710 = vld [vmem:[%s1707 + $0x8] sm:$0xf]
          %v1711 = vld [vmem:[%s1707 + $0xc] sm:$0xf]
          %v1712 = vld [vmem:[%s1707 + $0x10] sm:$0xf]
          %v1713 = vld [vmem:[%s1707 + $0x14] sm:$0xf]
          %v1714 = vld [vmem:[%s1707 + $0x18] sm:$0xf]
          %v1715 = vld [vmem:[%s1707 + $0x1c] sm:$0xf]
          %s1716 = scalar_lea.vmem %s663, 11
          %v1717 = vld [vmem:[%s1716] sm:$0x1]
          %v1719 = vperm.slane %v1717, 0
          %v1729 = vunpack.c.l.b16 %v1708
          %v1730 = vunpack.c.l.b16 %v1709
          %v1731 = vunpack.c.l.b16 %v1710
          %v1732 = vunpack.c.l.b16 %v1711
          %v1733 = vunpack.c.l.b16 %v1712
          %v1734 = vunpack.c.l.b16 %v1713
          %v1735 = vunpack.c.l.b16 %v1714
          %v1736 = vunpack.c.l.b16 %v1715
          %v1737 = vpack.c.b16 %v1730, %v1729
          %v1738 = vpack.c.b16 %v1732, %v1731
          %v1739 = vpack.c.b16 %v1734, %v1733
          %v1740 = vpack.c.b16 %v1736, %v1735
          %1745 = vmatpush.bf16.msra.mxu0 0
          %1746 = vmatpush.bf16.msra.mxu0 0
          %1747 = vmatpush.bf16.msra.mxu0 0
          %1748 = vmatpush.bf16.msra.mxu0 0
          %1749 = vmatpush.bf16.msra.mxu0 %v1740
          %1750 = vmatpush.bf16.msra.mxu0 %v1739
          %1751 = vmatpush.bf16.msra.mxu0 %v1738
          %1752 = vmatpush.bf16.msra.mxu0 %v1737
          %1753 = vmatmul.bf16.gmra.mxu0 %v816
          %v1754 = vpop.f32.mrf.mxu0
          %v1755 = vadd.f32 %v1719, %v1754
          %v1756 = vpop.f32.mrf.mxu0
          %v1757 = vadd.f32 %v1719, %v1756
          %1758 = vdwg.mxu0
          %v1759 = vpack.c.bf16 %v1653, %v1653
          %v1760 = vpack.c.bf16 %v1654, %v1654
          %v1761 = vpack.c.bf16 %v1703, %v1703
          %v1762 = vpack.c.bf16 %v1705, %v1705
          %v1763 = vpack.c.bf16 %v1755, %v1755
          %v1764 = vpack.c.bf16 %v1757, %v1757
          %v1767 = vunpack.c.l.b16 %v1759
          %v1768 = vunpack.c.l.b16 %v1760
          %v1769 = vpack.c.b16 %v1768, %v1767
          %v1772 = vunpack.c.l.b16 %v1761
          %v1773 = vunpack.c.l.b16 %v1762
          %v1774 = vpack.c.b16 %v1773, %v1772
          %v1776 = vsel %vm954, %v1769, 0
          %v1779 = vsel %vm954, %v1774, 0
          %1781 = vmatpush.bf16.xpose.msra.mxu0 0
          %1782 = vmatpush.bf16.xpose.msra.mxu0 0
          %1783 = vmatpush.bf16.xpose.msra.mxu0 0
          %1784 = vmatpush.bf16.xpose.msra.mxu0 0
          %1785 = vmatpush.bf16.xpose.msra.mxu0 0
          %1786 = vmatpush.bf16.xpose.msra.mxu0 0
          %1787 = vmatpush.bf16.xpose.msra.mxu0 0
          %1788 = vmatpush.bf16.xpose.msra.mxu0 %v1779
          %1789 = vmatmul.bf16.gmra.mxu0 %v1776
          %v1790 = vpop.f32.mrf.mxu0
          %v1791 = vadd.f32 0.0, %v1790
          %v1792 = vpop.f32.mrf.mxu0
          %v1793 = vadd.f32 0.0, %v1792
          %1794 = vdwg.mxu0
          %v1795 = vsel %vm954, %v1791, -inf
          %1796 = vmax.xlane.f32.xlu0 %v1795
          %v1797 = vpop.xlane.xlu0 %1796
          %v1798 = vsel %vm954, %v1793, -inf
          %1799 = vmax.xlane.f32.xlu0 %v1798
          %v1800 = vpop.xlane.xlu0 %1799
          %v1801 = vsub.f32 %v1791, %v1797
          %v1802 = vsub.f32 %v1793, %v1800
          %v1803 = vmul.f32 %v1801, 1.442695
          %v1804 = vpow.pop %v1803
          %v1805 = vmul.f32 %v1802, 1.442695
          %v1806 = vpow.pop %v1805
          %v1807 = vsel %vm954, %v1804, 0.0
          %1808 = vadd.xlane.f32.xlu0 %v1807
          %v1809 = vpop.xlane.xlu0 %1808
          %v1810 = vsel %vm954, %v1806, 0.0
          %1811 = vadd.xlane.f32.xlu0 %v1810
          %v1812 = vpop.xlane.xlu0 %1811
          %v1813 = vrcp.pop %v1809
          %v1814 = vrcp.pop %v1812
          %v1815 = vmul.f32 %v1804, %v1813
          %v1816 = vmul.f32 %v1806, %v1814
          %v1817 = vpack.c.bf16 %v1815, %v1815
          %v1818 = vpack.c.bf16 %v1816, %v1816
          %v1821 = vunpack.c.l.b16 %v1817
          %v1822 = vunpack.c.l.b16 %v1818
          %v1823 = vpack.c.b16 %v1822, %v1821
          %v1826 = vunpack.c.l.b16 %v1763
          %v1827 = vunpack.c.l.b16 %v1764
          %v1828 = vpack.c.b16 %v1827, %v1826
          %v1831 = vsel %vm954, %v1823, 0
          %1833 = vmatpush.bf16.msra.mxu0 0
          %1834 = vmatpush.bf16.msra.mxu0 0
          %1835 = vmatpush.bf16.msra.mxu0 0
          %1836 = vmatpush.bf16.msra.mxu0 0
          %1837 = vmatpush.bf16.msra.mxu0 0
          %1838 = vmatpush.bf16.msra.mxu0 0
          %1839 = vmatpush.bf16.msra.mxu0 0
          %1840 = vmatpush.bf16.msra.mxu0 %v1828
          %1841 = vmatmul.bf16.gmra.mxu0 %v1831
          %v1842 = vpop.f32.mrf.mxu0
          %v1843 = vadd.f32 0.0, %v1842
          %v1844 = vpop.f32.mrf.mxu0
          %v1845 = vadd.f32 0.0, %v1844
          %1846 = vdwg.mxu0
          %v1847 = vpack.c.bf16 %v1845, %v1843
          %s1848 = scalar_lea.vmem %s668, 24
          %v1849 = vld [vmem:[%s1848] sm:$0xf]
          %v1850 = vld [vmem:[%s1848 + $0x4] sm:$0xf]
          %v1853 = vunpack.c.l.b16 %v1849
          %v1854 = vunpack.c.l.b16 %v1850
          %v1855 = vpack.c.b16 %v1854, %v1853
          %v1858 = vsel %vm954, %v1847, 0
          %1860 = vmatpush.bf16.msra.mxu0 0
          %1861 = vmatpush.bf16.msra.mxu0 0
          %1862 = vmatpush.bf16.msra.mxu0 0
          %1863 = vmatpush.bf16.msra.mxu0 0
          %1864 = vmatpush.bf16.msra.mxu0 0
          %1865 = vmatpush.bf16.msra.mxu0 0
          %1866 = vmatpush.bf16.msra.mxu0 0
          %1867 = vmatpush.bf16.msra.mxu0 %v1855
          %1868 = vmatmul.bf16.gmra.mxu0 %v1858
          %v1869 = vpop.f32.mrf.mxu0
          %v1870 = vadd.f32 0.0, %v1869
          %v1871 = vpop.f32.mrf.mxu0
          %v1872 = vadd.f32 0.0, %v1871
          %1873 = vdwg.mxu0
          %v1874 = vadd.f32 %v1599, %v1870
          %v1875 = vadd.f32 %v1600, %v1872
          %v1876 = vld [vmem:[%s671] sm:$0x1]
          %v1878 = vperm.slane %v1876, 0
          %v1880 = vadd.f32 %v1874, %v1878
          %v1881 = vadd.f32 %v1875, %v1878
          %v1882 = vperm.slane %v712, 2
          %v1883 = vmul.f32 %v1882, %v1880
          %v1884 = vmul.f32 %v1882, %v1881
          %v1885 = vadd.f32 %v710, %v1883
          %v1886 = vadd.f32 %v711, %v1884
          %1887 = vst.msk [vmem:[%s641] sm:$0xff] %vm713, %v1885
          %1888 = vst.msk [vmem:[%s641 + $0x8] sm:$0xff] %vm713, %v1886
          %v1889 = vsel %vm713, %v1885, 0.0
          %1890 = vadd.xlane.f32.xlu0 %v1889
          %v1891 = vpop.xlane.xlu0 %1890
          %v1892 = vsel %vm713, %v1886, 0.0
          %1893 = vadd.xlane.f32.xlu0 %v1892
          %v1894 = vpop.xlane.xlu0 %1893
          %v1895 = vmul.f32 %v1891, %v726
          %v1896 = vmul.f32 %v1894, %v726
          %v1897 = vsub.f32 %v1885, %v1895
          %v1898 = vsub.f32 %v1886, %v1896
          %v1899 = vmul.f32 %v1897, %v1897
          %v1900 = vmul.f32 %v1898, %v1898
          %v1901 = vsel %vm713, %v1899, 0.0
          %1902 = vadd.xlane.f32.xlu0 %v1901
          %v1903 = vpop.xlane.xlu0 %1902
          %v1904 = vsel %vm713, %v1900, 0.0
          %1905 = vadd.xlane.f32.xlu0 %v1904
          %v1906 = vpop.xlane.xlu0 %1905
          %v1907 = vmul.f32 %v1903, %v726
          %v1908 = vmul.f32 %v1906, %v726
          %v1909 = vadd.f32 %v1907, 1e-05
          %v1910 = vadd.f32 %v1908, 1e-05
          %v1911 = vrsqrt.pop %v1909
          %v1912 = vmul.f32 %v1911, %v1909
          %v1913 = vmul.f32 %v1912, %v1911
          %v1914 = vmul.f32 0.5, %v1913
          %v1915 = vsub.f32 1.5, %v1914
          %v1916 = vmul.f32 %v1911, %v1915
          %vm1917 = vweird.f32 %v1909
          %vm1918 = vweird.f32 %v1911
          %vm1919 = vmor %vm1917, %vm1918
          %v1920 = vsel %vm1919, %v1911, %v1916
          %v1921 = vrsqrt.pop %v1910
          %v1922 = vmul.f32 %v1921, %v1910
          %v1923 = vmul.f32 %v1922, %v1921
          %v1924 = vmul.f32 0.5, %v1923
          %v1925 = vsub.f32 1.5, %v1924
          %v1926 = vmul.f32 %v1921, %v1925
          %vm1927 = vweird.f32 %v1910
          %vm1928 = vweird.f32 %v1921
          %vm1929 = vmor %vm1927, %vm1928
          %v1930 = vsel %vm1929, %v1921, %v1926
          %v1931 = vmul.f32 %v1897, %v1920
          %v1932 = vmul.f32 %v1898, %v1930
          %v1933 = vperm.slane %v765, 3
          %v1934 = vmul.f32 %v1931, %v1933
          %v1935 = vmul.f32 %v1932, %v1933
          %v1936 = vperm.slane %v712, 4
          %v1937 = vadd.f32 %v1934, %v1936
          %v1938 = vadd.f32 %v1935, %v1936
          %v1939 = vpack.c.bf16 %v1937, %v1937
          %v1940 = vpack.c.bf16 %v1938, %v1938
          %vm1941 = vcmask 519168
          %1942 = vst.msk [vmem:[#allocation2] sm:$0xf] %vm1941, %v1939
          %1943 = vst.msk [vmem:[#allocation2 + $0x4] sm:$0xf] %vm1941, %v1940
          %1944 = vst.msk [vmem:[#allocation3] sm:$0xff] %vm713, 0.0
          %1945 = vst.msk [vmem:[#allocation3 + $0x8] sm:$0xff] %vm713, 0.0
        $region109: #{tpu_custom_call.1} parent=100 // pred_fallthru
          _
        %v1946 = vld [vmem:[#allocation2] sm:$0xf]
        %v1947 = vld [vmem:[#allocation2 + $0x4] sm:$0xf]
        %v1948 = vld [vmem:[%s552] sm:$0xf]
        %v1949 = vld [vmem:[%s552 + $0x4] sm:$0xf]
        %v1950 = vld [vmem:[%s552 + $0x8] sm:$0xf]
        %v1951 = vld [vmem:[%s552 + $0xc] sm:$0xf]
        %v1952 = vld [vmem:[%s552 + $0x10] sm:$0xf]
        %v1953 = vld [vmem:[%s552 + $0x14] sm:$0xf]
        %v1954 = vld [vmem:[%s552 + $0x18] sm:$0xf]
        %v1955 = vld [vmem:[%s552 + $0x1c] sm:$0xf]
        %v1956 = vld [vmem:[%s678] sm:$0x1]
        %v1958 = vperm.slane %v1956, 0
        %v1962 = vunpack.c.l.b16 %v1946
        %v1963 = vunpack.c.l.b16 %v1947
        %v1964 = vpack.c.b16 %v1963, %v1962
        %v1973 = vunpack.c.l.b16 %v1948
        %v1974 = vunpack.c.l.b16 %v1949
        %v1975 = vunpack.c.l.b16 %v1950
        %v1976 = vunpack.c.l.b16 %v1951
        %v1977 = vunpack.c.l.b16 %v1952
        %v1978 = vunpack.c.l.b16 %v1953
        %v1979 = vunpack.c.l.b16 %v1954
        %v1980 = vunpack.c.l.b16 %v1955
        %v1981 = vpack.c.b16 %v1974, %v1973
        %v1982 = vpack.c.b16 %v1976, %v1975
        %v1983 = vpack.c.b16 %v1978, %v1977
        %v1984 = vpack.c.b16 %v1980, %v1979
        %vm1989 = vcmask 523264
        %v1991 = vsel %vm1989, %v1964, 0
        %1993 = vmatpush.bf16.msra.mxu0 0
        %1994 = vmatpush.bf16.msra.mxu0 0
        %1995 = vmatpush.bf16.msra.mxu0 0
        %1996 = vmatpush.bf16.msra.mxu0 0
        %1997 = vmatpush.bf16.msra.mxu0 %v1984
        %1998 = vmatpush.bf16.msra.mxu0 %v1983
        %1999 = vmatpush.bf16.msra.mxu0 %v1982
        %2000 = vmatpush.bf16.msra.mxu0 %v1981
        %2001 = vmatmul.bf16.gmra.mxu0 %v1991
        %v2002 = vpop.f32.mrf.mxu0
        %v2003 = vadd.f32 %v1958, %v2002
        %v2004 = vpop.f32.mrf.mxu0
        %v2005 = vadd.f32 %v1958, %v2004
        %2006 = vdwg.mxu0
        %v2007 = vmul.f32 %v2003, 0.5
        %v2008 = vmul.f32 %v2005, 0.5
        %v2009 = vmul.f32 %v2003, 0.044715
        %v2010 = vmul.f32 %v2005, 0.044715
        %v2011 = vmul.f32 %v2009, %v2003
        %v2012 = vmul.f32 %v2010, %v2005
        %v2013 = vmul.f32 %v2011, %v2003
        %v2014 = vmul.f32 %v2012, %v2005
        %v2015 = vadd.f32 %v2003, %v2013
        %v2016 = vadd.f32 %v2005, %v2014
        %v2017 = vmul.f32 %v2015, 0.7978846
        %v2018 = vmul.f32 %v2016, 0.7978846
        %v2019 = vtanh.pop %v2017
        %v2020 = vtanh.pop %v2018
        %v2021 = vadd.f32 %v2019, 1.0
        %v2022 = vadd.f32 %v2020, 1.0
        %v2023 = vmul.f32 %v2007, %v2021
        %v2024 = vmul.f32 %v2008, %v2022
        %v2025 = vld [vmem:[#allocation3] sm:$0xff]
        %v2026 = vld [vmem:[#allocation3 + $0x8] sm:$0xff]
        %v2027 = vpack.c.bf16 %v2024, %v2023
        %v2028 = vld [vmem:[%s687] sm:$0xf]
        %v2029 = vld [vmem:[%s687 + $0x4] sm:$0xf]
        %v2030 = vld [vmem:[%s687 + $0x8] sm:$0xf]
        %v2031 = vld [vmem:[%s687 + $0xc] sm:$0xf]
        %v2032 = vld [vmem:[%s687 + $0x10] sm:$0xf]
        %v2033 = vld [vmem:[%s687 + $0x14] sm:$0xf]
        %v2034 = vld [vmem:[%s687 + $0x18] sm:$0xf]
        %v2035 = vld [vmem:[%s687 + $0x1c] sm:$0xf]
        %v2036 = vld [vmem:[%s687 + $0x20] sm:$0xf]
        %v2037 = vld [vmem:[%s687 + $0x24] sm:$0xf]
        %v2038 = vld [vmem:[%s687 + $0x28] sm:$0xf]
        %v2039 = vld [vmem:[%s687 + $0x2c] sm:$0xf]
        %v2040 = vld [vmem:[%s687 + $0x30] sm:$0xf]
        %v2041 = vld [vmem:[%s687 + $0x34] sm:$0xf]
        %v2042 = vld [vmem:[%s687 + $0x38] sm:$0xf]
        %v2043 = vld [vmem:[%s687 + $0x3c] sm:$0xf]
        %v2060 = vunpack.c.l.b16 %v2028
        %v2061 = vunpack.c.l.b16 %v2029
        %v2062 = vunpack.c.l.b16 %v2030
        %v2063 = vunpack.c.l.b16 %v2031
        %v2064 = vunpack.c.l.b16 %v2032
        %v2065 = vunpack.c.l.b16 %v2033
        %v2066 = vunpack.c.l.b16 %v2034
        %v2067 = vunpack.c.l.b16 %v2035
        %v2068 = vunpack.c.l.b16 %v2036
        %v2069 = vunpack.c.l.b16 %v2037
        %v2070 = vunpack.c.l.b16 %v2038
        %v2071 = vunpack.c.l.b16 %v2039
        %v2072 = vunpack.c.l.b16 %v2040
        %v2073 = vunpack.c.l.b16 %v2041
        %v2074 = vunpack.c.l.b16 %v2042
        %v2075 = vunpack.c.l.b16 %v2043
        %v2076 = vpack.c.b16 %v2061, %v2060
        %v2077 = vpack.c.b16 %v2063, %v2062
        %v2078 = vpack.c.b16 %v2065, %v2064
        %v2079 = vpack.c.b16 %v2067, %v2066
        %v2080 = vpack.c.b16 %v2069, %v2068
        %v2081 = vpack.c.b16 %v2071, %v2070
        %v2082 = vpack.c.b16 %v2073, %v2072
        %v2083 = vpack.c.b16 %v2075, %v2074
        %2092 = vmatpush.bf16.msra.mxu0 %v2083
        %2093 = vmatpush.bf16.msra.mxu0 %v2082
        %2094 = vmatpush.bf16.msra.mxu0 %v2081
        %2095 = vmatpush.bf16.msra.mxu0 %v2080
        %2096 = vmatpush.bf16.msra.mxu0 %v2079
        %2097 = vmatpush.bf16.msra.mxu0 %v2078
        %2098 = vmatpush.bf16.msra.mxu0 %v2077
        %2099 = vmatpush.bf16.msra.mxu0 %v2076
        %2100 = vmatmul.bf16.gmra.mxu0 %v2027
        %v2101 = vpop.f32.mrf.mxu0
        %v2102 = vadd.f32 0.0, %v2101
        %v2103 = vpop.f32.mrf.mxu0
        %v2104 = vadd.f32 0.0, %v2103
        %2105 = vdwg.mxu0
        %v2106 = vadd.f32 %v2025, %v2102
        %v2107 = vadd.f32 %v2026, %v2104
        %2108 = vst.msk [vmem:[#allocation3] sm:$0xff] %vm1989, %v2106
        %2109 = vst.msk [vmem:[#allocation3 + $0x8] sm:$0xff] %vm1989, %v2107
        %p2110 = scmp.eq.s32.totalorder %s32, 1
        // Predicated region
        $region114: #{tpu_custom_call.1} parent=100 // pred_check
          %p2111 = pneg %p2110
        $region115: #{tpu_custom_call.1} parent=100 // pred_check_branch
          %2113 = sbr.rel (%p2111) target = $region117
        $region116: #{tpu_custom_call.1} parent=100 // pred_region
          %v2114 = vld [vmem:[%s654] sm:$0x3f]
          %v2115 = vld [vmem:[#allocation3] sm:$0xff]
          %v2116 = vld [vmem:[#allocation3 + $0x8] sm:$0xff]
          %v2117 = vld [vmem:[%s691] sm:$0x1]
          %v2119 = vperm.slane %v2117, 0
          %v2121 = vadd.f32 %v2115, %v2119
          %v2122 = vadd.f32 %v2116, %v2119
          %v2123 = vld [vmem:[%s641] sm:$0xff]
          %v2124 = vld [vmem:[%s641 + $0x8] sm:$0xff]
          %v2125 = vperm.slane %v2114, 5
          %v2126 = vmul.f32 %v2125, %v2121
          %v2127 = vmul.f32 %v2125, %v2122
          %v2128 = vadd.f32 %v2123, %v2126
          %v2129 = vadd.f32 %v2124, %v2127
          %2130 = vst.msk [vmem:[%s641] sm:$0xff] %vm1989, %v2128
          %2131 = vst.msk [vmem:[%s641 + $0x8] sm:$0xff] %vm1989, %v2129
          %p2132 = scmp.eq.s32.totalorder %s31, 2
          // Predicated region
          $region118: #{tpu_custom_call.1} parent=116 // pred_check
            %p2133 = pneg %p2132
          $region119: #{tpu_custom_call.1} parent=116 // pred_check_branch
            %2135 = sbr.rel (%p2133) target = $region121
          $region120: #{tpu_custom_call.1} parent=116 // pred_region
            %v2136 = vld [vmem:[%s695] sm:$0x3]
            %v2137 = vsel %vm1989, %v2128, 0.0
            %2138 = vadd.xlane.f32.xlu0 %v2137
            %v2139 = vpop.xlane.xlu0 %2138
            %v2140 = vsel %vm1989, %v2129, 0.0
            %2141 = vadd.xlane.f32.xlu0 %v2140
            %v2142 = vpop.xlane.xlu0 %2141
            %v2143 = vrcp.pop 64.0
            %v2144 = vmul.f32 64.0, %v2143
            %v2145 = vsub.f32 1.0, %v2144
            %v2146 = vmul.f32 %v2143, %v2145
            %v2147 = vadd.f32 %v2143, %v2146
            %vm2148 = vweird.f32 %v2143
            %v2149 = vsel %vm2148, %v2143, %v2147
            %v2150 = vmul.f32 %v2139, %v2149
            %v2151 = vmul.f32 %v2142, %v2149
            %v2152 = vsub.f32 %v2128, %v2150
            %v2153 = vsub.f32 %v2129, %v2151
            %v2154 = vmul.f32 %v2152, %v2152
            %v2155 = vmul.f32 %v2153, %v2153
            %v2156 = vsel %vm1989, %v2154, 0.0
            %2157 = vadd.xlane.f32.xlu0 %v2156
            %v2158 = vpop.xlane.xlu0 %2157
            %v2159 = vsel %vm1989, %v2155, 0.0
            %2160 = vadd.xlane.f32.xlu0 %v2159
            %v2161 = vpop.xlane.xlu0 %2160
            %v2162 = vmul.f32 %v2158, %v2149
            %v2163 = vmul.f32 %v2161, %v2149
            %v2164 = vadd.f32 %v2162, 1e-05
            %v2165 = vadd.f32 %v2163, 1e-05
            %v2166 = vrsqrt.pop %v2164
            %v2167 = vmul.f32 %v2166, %v2164
            %v2168 = vmul.f32 %v2167, %v2166
            %v2169 = vmul.f32 0.5, %v2168
            %v2170 = vsub.f32 1.5, %v2169
            %v2171 = vmul.f32 %v2166, %v2170
            %vm2172 = vweird.f32 %v2164
            %vm2173 = vweird.f32 %v2166
            %vm2174 = vmor %vm2172, %vm2173
            %v2175 = vsel %vm2174, %v2166, %v2171
            %v2176 = vrsqrt.pop %v2165
            %v2177 = vmul.f32 %v2176, %v2165
            %v2178 = vmul.f32 %v2177, %v2176
            %v2179 = vmul.f32 0.5, %v2178
            %v2180 = vsub.f32 1.5, %v2179
            %v2181 = vmul.f32 %v2176, %v2180
            %vm2182 = vweird.f32 %v2165
            %vm2183 = vweird.f32 %v2176
            %vm2184 = vmor %vm2182, %vm2183
            %v2185 = vsel %vm2184, %v2176, %v2181
            %v2186 = vmul.f32 %v2152, %v2175
            %v2187 = vmul.f32 %v2153, %v2185
            %v2188 = vadd.f32 %v2136, 1.0
            %v2189 = vperm.slane %v2188, 0
            %v2190 = vmul.f32 %v2186, %v2189
            %v2191 = vmul.f32 %v2187, %v2189
            %v2192 = vperm.slane %v2136, 1
            %v2193 = vadd.f32 %v2190, %v2192
            %v2194 = vadd.f32 %v2191, %v2192
            %2195 = vst.msk [vmem:[%s641] sm:$0xff] %vm1989, %v2193
            %2196 = vst.msk [vmem:[%s641 + $0x8] sm:$0xff] %vm1989, %v2194
          $region121: #{tpu_custom_call.1} parent=116 // pred_fallthru
            _
        $region117: #{tpu_custom_call.1} parent=100 // pred_fallthru
          _
        %s2197 = sand.u32 %s346, 1
        %s2198 = scalar_lea.sflag [#allocation6], %s2197
        %s2199 = sand.u32 %s346, 1
        %s2200 = smul.addr %s2199, 16
        %s2201 = scalar_lea.vmem [#allocation5], %s2200
        // Predicated region
        $region122: #{tpu_custom_call.1} parent=100 // pred_check
          %p2202 = pneg %p356
        $region123: #{tpu_custom_call.1} parent=100 // pred_check_branch
          %2204 = sbr.rel (%p2202) target = $region125
        $region124: #{tpu_custom_call.1} parent=100 // pred_region
          %2206 = vsyncadd %s2198, 0
          %s2207 = smul.addr %s30, 2
          %s2208 = smul.addr %s2207, 8
          %s2209 = scalar_lea.hbm %s11, %s2208
          %s2210 = sshll.u32 %s2201, 4
          %s2211 = int_to_ptr.vmem [resolvable:$true] %s2210
          %s2212 = sshll.u32 %s2209, 4
          %s2213 = int_to_ptr.hbm [resolvable:$true] %s2212
          %2218 = dma.vmem_to_hbm [thread:$0]  %s2211, 256, %s2213, %s2198, 128, 128, 8
        $region125: #{tpu_custom_call.1} parent=100 // pred_fallthru
          _
      $region101: #{tpu_custom_call.1} parent=5 // pred_fallthru
        _
      %p2219 = scmp.le.s32.totalorder 2, %s20
      // Predicated region
      $region126: #{tpu_custom_call.1} parent=5 // pred_check
        %p2220 = pneg %p2219
      $region127: #{tpu_custom_call.1} parent=5 // pred_check_branch
        %2222 = sbr.rel (%p2220) target = $region129
      $region128: #{tpu_custom_call.1} parent=5 // pred_region
        %s2223 = ssub.s32 %s20, 2
        // Predicated region
        $region130: #{tpu_custom_call.1} parent=128 // pred_check
          %p2224 = pneg %p362
        $region131: #{tpu_custom_call.1} parent=128 // pred_check_branch
          %2226 = sbr.rel (%p2224) target = $region133
        $region132: #{tpu_custom_call.1} parent=128 // pred_region
          %s2227 = sand.u32 %s347, 1
          %s2228 = scalar_lea.sflag [#allocation6], %s2227
          %s2229 = sand.u32 %s347, 1
          %s2230 = smul.addr %s2229, 16
          %s2231 = scalar_lea.vmem [#allocation5], %s2230
          %2233 = dma.done %s2228, 256
        $region133: #{tpu_custom_call.1} parent=128 // pred_fallthru
          _
      $region129: #{tpu_custom_call.1} parent=5 // pred_fallthru
        _
    $region6: #{tpu_custom_call.1} parent=1 // loop_footer
      %s24 = sadd.s32 1, %s20
    $region7: #{tpu_custom_call.1} parent=1 // loop_footer_branch
      %19 = sbr.rel target = $region3
    $region8: #{tpu_custom_call.1} parent=1 // loop_exit
      _
    %2234 = vsyncpa [#allocation6], 1
    %s2235 = scalar_lea.sflag [#allocation6], 1
    %2236 = vsyncpa %s2235, 1

</llo_original>
